<compile_context>
chip_gen: v7x
topology: tpu7x:2x2x1
jax: 0.10.0
libtpu: 0.0.40
codegen_flags: <defaults>
</compile_context>

<pallas_src>
import math
from functools import partial

import jax
import jax.numpy as jnp
from jax.experimental import pallas as pl
from jax.experimental.pallas import tpu as pltpu

# ----------------------------- config ---------------------------------------
PATCH = 4            # ConvNeXt patchify stem: 4x4 stride-4 conv
DIM = 32             # mini backbone feature dim ("num_features")
N_BLOCKS = 2         # mini backbone depth
N_CLS = 15           # region classes
N_REG = 2            # lat/lon
DW_K = 7             # depthwise conv kernel size
OUT_PAD = 128        # fused (cls|reg) head output padded to one full lane tile
_LN_EPS = 1e-6


# --------------------------- in-kernel helpers -------------------------------
def _gelu(x):
    # tanh-approximate GELU (EUP tanh slot).
    # TODO(synk): timm ConvNeXt uses exact-erf nn.GELU; tanh approx is ~1e-3 off.
    c = math.sqrt(2.0 / math.pi)
    return 0.5 * x * (1.0 + jnp.tanh(c * (x + 0.044715 * x * x * x)))


def _ln_groups(x, avg, gamma_t, beta_t, eps=_LN_EPS):
    """Channel LayerNorm in the lane-dense (rows, W*C) layout.

    `avg` is a block-diagonal (W*C, W*C) averaging matrix (ones(C,C)/C blocks),
    so per-(row, spatial-x) channel mean/var come out of two MXU matmuls
    instead of cross-lane shuffles; statistics stay in f32.
    """
    mu = jnp.dot(x, avg, preferred_element_type=jnp.float32)
    d = x - mu
    var = jnp.dot(d * d, avg, preferred_element_type=jnp.float32)
    return d * jax.lax.rsqrt(var + eps) * gamma_t + beta_t


def _ln_lastdim(x, gamma, beta, eps=_LN_EPS):
    mu = jnp.mean(x, axis=-1, keepdims=True)
    d = x - mu
    var = jnp.mean(d * d, axis=-1, keepdims=True)
    return d * jax.lax.rsqrt(var + eps) * gamma + beta


# ------------------------------ fused kernel ---------------------------------
def geomt_fused_kernel(patches_ref,
                       stem_w_ref, stem_b_ref, stem_g_ref, stem_be_ref,
                       avg_ref,
                       dwm_ref, dwb_ref, bg_ref, bb_ref,
                       w1_ref, b1_ref, w2_ref, b2_ref, ls_ref,
                       pool_ref, hg_ref, hbe_ref, hw_ref, hb_ref,
                       out_ref, *, hp, wp):
    """Whole GeoMT forward for one image; activations stay resident on-chip.

    Activation layout is lane-dense: rows = H (sublanes), lanes = W*C.
    """
    lanes = wp * DIM
    halo = DW_K // 2
    avg = avg_ref[...]                                              # (lanes, lanes) f32

    # ---- patchify stem: lane-dense block-diagonal matmul (bf16 MXU) + LN ----
    s = jnp.dot(patches_ref[0], stem_w_ref[...],
                preferred_element_type=jnp.float32) + stem_b_ref[...]
    s = _ln_groups(s, avg, stem_g_ref[...], stem_be_ref[...])       # (hp, lanes)

    zrows = jnp.zeros((halo, lanes), jnp.float32)                   # hoisted

    for blk in range(N_BLOCKS):
        # 7x7 depthwise conv.  Vertical taps: zero-pad rows on-chip (no HBM
        # `ypad` round trip) + 7 static row-offset slices.  Horizontal taps:
        # pre-folded into 7 banded block-diagonal (W*C, W*C) matrices so the
        # whole W x C accumulation runs on the (otherwise idle) MXU instead of
        # 49 sublane-misaligned VPU slices.
        spad = jnp.concatenate([zrows, s, zrows], axis=0)           # (hp+6, lanes)
        acc = jnp.zeros((hp, lanes), jnp.float32)
        for ky in range(DW_K):
            acc = acc + jnp.dot(spad[ky:ky + hp, :], dwm_ref[blk, ky],
                                preferred_element_type=jnp.float32)
        acc = acc + dwb_ref[blk]

        # LN -> pwconv1 (C->4C) -> GELU -> pwconv2 (4C->C) -> layer-scale ->
        # residual.  Pointwise convs are block-diagonal lane-dense bf16 MXU
        # matmuls; LN stats / GELU / residual stay f32 (v5e VPU/EUP has no bf16).
        h = _ln_groups(acc, avg, bg_ref[blk], bb_ref[blk])
        z = jnp.dot(h.astype(jnp.bfloat16), w1_ref[blk],
                    preferred_element_type=jnp.float32) + b1_ref[blk]
        z = _gelu(z)
        z = jnp.dot(z.astype(jnp.bfloat16), w2_ref[blk],
                    preferred_element_type=jnp.float32) + b2_ref[blk]
        s = s + z * ls_ref[blk]

    # ---- head: global avg-pool -> LN -> fused zero-padded (cls|reg) matmul --
    mx = jnp.mean(s, axis=0, keepdims=True)                         # (1, lanes)
    f = jnp.dot(mx, pool_ref[...], preferred_element_type=jnp.float32)  # (1, DIM)
    f = _ln_lastdim(f, hg_ref[...], hbe_ref[...])
    o = jnp.dot(f.astype(jnp.bfloat16), hw_ref[...],
                preferred_element_type=jnp.float32) + hb_ref[...]   # (1, OUT_PAD)
    out_ref[0] = o


# --------------------------- weight re-layout --------------------------------
def _block_diag(w, reps):
    """[k, d] -> [reps*k, reps*d] block-diagonal (one block per spatial x)."""
    k, d = w.shape
    out = jnp.zeros((reps * k, reps * d), w.dtype)
    for r in range(reps):
        out = out.at[r * k:(r + 1) * k, r * d:(r + 1) * d].set(w)
    return out


def _tile_lanes(v, reps):
    """[d] -> [1, reps*d]: per-channel vector tiled across spatial-x lane groups."""
    return jnp.tile(jnp.asarray(v, jnp.float32).reshape(1, -1), (1, reps))


def _dw_band_mats(dw_w, wp):
    """Fold the 7 horizontal taps of the depthwise 7x7 conv into 7 banded
    block-diagonal (W*C, W*C) matrices (one per vertical tap ky):
        M_ky[(x_in*C + c), (x_out*C + c)] = dw_w[ky*7 + (x_in - x_out + 3), c]
    for |x_in - x_out| <= 3, zero elsewhere (zero padding is implicit)."""
    dim = dw_w.shape[1]
    half = DW_K // 2
    mats = []
    for ky in range(DW_K):
        m = jnp.zeros((wp * dim, wp * dim), jnp.float32)
        for j_out in range(wp):
            for j_in in range(wp):
                kx = j_in - j_out + half
                if 0 <= kx < DW_K:
                    m = m.at[j_in * dim:(j_in + 1) * dim,
                             j_out * dim:(j_out + 1) * dim].set(
                                 jnp.diag(dw_w[ky * DW_K + kx]))
        mats.append(m)
    return jnp.stack(mats)                                          # (7, W*C, W*C)


_OPERAND_ORDER = ("stem_w", "stem_b", "stem_g", "stem_be", "ln_avg",
                  "dw_mats", "dw_b", "blk_g", "blk_be",
                  "w1", "b1", "w2", "b2", "ls",
                  "pool", "head_g", "head_be", "head_w", "head_b")


def pack_params(params, wp):
    """Re-layout logical weights for the fused lane-dense kernel: block-diagonal
    matmul weights, lane-tiled per-channel vectors, banded dw-conv matrices,
    bf16 MXU operands and the fused zero-padded (cls|reg) head."""
    blocks = params["blocks"]
    return {
        "stem_w": _block_diag(params["stem_w"], wp).astype(jnp.bfloat16),
        "stem_b": _tile_lanes(params["stem_b"], wp),
        "stem_g": _tile_lanes(params["stem_ln_g"], wp),
        "stem_be": _tile_lanes(params["stem_ln_b"], wp),
        "ln_avg": _block_diag(jnp.full((DIM, DIM), 1.0 / DIM, jnp.float32), wp),
        "dw_mats": jnp.stack([_dw_band_mats(b["dw_w"], wp) for b in blocks]),
        "dw_b": jnp.stack([_tile_lanes(b["dw_b"], wp) for b in blocks]),
        "blk_g": jnp.stack([_tile_lanes(b["ln_g"], wp) for b in blocks]),
        "blk_be": jnp.stack([_tile_lanes(b["ln_b"], wp) for b in blocks]),
        "w1": jnp.stack([_block_diag(b["w1"], wp) for b in blocks]).astype(jnp.bfloat16),
        "b1": jnp.stack([_tile_lanes(b["b1"], wp) for b in blocks]),
        "w2": jnp.stack([_block_diag(b["w2"], wp) for b in blocks]).astype(jnp.bfloat16),
        "b2": jnp.stack([_tile_lanes(b["b2"], wp) for b in blocks]),
        "ls": jnp.stack([_tile_lanes(b["ls"], wp) for b in blocks]),
        "pool": jnp.tile(jnp.eye(DIM, dtype=jnp.float32), (wp, 1)) / wp,
        "head_g": params["head_ln_g"].reshape(1, DIM),
        "head_be": params["head_ln_b"].reshape(1, DIM),
        "head_w": (jnp.zeros((DIM, OUT_PAD), jnp.float32)
                   .at[:, :N_CLS].set(params["cls_w"])
                   .at[:, N_CLS:N_CLS + N_REG].set(params["reg_w"])
                   ).astype(jnp.bfloat16),
        "head_b": (jnp.zeros((1, OUT_PAD), jnp.float32)
                   .at[0, :N_CLS].set(params["cls_b"])
                   .at[0, N_CLS:N_CLS + N_REG].set(params["reg_b"])),
    }


# ------------------------------- forward -------------------------------------
@jax.jit
def geomt_forward(packed, x_nchw):
    """GeoMT forward: one fused Pallas call, grid over batch ("parallel" ->
    both v7x TensorCores), returns (cls_logits (B,15), latlon (B,2))."""
    x = x_nchw.astype(jnp.float32)
    b, cin, h, w = x.shape
    hp, wp = h // PATCH, w // PATCH

    # NCHW -> per-row lane-dense patch slab (B, Hp, Wp*P*P*Cin); the patchify
    # matmul itself runs in-kernel on the MXU.
    # TODO(synk): fold this one-pass XLA transpose into the kernel's input
    # BlockSpec (strided in-kernel gather) to save one HBM pass at real sizes.
    patches = (x.reshape(b, cin, hp, PATCH, wp, PATCH)
                 .transpose(0, 2, 4, 1, 3, 5)
                 .reshape(b, hp, wp * cin * PATCH * PATCH)
                 .astype(jnp.bfloat16))

    operands = [packed[k] for k in _OPERAND_ORDER]

    def const_spec(arr):
        nd = arr.ndim
        # Full-array block, constant block index -> fetched to VMEM once, not
        # re-DMA'd per grid step.
        return pl.BlockSpec(arr.shape, lambda i, _n=nd: (0,) * _n)

    out = pl.pallas_call(
        partial(geomt_fused_kernel, hp=hp, wp=wp),
        grid=(b,),
        out_shape=jax.ShapeDtypeStruct((b, 1, OUT_PAD), jnp.float32),
        in_specs=([pl.BlockSpec((1, hp, patches.shape[-1]), lambda i: (i, 0, 0))]
                  + [const_spec(a) for a in operands]),
        out_specs=pl.BlockSpec((1, 1, OUT_PAD), lambda i: (i, 0, 0)),
        compiler_params=pltpu.CompilerParams(
            dimension_semantics=("parallel",)),
    )(patches, *operands)

    return out[:, 0, :N_CLS], out[:, 0, N_CLS:N_CLS + N_REG]


# ------------------------- deterministic params -------------------------------
def init_params(key, cin=3):
    ks = iter(jax.random.split(key, 64))

    def rnd(shape, scale):
        return (scale * jax.random.normal(next(ks), shape)).astype(jnp.float32)

    params = {
        # stem conv weight flattened (c, py, px) -> DIM, matching
        # torch Conv2d(cin, DIM, 4, stride=4).weight.reshape(DIM, -1).T
        "stem_w": rnd((cin * PATCH * PATCH, DIM), 1.0 / math.sqrt(cin * PATCH * PATCH)),
        "stem_b": jnp.zeros((DIM,), jnp.float32),
        "stem_ln_g": jnp.ones((DIM,), jnp.float32),
        "stem_ln_b": jnp.zeros((DIM,), jnp.float32),
        "head_ln_g": jnp.ones((DIM,), jnp.float32),
        "head_ln_b": jnp.zeros((DIM,), jnp.float32),
        "cls_w": rnd((DIM, N_CLS), 1.0 / math.sqrt(DIM)),
        "cls_b": jnp.zeros((N_CLS,), jnp.float32),
        "reg_w": rnd((DIM, N_REG), 1.0 / math.sqrt(DIM)),
        "reg_b": jnp.zeros((N_REG,), jnp.float32),
        "blocks": [],
    }
    for _ in range(N_BLOCKS):
        params["blocks"].append({
            "dw_w": rnd((DW_K * DW_K, DIM), 1.0 / DW_K),   # (ky*7+kx, C) dw taps
            "dw_b": jnp.zeros((DIM,), jnp.float32),
            "ln_g": jnp.ones((DIM,), jnp.float32),
            "ln_b": jnp.zeros((DIM,), jnp.float32),
            "w1": rnd((DIM, 4 * DIM), 1.0 / math.sqrt(DIM)),
            "b1": jnp.zeros((4 * DIM,), jnp.float32),
            "w2": rnd((4 * DIM, DIM), 1.0 / math.sqrt(4 * DIM)),
            "b2": jnp.zeros((DIM,), jnp.float32),
            # layer-scale set to 0.1 (~magnitude of a trained gamma; the paper's
            # 1e-6 is only the *init* and would make the block path numerically
            # invisible to the reference check below).
            "ls": jnp.full((DIM,), 0.1, jnp.float32),
        })
    return params


# ------------------------ pure-JAX reference (no Pallas) ----------------------
def _bdot(a, w):
    # mirror the kernel's bf16 MXU operands, f32 accumulation
    return jnp.dot(a.astype(jnp.bfloat16), w.astype(jnp.bfloat16),
                   preferred_element_type=jnp.float32)


def geomt_reference(params, x_nchw):
    x = x_nchw.astype(jnp.float32)
    b, cin, h, w = x.shape
    hp, wp = h // PATCH, w // PATCH

    def ln(v, g, be, eps=_LN_EPS):
        mu = v.mean(-1, keepdims=True)
        d = v - mu
        var = (d * d).mean(-1, keepdims=True)
        return d * jax.lax.rsqrt(var + eps) * g + be

    patches = (x.reshape(b, cin, hp, PATCH, wp, PATCH)
                 .transpose(0, 2, 4, 1, 3, 5)
                 .reshape(b, hp, wp, cin * PATCH * PATCH))
    t = _bdot(patches, params["stem_w"]) + params["stem_b"]
    t = ln(t, params["stem_ln_g"], params["stem_ln_b"])            # (B,hp,wp,DIM)
    for blk in params["blocks"]:
        tp = jnp.pad(t, ((0, 0), (3, 3), (3, 3), (0, 0)))
        acc = jnp.zeros_like(t)
        for ky in range(DW_K):
            for kx in range(DW_K):
                acc = acc + tp[:, ky:ky + hp, kx:kx + wp, :] * blk["dw_w"][ky * DW_K + kx]
        acc = acc + blk["dw_b"]
        hh = ln(acc, blk["ln_g"], blk["ln_b"])
        z = _gelu(_bdot(hh, blk["w1"]) + blk["b1"])
        z = _bdot(z, blk["w2"]) + blk["b2"]
        t = t + z * blk["ls"]
    f = t.mean(axis=(1, 2))
    f = ln(f, params["head_ln_g"], params["head_ln_b"])
    return (_bdot(f, params["cls_w"]) + params["cls_b"],
            _bdot(f, params["reg_w"]) + params["reg_b"])


# --------------------------------- main ---------------------------------------
if __name__ == "__main__":
    key = jax.random.PRNGKey(0)
    k_x, k_p = jax.random.split(key)
    # PyTorch-convention NCHW image batch: (B=2, C=3, H=16, W=16)
    x = jax.random.normal(k_x, (2, 3, 16, 16), dtype=jnp.float32)
    params = init_params(k_p)
    packed = pack_params(params, wp=16 // PATCH)

    cls_logits, latlon = geomt_forward(packed, x)
    jax.block_until_ready((cls_logits, latlon))

    assert cls_logits.shape == (2, N_CLS) and latlon.shape == (2, N_REG)
    assert bool(jnp.all(jnp.isfinite(cls_logits))) and bool(jnp.all(jnp.isfinite(latlon)))

    # correctness vs. a pure-JAX reference (same bf16 matmul operands; tolerance
    # covers MXU vs XLA accumulation-order / LN-via-matmul differences)
    cls_ref, reg_ref = geomt_reference(params, x)
    assert bool(jnp.allclose(cls_logits, cls_ref, rtol=2e-2, atol=2e-2)), \
        float(jnp.max(jnp.abs(cls_logits - cls_ref)))
    assert bool(jnp.allclose(latlon, reg_ref, rtol=2e-2, atol=2e-2)), \
        float(jnp.max(jnp.abs(latlon - reg_ref)))

    print("KERNEL_OK")
</pallas_src>

<mosaic_0001>
module attributes {stable_mosaic.version = 11 : i64} {
  func.func @geomt_fused_kernel(%arg0: i32, %arg1: memref<1x4x192xbf16, #tpu.memory_space<vmem>>, %arg2: memref<192x128xbf16, #tpu.memory_space<vmem>>, %arg3: memref<1x128xf32, #tpu.memory_space<vmem>>, %arg4: memref<1x128xf32, #tpu.memory_space<vmem>>, %arg5: memref<1x128xf32, #tpu.memory_space<vmem>>, %arg6: memref<128x128xf32, #tpu.memory_space<vmem>>, %arg7: memref<2x7x128x128xf32, #tpu.memory_space<vmem>>, %arg8: memref<2x1x128xf32, #tpu.memory_space<vmem>>, %arg9: memref<2x1x128xf32, #tpu.memory_space<vmem>>, %arg10: memref<2x1x128xf32, #tpu.memory_space<vmem>>, %arg11: memref<2x128x512xbf16, #tpu.memory_space<vmem>>, %arg12: memref<2x1x512xf32, #tpu.memory_space<vmem>>, %arg13: memref<2x512x128xbf16, #tpu.memory_space<vmem>>, %arg14: memref<2x1x128xf32, #tpu.memory_space<vmem>>, %arg15: memref<2x1x128xf32, #tpu.memory_space<vmem>>, %arg16: memref<128x32xf32, #tpu.memory_space<vmem>>, %arg17: memref<1x32xf32, #tpu.memory_space<vmem>>, %arg18: memref<1x32xf32, #tpu.memory_space<vmem>>, %arg19: memref<32x128xbf16, #tpu.memory_space<vmem>>, %arg20: memref<1x128xf32, #tpu.memory_space<vmem>>, %arg21: memref<1x1x128xf32, #tpu.memory_space<vmem>>) attributes {dimension_semantics = [#tpu.dimension_semantics<parallel>], iteration_bounds = array<i64: 2>, scalar_prefetch = 0 : i64, scratch_operands = 0 : i64, tpu.core_type = #tpu.core_type<tc>, window_params = [{transform_indices = @transform_0, window_bounds = array<i64: 1, 4, 192>}, {pipeline_mode = #tpu.pipeline_mode<synchronous>, transform_indices = @transform_1, window_bounds = array<i64: 192, 128>}, {pipeline_mode = #tpu.pipeline_mode<synchronous>, transform_indices = @transform_2, window_bounds = array<i64: 1, 128>}, {pipeline_mode = #tpu.pipeline_mode<synchronous>, transform_indices = @transform_3, window_bounds = array<i64: 1, 128>}, {pipeline_mode = #tpu.pipeline_mode<synchronous>, transform_indices = @transform_4, window_bounds = array<i64: 1, 128>}, {pipeline_mode = #tpu.pipeline_mode<synchronous>, transform_indices = @transform_5, window_bounds = array<i64: 128, 128>}, {pipeline_mode = #tpu.pipeline_mode<synchronous>, transform_indices = @transform_6, window_bounds = array<i64: 2, 7, 128, 128>}, {pipeline_mode = #tpu.pipeline_mode<synchronous>, transform_indices = @transform_7, window_bounds = array<i64: 2, 1, 128>}, {pipeline_mode = #tpu.pipeline_mode<synchronous>, transform_indices = @transform_8, window_bounds = array<i64: 2, 1, 128>}, {pipeline_mode = #tpu.pipeline_mode<synchronous>, transform_indices = @transform_9, window_bounds = array<i64: 2, 1, 128>}, {pipeline_mode = #tpu.pipeline_mode<synchronous>, transform_indices = @transform_10, window_bounds = array<i64: 2, 128, 512>}, {pipeline_mode = #tpu.pipeline_mode<synchronous>, transform_indices = @transform_11, window_bounds = array<i64: 2, 1, 512>}, {pipeline_mode = #tpu.pipeline_mode<synchronous>, transform_indices = @transform_12, window_bounds = array<i64: 2, 512, 128>}, {pipeline_mode = #tpu.pipeline_mode<synchronous>, transform_indices = @transform_13, window_bounds = array<i64: 2, 1, 128>}, {pipeline_mode = #tpu.pipeline_mode<synchronous>, transform_indices = @transform_14, window_bounds = array<i64: 2, 1, 128>}, {pipeline_mode = #tpu.pipeline_mode<synchronous>, transform_indices = @transform_15, window_bounds = array<i64: 128, 32>}, {pipeline_mode = #tpu.pipeline_mode<synchronous>, transform_indices = @transform_16, window_bounds = array<i64: 1, 32>}, {pipeline_mode = #tpu.pipeline_mode<synchronous>, transform_indices = @transform_17, window_bounds = array<i64: 1, 32>}, {pipeline_mode = #tpu.pipeline_mode<synchronous>, transform_indices = @transform_18, window_bounds = array<i64: 32, 128>}, {pipeline_mode = #tpu.pipeline_mode<synchronous>, transform_indices = @transform_19, window_bounds = array<i64: 1, 128>}, {transform_indices = @transform_20, window_bounds = array<i64: 1, 1, 128>}]} {
    %c0 = arith.constant 0 : index
    %c0_0 = arith.constant 0 : index
    %0 = vector.load %arg6[%c0, %c0_0] : memref<128x128xf32, #tpu.memory_space<vmem>>, vector<128x128xf32>
    %c0_1 = arith.constant 0 : index
    %c0_2 = arith.constant 0 : index
    %c0_3 = arith.constant 0 : index
    %1 = vector.load %arg1[%c0_1, %c0_2, %c0_3] : memref<1x4x192xbf16, #tpu.memory_space<vmem>>, vector<1x4x192xbf16>
    %2 = vector.shape_cast %1 : vector<1x4x192xbf16> to vector<4x192xbf16>
    %c0_4 = arith.constant 0 : index
    %c0_5 = arith.constant 0 : index
    %3 = vector.load %arg2[%c0_4, %c0_5] : memref<192x128xbf16, #tpu.memory_space<vmem>>, vector<192x128xbf16>
    %cst = arith.constant dense<0.000000e+00> : vector<4x128xf32>
    %4 = tpu.matmul %2, %3, %cst {dimension_numbers = #tpu.dot_dimension_numbers<[1], [0], [0], [1], [0, 0, 1, 1], [], []>} : vector<4x192xbf16>, vector<192x128xbf16>, vector<4x128xf32> -> vector<4x128xf32>
    %c0_6 = arith.constant 0 : index
    %c0_7 = arith.constant 0 : index
    %5 = vector.load %arg3[%c0_6, %c0_7] : memref<1x128xf32, #tpu.memory_space<vmem>>, vector<1x128xf32>
    %6 = vector.broadcast %5 : vector<1x128xf32> to vector<4x128xf32>
    %7 = arith.addf %4, %6 : vector<4x128xf32>
    %c0_8 = arith.constant 0 : index
    %c0_9 = arith.constant 0 : index
    %8 = vector.load %arg4[%c0_8, %c0_9] : memref<1x128xf32, #tpu.memory_space<vmem>>, vector<1x128xf32>
    %c0_10 = arith.constant 0 : index
    %c0_11 = arith.constant 0 : index
    %9 = vector.load %arg5[%c0_10, %c0_11] : memref<1x128xf32, #tpu.memory_space<vmem>>, vector<1x128xf32>
    %cst_12 = arith.constant dense<0.000000e+00> : vector<4x128xf32>
    %10 = tpu.matmul %7, %0, %cst_12 {dimension_numbers = #tpu.dot_dimension_numbers<[1], [0], [0], [1], [0, 0, 1, 1], [], []>} : vector<4x128xf32>, vector<128x128xf32>, vector<4x128xf32> -> vector<4x128xf32>
    %11 = arith.subf %7, %10 : vector<4x128xf32>
    %12 = arith.mulf %11, %11 : vector<4x128xf32>
    %cst_13 = arith.constant dense<0.000000e+00> : vector<4x128xf32>
    %13 = tpu.matmul %12, %0, %cst_13 {dimension_numbers = #tpu.dot_dimension_numbers<[1], [0], [0], [1], [0, 0, 1, 1], [], []>} : vector<4x128xf32>, vector<128x128xf32>, vector<4x128xf32> -> vector<4x128xf32>
    %cst_14 = arith.constant 9.99999997E-7 : f32
    %14 = vector.broadcast %cst_14 : f32 to vector<4x128xf32>
    %15 = arith.addf %13, %14 : vector<4x128xf32>
    %16 = math.rsqrt %15 : vector<4x128xf32>
    %17 = arith.mulf %11, %16 : vector<4x128xf32>
    %18 = vector.broadcast %8 : vector<1x128xf32> to vector<4x128xf32>
    %19 = arith.mulf %17, %18 : vector<4x128xf32>
    %20 = vector.broadcast %9 : vector<1x128xf32> to vector<4x128xf32>
    %21 = arith.addf %19, %20 : vector<4x128xf32>
    %cst_15 = arith.constant 0.000000e+00 : f32
    %22 = vector.broadcast %cst_15 : f32 to vector<3x128xf32>
    %23 = tpu.concatenate %22, %21, %22 in 0 : vector<3x128xf32>, vector<4x128xf32>, vector<3x128xf32> -> vector<10x128xf32>
    %cst_16 = arith.constant 0.000000e+00 : f32
    %24 = vector.broadcast %cst_16 : f32 to vector<4x128xf32>
    %25 = vector.extract_strided_slice %23 {offsets = [0, 0], sizes = [4, 128], strides = [1, 1]} : vector<10x128xf32> to vector<4x128xf32>
    %c0_17 = arith.constant 0 : index
    %c0_18 = arith.constant 0 : index
    %c0_19 = arith.constant 0 : index
    %c0_20 = arith.constant 0 : index
    %26 = vector.load %arg7[%c0_17, %c0_18, %c0_19, %c0_20] : memref<2x7x128x128xf32, #tpu.memory_space<vmem>>, vector<1x1x128x128xf32>
    %27 = vector.shape_cast %26 : vector<1x1x128x128xf32> to vector<128x128xf32>
    %cst_21 = arith.constant dense<0.000000e+00> : vector<4x128xf32>
    %28 = tpu.matmul %25, %27, %cst_21 {dimension_numbers = #tpu.dot_dimension_numbers<[1], [0], [0], [1], [0, 0, 1, 1], [], []>} : vector<4x128xf32>, vector<128x128xf32>, vector<4x128xf32> -> vector<4x128xf32>
    %29 = arith.addf %24, %28 : vector<4x128xf32>
    %30 = vector.extract_strided_slice %23 {offsets = [1, 0], sizes = [4, 128], strides = [1, 1]} : vector<10x128xf32> to vector<4x128xf32>
    %c0_22 = arith.constant 0 : index
    %c1 = arith.constant 1 : index
    %c0_23 = arith.constant 0 : index
    %c0_24 = arith.constant 0 : index
    %31 = vector.load %arg7[%c0_22, %c1, %c0_23, %c0_24] : memref<2x7x128x128xf32, #tpu.memory_space<vmem>>, vector<1x1x128x128xf32>
    %32 = vector.shape_cast %31 : vector<1x1x128x128xf32> to vector<128x128xf32>
    %cst_25 = arith.constant dense<0.000000e+00> : vector<4x128xf32>
    %33 = tpu.matmul %30, %32, %cst_25 {dimension_numbers = #tpu.dot_dimension_numbers<[1], [0], [0], [1], [0, 0, 1, 1], [], []>} : vector<4x128xf32>, vector<128x128xf32>, vector<4x128xf32> -> vector<4x128xf32>
    %34 = arith.addf %29, %33 : vector<4x128xf32>
    %35 = vector.extract_strided_slice %23 {offsets = [2, 0], sizes = [4, 128], strides = [1, 1]} : vector<10x128xf32> to vector<4x128xf32>
    %c0_26 = arith.constant 0 : index
    %c2 = arith.constant 2 : index
    %c0_27 = arith.constant 0 : index
    %c0_28 = arith.constant 0 : index
    %36 = vector.load %arg7[%c0_26, %c2, %c0_27, %c0_28] : memref<2x7x128x128xf32, #tpu.memory_space<vmem>>, vector<1x1x128x128xf32>
    %37 = vector.shape_cast %36 : vector<1x1x128x128xf32> to vector<128x128xf32>
    %cst_29 = arith.constant dense<0.000000e+00> : vector<4x128xf32>
    %38 = tpu.matmul %35, %37, %cst_29 {dimension_numbers = #tpu.dot_dimension_numbers<[1], [0], [0], [1], [0, 0, 1, 1], [], []>} : vector<4x128xf32>, vector<128x128xf32>, vector<4x128xf32> -> vector<4x128xf32>
    %39 = arith.addf %34, %38 : vector<4x128xf32>
    %40 = vector.extract_strided_slice %23 {offsets = [3, 0], sizes = [4, 128], strides = [1, 1]} : vector<10x128xf32> to vector<4x128xf32>
    %c0_30 = arith.constant 0 : index
    %c3 = arith.constant 3 : index
    %c0_31 = arith.constant 0 : index
    %c0_32 = arith.constant 0 : index
    %41 = vector.load %arg7[%c0_30, %c3, %c0_31, %c0_32] : memref<2x7x128x128xf32, #tpu.memory_space<vmem>>, vector<1x1x128x128xf32>
    %42 = vector.shape_cast %41 : vector<1x1x128x128xf32> to vector<128x128xf32>
    %cst_33 = arith.constant dense<0.000000e+00> : vector<4x128xf32>
    %43 = tpu.matmul %40, %42, %cst_33 {dimension_numbers = #tpu.dot_dimension_numbers<[1], [0], [0], [1], [0, 0, 1, 1], [], []>} : vector<4x128xf32>, vector<128x128xf32>, vector<4x128xf32> -> vector<4x128xf32>
    %44 = arith.addf %39, %43 : vector<4x128xf32>
    %45 = vector.extract_strided_slice %23 {offsets = [4, 0], sizes = [4, 128], strides = [1, 1]} : vector<10x128xf32> to vector<4x128xf32>
    %c0_34 = arith.constant 0 : index
    %c4 = arith.constant 4 : index
    %c0_35 = arith.constant 0 : index
    %c0_36 = arith.constant 0 : index
    %46 = vector.load %arg7[%c0_34, %c4, %c0_35, %c0_36] : memref<2x7x128x128xf32, #tpu.memory_space<vmem>>, vector<1x1x128x128xf32>
    %47 = vector.shape_cast %46 : vector<1x1x128x128xf32> to vector<128x128xf32>
    %cst_37 = arith.constant dense<0.000000e+00> : vector<4x128xf32>
    %48 = tpu.matmul %45, %47, %cst_37 {dimension_numbers = #tpu.dot_dimension_numbers<[1], [0], [0], [1], [0, 0, 1, 1], [], []>} : vector<4x128xf32>, vector<128x128xf32>, vector<4x128xf32> -> vector<4x128xf32>
    %49 = arith.addf %44, %48 : vector<4x128xf32>
    %50 = vector.extract_strided_slice %23 {offsets = [5, 0], sizes = [4, 128], strides = [1, 1]} : vector<10x128xf32> to vector<4x128xf32>
    %c0_38 = arith.constant 0 : index
    %c5 = arith.constant 5 : index
    %c0_39 = arith.constant 0 : index
    %c0_40 = arith.constant 0 : index
    %51 = vector.load %arg7[%c0_38, %c5, %c0_39, %c0_40] : memref<2x7x128x128xf32, #tpu.memory_space<vmem>>, vector<1x1x128x128xf32>
    %52 = vector.shape_cast %51 : vector<1x1x128x128xf32> to vector<128x128xf32>
    %cst_41 = arith.constant dense<0.000000e+00> : vector<4x128xf32>
    %53 = tpu.matmul %50, %52, %cst_41 {dimension_numbers = #tpu.dot_dimension_numbers<[1], [0], [0], [1], [0, 0, 1, 1], [], []>} : vector<4x128xf32>, vector<128x128xf32>, vector<4x128xf32> -> vector<4x128xf32>
    %54 = arith.addf %49, %53 : vector<4x128xf32>
    %55 = vector.extract_strided_slice %23 {offsets = [6, 0], sizes = [4, 128], strides = [1, 1]} : vector<10x128xf32> to vector<4x128xf32>
    %c0_42 = arith.constant 0 : index
    %c6 = arith.constant 6 : index
    %c0_43 = arith.constant 0 : index
    %c0_44 = arith.constant 0 : index
    %56 = vector.load %arg7[%c0_42, %c6, %c0_43, %c0_44] : memref<2x7x128x128xf32, #tpu.memory_space<vmem>>, vector<1x1x128x128xf32>
    %57 = vector.shape_cast %56 : vector<1x1x128x128xf32> to vector<128x128xf32>
    %cst_45 = arith.constant dense<0.000000e+00> : vector<4x128xf32>
    %58 = tpu.matmul %55, %57, %cst_45 {dimension_numbers = #tpu.dot_dimension_numbers<[1], [0], [0], [1], [0, 0, 1, 1], [], []>} : vector<4x128xf32>, vector<128x128xf32>, vector<4x128xf32> -> vector<4x128xf32>
    %59 = arith.addf %54, %58 : vector<4x128xf32>
    %c0_46 = arith.constant 0 : index
    %c0_47 = arith.constant 0 : index
    %c0_48 = arith.constant 0 : index
    %60 = vector.load %arg8[%c0_46, %c0_47, %c0_48] : memref<2x1x128xf32, #tpu.memory_space<vmem>>, vector<1x1x128xf32>
    %61 = vector.shape_cast %60 : vector<1x1x128xf32> to vector<1x128xf32>
    %62 = vector.broadcast %61 : vector<1x128xf32> to vector<4x128xf32>
    %63 = arith.addf %59, %62 : vector<4x128xf32>
    %c0_49 = arith.constant 0 : index
    %c0_50 = arith.constant 0 : index
    %c0_51 = arith.constant 0 : index
    %64 = vector.load %arg9[%c0_49, %c0_50, %c0_51] : memref<2x1x128xf32, #tpu.memory_space<vmem>>, vector<1x1x128xf32>
    %65 = vector.shape_cast %64 : vector<1x1x128xf32> to vector<1x128xf32>
    %c0_52 = arith.constant 0 : index
    %c0_53 = arith.constant 0 : index
    %c0_54 = arith.constant 0 : index
    %66 = vector.load %arg10[%c0_52, %c0_53, %c0_54] : memref<2x1x128xf32, #tpu.memory_space<vmem>>, vector<1x1x128xf32>
    %67 = vector.shape_cast %66 : vector<1x1x128xf32> to vector<1x128xf32>
    %cst_55 = arith.constant dense<0.000000e+00> : vector<4x128xf32>
    %68 = tpu.matmul %63, %0, %cst_55 {dimension_numbers = #tpu.dot_dimension_numbers<[1], [0], [0], [1], [0, 0, 1, 1], [], []>} : vector<4x128xf32>, vector<128x128xf32>, vector<4x128xf32> -> vector<4x128xf32>
    %69 = arith.subf %63, %68 : vector<4x128xf32>
    %70 = arith.mulf %69, %69 : vector<4x128xf32>
    %cst_56 = arith.constant dense<0.000000e+00> : vector<4x128xf32>
    %71 = tpu.matmul %70, %0, %cst_56 {dimension_numbers = #tpu.dot_dimension_numbers<[1], [0], [0], [1], [0, 0, 1, 1], [], []>} : vector<4x128xf32>, vector<128x128xf32>, vector<4x128xf32> -> vector<4x128xf32>
    %cst_57 = arith.constant 9.99999997E-7 : f32
    %72 = vector.broadcast %cst_57 : f32 to vector<4x128xf32>
    %73 = arith.addf %71, %72 : vector<4x128xf32>
    %74 = math.rsqrt %73 : vector<4x128xf32>
    %75 = arith.mulf %69, %74 : vector<4x128xf32>
    %76 = vector.broadcast %65 : vector<1x128xf32> to vector<4x128xf32>
    %77 = arith.mulf %75, %76 : vector<4x128xf32>
    %78 = vector.broadcast %67 : vector<1x128xf32> to vector<4x128xf32>
    %79 = arith.addf %77, %78 : vector<4x128xf32>
    %80 = arith.truncf %79 : vector<4x128xf32> to vector<4x128xbf16>
    %c0_58 = arith.constant 0 : index
    %c0_59 = arith.constant 0 : index
    %c0_60 = arith.constant 0 : index
    %81 = vector.load %arg11[%c0_58, %c0_59, %c0_60] : memref<2x128x512xbf16, #tpu.memory_space<vmem>>, vector<1x128x512xbf16>
    %82 = vector.shape_cast %81 : vector<1x128x512xbf16> to vector<128x512xbf16>
    %cst_61 = arith.constant dense<0.000000e+00> : vector<4x512xf32>
    %83 = tpu.matmul %80, %82, %cst_61 {dimension_numbers = #tpu.dot_dimension_numbers<[1], [0], [0], [1], [0, 0, 1, 1], [], []>} : vector<4x128xbf16>, vector<128x512xbf16>, vector<4x512xf32> -> vector<4x512xf32>
    %c0_62 = arith.constant 0 : index
    %c0_63 = arith.constant 0 : index
    %c0_64 = arith.constant 0 : index
    %84 = vector.load %arg12[%c0_62, %c0_63, %c0_64] : memref<2x1x512xf32, #tpu.memory_space<vmem>>, vector<1x1x512xf32>
    %85 = vector.shape_cast %84 : vector<1x1x512xf32> to vector<1x512xf32>
    %86 = vector.broadcast %85 : vector<1x512xf32> to vector<4x512xf32>
    %87 = arith.addf %83, %86 : vector<4x512xf32>
    %cst_65 = arith.constant 5.000000e-01 : f32
    %88 = vector.broadcast %cst_65 : f32 to vector<4x512xf32>
    %89 = arith.mulf %88, %87 : vector<4x512xf32>
    %cst_66 = arith.constant 4.471500e-02 : f32
    %90 = vector.broadcast %cst_66 : f32 to vector<4x512xf32>
    %91 = arith.mulf %90, %87 : vector<4x512xf32>
    %92 = arith.mulf %91, %87 : vector<4x512xf32>
    %93 = arith.mulf %92, %87 : vector<4x512xf32>
    %94 = arith.addf %87, %93 : vector<4x512xf32>
    %cst_67 = arith.constant 0.797884583 : f32
    %95 = vector.broadcast %cst_67 : f32 to vector<4x512xf32>
    %96 = arith.mulf %95, %94 : vector<4x512xf32>
    %97 = math.tanh %96 : vector<4x512xf32>
    %cst_68 = arith.constant 1.000000e+00 : f32
    %98 = vector.broadcast %cst_68 : f32 to vector<4x512xf32>
    %99 = arith.addf %98, %97 : vector<4x512xf32>
    %100 = arith.mulf %89, %99 : vector<4x512xf32>
    %101 = arith.truncf %100 : vector<4x512xf32> to vector<4x512xbf16>
    %c0_69 = arith.constant 0 : index
    %c0_70 = arith.constant 0 : index
    %c0_71 = arith.constant 0 : index
    %102 = vector.load %arg13[%c0_69, %c0_70, %c0_71] : memref<2x512x128xbf16, #tpu.memory_space<vmem>>, vector<1x512x128xbf16>
    %103 = vector.shape_cast %102 : vector<1x512x128xbf16> to vector<512x128xbf16>
    %cst_72 = arith.constant dense<0.000000e+00> : vector<4x128xf32>
    %104 = tpu.matmul %101, %103, %cst_72 {dimension_numbers = #tpu.dot_dimension_numbers<[1], [0], [0], [1], [0, 0, 1, 1], [], []>} : vector<4x512xbf16>, vector<512x128xbf16>, vector<4x128xf32> -> vector<4x128xf32>
    %c0_73 = arith.constant 0 : index
    %c0_74 = arith.constant 0 : index
    %c0_75 = arith.constant 0 : index
    %105 = vector.load %arg14[%c0_73, %c0_74, %c0_75] : memref<2x1x128xf32, #tpu.memory_space<vmem>>, vector<1x1x128xf32>
    %106 = vector.shape_cast %105 : vector<1x1x128xf32> to vector<1x128xf32>
    %107 = vector.broadcast %106 : vector<1x128xf32> to vector<4x128xf32>
    %108 = arith.addf %104, %107 : vector<4x128xf32>
    %c0_76 = arith.constant 0 : index
    %c0_77 = arith.constant 0 : index
    %c0_78 = arith.constant 0 : index
    %109 = vector.load %arg15[%c0_76, %c0_77, %c0_78] : memref<2x1x128xf32, #tpu.memory_space<vmem>>, vector<1x1x128xf32>
    %110 = vector.shape_cast %109 : vector<1x1x128xf32> to vector<1x128xf32>
    %111 = vector.broadcast %110 : vector<1x128xf32> to vector<4x128xf32>
    %112 = arith.mulf %108, %111 : vector<4x128xf32>
    %113 = arith.addf %21, %112 : vector<4x128xf32>
    %114 = tpu.concatenate %22, %113, %22 in 0 : vector<3x128xf32>, vector<4x128xf32>, vector<3x128xf32> -> vector<10x128xf32>
    %cst_79 = arith.constant 0.000000e+00 : f32
    %115 = vector.broadcast %cst_79 : f32 to vector<4x128xf32>
    %116 = vector.extract_strided_slice %114 {offsets = [0, 0], sizes = [4, 128], strides = [1, 1]} : vector<10x128xf32> to vector<4x128xf32>
    %c1_80 = arith.constant 1 : index
    %c0_81 = arith.constant 0 : index
    %c0_82 = arith.constant 0 : index
    %c0_83 = arith.constant 0 : index
    %117 = vector.load %arg7[%c1_80, %c0_81, %c0_82, %c0_83] : memref<2x7x128x128xf32, #tpu.memory_space<vmem>>, vector<1x1x128x128xf32>
    %118 = vector.shape_cast %117 : vector<1x1x128x128xf32> to vector<128x128xf32>
    %cst_84 = arith.constant dense<0.000000e+00> : vector<4x128xf32>
    %119 = tpu.matmul %116, %118, %cst_84 {dimension_numbers = #tpu.dot_dimension_numbers<[1], [0], [0], [1], [0, 0, 1, 1], [], []>} : vector<4x128xf32>, vector<128x128xf32>, vector<4x128xf32> -> vector<4x128xf32>
    %120 = arith.addf %115, %119 : vector<4x128xf32>
    %121 = vector.extract_strided_slice %114 {offsets = [1, 0], sizes = [4, 128], strides = [1, 1]} : vector<10x128xf32> to vector<4x128xf32>
    %c1_85 = arith.constant 1 : index
    %c1_86 = arith.constant 1 : index
    %c0_87 = arith.constant 0 : index
    %c0_88 = arith.constant 0 : index
    %122 = vector.load %arg7[%c1_85, %c1_86, %c0_87, %c0_88] : memref<2x7x128x128xf32, #tpu.memory_space<vmem>>, vector<1x1x128x128xf32>
    %123 = vector.shape_cast %122 : vector<1x1x128x128xf32> to vector<128x128xf32>
    %cst_89 = arith.constant dense<0.000000e+00> : vector<4x128xf32>
    %124 = tpu.matmul %121, %123, %cst_89 {dimension_numbers = #tpu.dot_dimension_numbers<[1], [0], [0], [1], [0, 0, 1, 1], [], []>} : vector<4x128xf32>, vector<128x128xf32>, vector<4x128xf32> -> vector<4x128xf32>
    %125 = arith.addf %120, %124 : vector<4x128xf32>
    %126 = vector.extract_strided_slice %114 {offsets = [2, 0], sizes = [4, 128], strides = [1, 1]} : vector<10x128xf32> to vector<4x128xf32>
    %c1_90 = arith.constant 1 : index
    %c2_91 = arith.constant 2 : index
    %c0_92 = arith.constant 0 : index
    %c0_93 = arith.constant 0 : index
    %127 = vector.load %arg7[%c1_90, %c2_91, %c0_92, %c0_93] : memref<2x7x128x128xf32, #tpu.memory_space<vmem>>, vector<1x1x128x128xf32>
    %128 = vector.shape_cast %127 : vector<1x1x128x128xf32> to vector<128x128xf32>
    %cst_94 = arith.constant dense<0.000000e+00> : vector<4x128xf32>
    %129 = tpu.matmul %126, %128, %cst_94 {dimension_numbers = #tpu.dot_dimension_numbers<[1], [0], [0], [1], [0, 0, 1, 1], [], []>} : vector<4x128xf32>, vector<128x128xf32>, vector<4x128xf32> -> vector<4x128xf32>
    %130 = arith.addf %125, %129 : vector<4x128xf32>
    %131 = vector.extract_strided_slice %114 {offsets = [3, 0], sizes = [4, 128], strides = [1, 1]} : vector<10x128xf32> to vector<4x128xf32>
    %c1_95 = arith.constant 1 : index
    %c3_96 = arith.constant 3 : index
    %c0_97 = arith.constant 0 : index
    %c0_98 = arith.constant 0 : index
    %132 = vector.load %arg7[%c1_95, %c3_96, %c0_97, %c0_98] : memref<2x7x128x128xf32, #tpu.memory_space<vmem>>, vector<1x1x128x128xf32>
    %133 = vector.shape_cast %132 : vector<1x1x128x128xf32> to vector<128x128xf32>
    %cst_99 = arith.constant dense<0.000000e+00> : vector<4x128xf32>
    %134 = tpu.matmul %131, %133, %cst_99 {dimension_numbers = #tpu.dot_dimension_numbers<[1], [0], [0], [1], [0, 0, 1, 1], [], []>} : vector<4x128xf32>, vector<128x128xf32>, vector<4x128xf32> -> vector<4x128xf32>
    %135 = arith.addf %130, %134 : vector<4x128xf32>
    %136 = vector.extract_strided_slice %114 {offsets = [4, 0], sizes = [4, 128], strides = [1, 1]} : vector<10x128xf32> to vector<4x128xf32>
    %c1_100 = arith.constant 1 : index
    %c4_101 = arith.constant 4 : index
    %c0_102 = arith.constant 0 : index
    %c0_103 = arith.constant 0 : index
    %137 = vector.load %arg7[%c1_100, %c4_101, %c0_102, %c0_103] : memref<2x7x128x128xf32, #tpu.memory_space<vmem>>, vector<1x1x128x128xf32>
    %138 = vector.shape_cast %137 : vector<1x1x128x128xf32> to vector<128x128xf32>
    %cst_104 = arith.constant dense<0.000000e+00> : vector<4x128xf32>
    %139 = tpu.matmul %136, %138, %cst_104 {dimension_numbers = #tpu.dot_dimension_numbers<[1], [0], [0], [1], [0, 0, 1, 1], [], []>} : vector<4x128xf32>, vector<128x128xf32>, vector<4x128xf32> -> vector<4x128xf32>
    %140 = arith.addf %135, %139 : vector<4x128xf32>
    %141 = vector.extract_strided_slice %114 {offsets = [5, 0], sizes = [4, 128], strides = [1, 1]} : vector<10x128xf32> to vector<4x128xf32>
    %c1_105 = arith.constant 1 : index
    %c5_106 = arith.constant 5 : index
    %c0_107 = arith.constant 0 : index
    %c0_108 = arith.constant 0 : index
    %142 = vector.load %arg7[%c1_105, %c5_106, %c0_107, %c0_108] : memref<2x7x128x128xf32, #tpu.memory_space<vmem>>, vector<1x1x128x128xf32>
    %143 = vector.shape_cast %142 : vector<1x1x128x128xf32> to vector<128x128xf32>
    %cst_109 = arith.constant dense<0.000000e+00> : vector<4x128xf32>
    %144 = tpu.matmul %141, %143, %cst_109 {dimension_numbers = #tpu.dot_dimension_numbers<[1], [0], [0], [1], [0, 0, 1, 1], [], []>} : vector<4x128xf32>, vector<128x128xf32>, vector<4x128xf32> -> vector<4x128xf32>
    %145 = arith.addf %140, %144 : vector<4x128xf32>
    %146 = vector.extract_strided_slice %114 {offsets = [6, 0], sizes = [4, 128], strides = [1, 1]} : vector<10x128xf32> to vector<4x128xf32>
    %c1_110 = arith.constant 1 : index
    %c6_111 = arith.constant 6 : index
    %c0_112 = arith.constant 0 : index
    %c0_113 = arith.constant 0 : index
    %147 = vector.load %arg7[%c1_110, %c6_111, %c0_112, %c0_113] : memref<2x7x128x128xf32, #tpu.memory_space<vmem>>, vector<1x1x128x128xf32>
    %148 = vector.shape_cast %147 : vector<1x1x128x128xf32> to vector<128x128xf32>
    %cst_114 = arith.constant dense<0.000000e+00> : vector<4x128xf32>
    %149 = tpu.matmul %146, %148, %cst_114 {dimension_numbers = #tpu.dot_dimension_numbers<[1], [0], [0], [1], [0, 0, 1, 1], [], []>} : vector<4x128xf32>, vector<128x128xf32>, vector<4x128xf32> -> vector<4x128xf32>
    %150 = arith.addf %145, %149 : vector<4x128xf32>
    %c1_115 = arith.constant 1 : index
    %c0_116 = arith.constant 0 : index
    %c0_117 = arith.constant 0 : index
    %151 = vector.load %arg8[%c1_115, %c0_116, %c0_117] : memref<2x1x128xf32, #tpu.memory_space<vmem>>, vector<1x1x128xf32>
    %152 = vector.shape_cast %151 : vector<1x1x128xf32> to vector<1x128xf32>
    %153 = vector.broadcast %152 : vector<1x128xf32> to vector<4x128xf32>
    %154 = arith.addf %150, %153 : vector<4x128xf32>
    %c1_118 = arith.constant 1 : index
    %c0_119 = arith.constant 0 : index
    %c0_120 = arith.constant 0 : index
    %155 = vector.load %arg9[%c1_118, %c0_119, %c0_120] : memref<2x1x128xf32, #tpu.memory_space<vmem>>, vector<1x1x128xf32>
    %156 = vector.shape_cast %155 : vector<1x1x128xf32> to vector<1x128xf32>
    %c1_121 = arith.constant 1 : index
    %c0_122 = arith.constant 0 : index
    %c0_123 = arith.constant 0 : index
    %157 = vector.load %arg10[%c1_121, %c0_122, %c0_123] : memref<2x1x128xf32, #tpu.memory_space<vmem>>, vector<1x1x128xf32>
    %158 = vector.shape_cast %157 : vector<1x1x128xf32> to vector<1x128xf32>
    %cst_124 = arith.constant dense<0.000000e+00> : vector<4x128xf32>
    %159 = tpu.matmul %154, %0, %cst_124 {dimension_numbers = #tpu.dot_dimension_numbers<[1], [0], [0], [1], [0, 0, 1, 1], [], []>} : vector<4x128xf32>, vector<128x128xf32>, vector<4x128xf32> -> vector<4x128xf32>
    %160 = arith.subf %154, %159 : vector<4x128xf32>
    %161 = arith.mulf %160, %160 : vector<4x128xf32>
    %cst_125 = arith.constant dense<0.000000e+00> : vector<4x128xf32>
    %162 = tpu.matmul %161, %0, %cst_125 {dimension_numbers = #tpu.dot_dimension_numbers<[1], [0], [0], [1], [0, 0, 1, 1], [], []>} : vector<4x128xf32>, vector<128x128xf32>, vector<4x128xf32> -> vector<4x128xf32>
    %cst_126 = arith.constant 9.99999997E-7 : f32
    %163 = vector.broadcast %cst_126 : f32 to vector<4x128xf32>
    %164 = arith.addf %162, %163 : vector<4x128xf32>
    %165 = math.rsqrt %164 : vector<4x128xf32>
    %166 = arith.mulf %160, %165 : vector<4x128xf32>
    %167 = vector.broadcast %156 : vector<1x128xf32> to vector<4x128xf32>
    %168 = arith.mulf %166, %167 : vector<4x128xf32>
    %169 = vector.broadcast %158 : vector<1x128xf32> to vector<4x128xf32>
    %170 = arith.addf %168, %169 : vector<4x128xf32>
    %171 = arith.truncf %170 : vector<4x128xf32> to vector<4x128xbf16>
    %c1_127 = arith.constant 1 : index
    %c0_128 = arith.constant 0 : index
    %c0_129 = arith.constant 0 : index
    %172 = vector.load %arg11[%c1_127, %c0_128, %c0_129] : memref<2x128x512xbf16, #tpu.memory_space<vmem>>, vector<1x128x512xbf16>
    %173 = vector.shape_cast %172 : vector<1x128x512xbf16> to vector<128x512xbf16>
    %cst_130 = arith.constant dense<0.000000e+00> : vector<4x512xf32>
    %174 = tpu.matmul %171, %173, %cst_130 {dimension_numbers = #tpu.dot_dimension_numbers<[1], [0], [0], [1], [0, 0, 1, 1], [], []>} : vector<4x128xbf16>, vector<128x512xbf16>, vector<4x512xf32> -> vector<4x512xf32>
    %c1_131 = arith.constant 1 : index
    %c0_132 = arith.constant 0 : index
    %c0_133 = arith.constant 0 : index
    %175 = vector.load %arg12[%c1_131, %c0_132, %c0_133] : memref<2x1x512xf32, #tpu.memory_space<vmem>>, vector<1x1x512xf32>
    %176 = vector.shape_cast %175 : vector<1x1x512xf32> to vector<1x512xf32>
    %177 = vector.broadcast %176 : vector<1x512xf32> to vector<4x512xf32>
    %178 = arith.addf %174, %177 : vector<4x512xf32>
    %cst_134 = arith.constant 5.000000e-01 : f32
    %179 = vector.broadcast %cst_134 : f32 to vector<4x512xf32>
    %180 = arith.mulf %179, %178 : vector<4x512xf32>
    %cst_135 = arith.constant 4.471500e-02 : f32
    %181 = vector.broadcast %cst_135 : f32 to vector<4x512xf32>
    %182 = arith.mulf %181, %178 : vector<4x512xf32>
    %183 = arith.mulf %182, %178 : vector<4x512xf32>
    %184 = arith.mulf %183, %178 : vector<4x512xf32>
    %185 = arith.addf %178, %184 : vector<4x512xf32>
    %cst_136 = arith.constant 0.797884583 : f32
    %186 = vector.broadcast %cst_136 : f32 to vector<4x512xf32>
    %187 = arith.mulf %186, %185 : vector<4x512xf32>
    %188 = math.tanh %187 : vector<4x512xf32>
    %cst_137 = arith.constant 1.000000e+00 : f32
    %189 = vector.broadcast %cst_137 : f32 to vector<4x512xf32>
    %190 = arith.addf %189, %188 : vector<4x512xf32>
    %191 = arith.mulf %180, %190 : vector<4x512xf32>
    %192 = arith.truncf %191 : vector<4x512xf32> to vector<4x512xbf16>
    %c1_138 = arith.constant 1 : index
    %c0_139 = arith.constant 0 : index
    %c0_140 = arith.constant 0 : index
    %193 = vector.load %arg13[%c1_138, %c0_139, %c0_140] : memref<2x512x128xbf16, #tpu.memory_space<vmem>>, vector<1x512x128xbf16>
    %194 = vector.shape_cast %193 : vector<1x512x128xbf16> to vector<512x128xbf16>
    %cst_141 = arith.constant dense<0.000000e+00> : vector<4x128xf32>
    %195 = tpu.matmul %192, %194, %cst_141 {dimension_numbers = #tpu.dot_dimension_numbers<[1], [0], [0], [1], [0, 0, 1, 1], [], []>} : vector<4x512xbf16>, vector<512x128xbf16>, vector<4x128xf32> -> vector<4x128xf32>
    %c1_142 = arith.constant 1 : index
    %c0_143 = arith.constant 0 : index
    %c0_144 = arith.constant 0 : index
    %196 = vector.load %arg14[%c1_142, %c0_143, %c0_144] : memref<2x1x128xf32, #tpu.memory_space<vmem>>, vector<1x1x128xf32>
    %197 = vector.shape_cast %196 : vector<1x1x128xf32> to vector<1x128xf32>
    %198 = vector.broadcast %197 : vector<1x128xf32> to vector<4x128xf32>
    %199 = arith.addf %195, %198 : vector<4x128xf32>
    %c1_145 = arith.constant 1 : index
    %c0_146 = arith.constant 0 : index
    %c0_147 = arith.constant 0 : index
    %200 = vector.load %arg15[%c1_145, %c0_146, %c0_147] : memref<2x1x128xf32, #tpu.memory_space<vmem>>, vector<1x1x128xf32>
    %201 = vector.shape_cast %200 : vector<1x1x128xf32> to vector<1x128xf32>
    %202 = vector.broadcast %201 : vector<1x128xf32> to vector<4x128xf32>
    %203 = arith.mulf %199, %202 : vector<4x128xf32>
    %204 = arith.addf %113, %203 : vector<4x128xf32>
    %cst_148 = arith.constant dense<0.000000e+00> : vector<128xf32>
    %205 = vector.multi_reduction <add>, %204, %cst_148 [0] : vector<4x128xf32> to vector<128xf32>
    %206 = vector.shape_cast %205 : vector<128xf32> to vector<1x128xf32>
    %cst_149 = arith.constant 4.000000e+00 : f32
    %207 = vector.broadcast %cst_149 : f32 to vector<1x128xf32>
    %208 = arith.divf %206, %207 : vector<1x128xf32>
    %c0_150 = arith.constant 0 : index
    %c0_151 = arith.constant 0 : index
    %209 = vector.load %arg16[%c0_150, %c0_151] : memref<128x32xf32, #tpu.memory_space<vmem>>, vector<128x32xf32>
    %cst_152 = arith.constant dense<0.000000e+00> : vector<1x32xf32>
    %210 = tpu.matmul %208, %209, %cst_152 {dimension_numbers = #tpu.dot_dimension_numbers<[1], [0], [0], [1], [0, 0, 1, 1], [], []>} : vector<1x128xf32>, vector<128x32xf32>, vector<1x32xf32> -> vector<1x32xf32>
    %c0_153 = arith.constant 0 : index
    %c0_154 = arith.constant 0 : index
    %211 = vector.load %arg17[%c0_153, %c0_154] : memref<1x32xf32, #tpu.memory_space<vmem>>, vector<1x32xf32>
    %c0_155 = arith.constant 0 : index
    %c0_156 = arith.constant 0 : index
    %212 = vector.load %arg18[%c0_155, %c0_156] : memref<1x32xf32, #tpu.memory_space<vmem>>, vector<1x32xf32>
    %cst_157 = arith.constant dense<0.000000e+00> : vector<1xf32>
    %213 = vector.multi_reduction <add>, %210, %cst_157 [1] : vector<1x32xf32> to vector<1xf32>
    %214 = vector.shape_cast %213 : vector<1xf32> to vector<1x1xf32>
    %cst_158 = arith.constant 3.200000e+01 : f32
    %215 = vector.broadcast %cst_158 : f32 to vector<1x1xf32>
    %216 = arith.divf %214, %215 : vector<1x1xf32>
    %217 = vector.broadcast %216 : vector<1x1xf32> to vector<1x32xf32>
    %218 = arith.subf %210, %217 : vector<1x32xf32>
    %219 = arith.mulf %218, %218 : vector<1x32xf32>
    %cst_159 = arith.constant dense<0.000000e+00> : vector<1xf32>
    %220 = vector.multi_reduction <add>, %219, %cst_159 [1] : vector<1x32xf32> to vector<1xf32>
    %221 = vector.shape_cast %220 : vector<1xf32> to vector<1x1xf32>
    %cst_160 = arith.constant 3.200000e+01 : f32
    %222 = vector.broadcast %cst_160 : f32 to vector<1x1xf32>
    %223 = arith.divf %221, %222 : vector<1x1xf32>
    %cst_161 = arith.constant 9.99999997E-7 : f32
    %224 = vector.broadcast %cst_161 : f32 to vector<1x1xf32>
    %225 = arith.addf %223, %224 : vector<1x1xf32>
    %226 = math.rsqrt %225 : vector<1x1xf32>
    %227 = vector.broadcast %226 : vector<1x1xf32> to vector<1x32xf32>
    %228 = arith.mulf %218, %227 : vector<1x32xf32>
    %229 = arith.mulf %228, %211 : vector<1x32xf32>
    %230 = arith.addf %229, %212 : vector<1x32xf32>
    %231 = arith.truncf %230 : vector<1x32xf32> to vector<1x32xbf16>
    %c0_162 = arith.constant 0 : index
    %c0_163 = arith.constant 0 : index
    %232 = vector.load %arg19[%c0_162, %c0_163] : memref<32x128xbf16, #tpu.memory_space<vmem>>, vector<32x128xbf16>
    %cst_164 = arith.constant dense<0.000000e+00> : vector<1x128xf32>
    %233 = tpu.matmul %231, %232, %cst_164 {dimension_numbers = #tpu.dot_dimension_numbers<[1], [0], [0], [1], [0, 0, 1, 1], [], []>} : vector<1x32xbf16>, vector<32x128xbf16>, vector<1x128xf32> -> vector<1x128xf32>
    %c0_165 = arith.constant 0 : index
    %c0_166 = arith.constant 0 : index
    %234 = vector.load %arg20[%c0_165, %c0_166] : memref<1x128xf32, #tpu.memory_space<vmem>>, vector<1x128xf32>
    %235 = arith.addf %233, %234 : vector<1x128xf32>
    %c0_167 = arith.constant 0 : index
    %c0_168 = arith.constant 0 : index
    %c0_169 = arith.constant 0 : index
    %236 = vector.load %arg21[%c0_167, %c0_168, %c0_169] : memref<1x1x128xf32, #tpu.memory_space<vmem>>, vector<1x1x128xf32>
    %237 = vector.shape_cast %236 : vector<1x1x128xf32> to vector<1x128xf32>
    %238 = vector.shape_cast %235 : vector<1x128xf32> to vector<1x1x128xf32>
    tpu.vector_store %arg21[%c0_167, %c0_168, %c0_169], %238 {strides = array<i32>} : memref<1x1x128xf32, #tpu.memory_space<vmem>>, vector<1x1x128xf32>,
    return
  }
  func.func @transform_0(%arg0: i32) -> (i32, i32, i32) {
    %c0_i32 = arith.constant 0 : i32
    %c0_i32_0 = arith.constant 0 : i32
    %c0_i32_1 = arith.constant 0 : i32
    return %arg0, %c0_i32, %c0_i32_0 : i32, i32, i32
  }
  func.func @transform_1(%arg0: i32) -> (i32, i32) {
    %c0_i32 = arith.constant 0 : i32
    %c0_i32_0 = arith.constant 0 : i32
    %c0_i32_1 = arith.constant 0 : i32
    return %c0_i32, %c0_i32_0 : i32, i32
  }
  func.func @transform_2(%arg0: i32) -> (i32, i32) {
    %c0_i32 = arith.constant 0 : i32
    %c0_i32_0 = arith.constant 0 : i32
    %c0_i32_1 = arith.constant 0 : i32
    return %c0_i32, %c0_i32_0 : i32, i32
  }
  func.func @transform_3(%arg0: i32) -> (i32, i32) {
    %c0_i32 = arith.constant 0 : i32
    %c0_i32_0 = arith.constant 0 : i32
    %c0_i32_1 = arith.constant 0 : i32
    return %c0_i32, %c0_i32_0 : i32, i32
  }
  func.func @transform_4(%arg0: i32) -> (i32, i32) {
    %c0_i32 = arith.constant 0 : i32
    %c0_i32_0 = arith.constant 0 : i32
    %c0_i32_1 = arith.constant 0 : i32
    return %c0_i32, %c0_i32_0 : i32, i32
  }
  func.func @transform_5(%arg0: i32) -> (i32, i32) {
    %c0_i32 = arith.constant 0 : i32
    %c0_i32_0 = arith.constant 0 : i32
    %c0_i32_1 = arith.constant 0 : i32
    return %c0_i32, %c0_i32_0 : i32, i32
  }
  func.func @transform_6(%arg0: i32) -> (i32, i32, i32, i32) {
    %c0_i32 = arith.constant 0 : i32
    %c0_i32_0 = arith.constant 0 : i32
    %c0_i32_1 = arith.constant 0 : i32
    %c0_i32_2 = arith.constant 0 : i32
    %c0_i32_3 = arith.constant 0 : i32
    return %c0_i32, %c0_i32_0, %c0_i32_1, %c0_i32_2 : i32, i32, i32, i32
  }
  func.func @transform_7(%arg0: i32) -> (i32, i32, i32) {
    %c0_i32 = arith.constant 0 : i32
    %c0_i32_0 = arith.constant 0 : i32
    %c0_i32_1 = arith.constant 0 : i32
    %c0_i32_2 = arith.constant 0 : i32
    return %c0_i32, %c0_i32_0, %c0_i32_1 : i32, i32, i32
  }
  func.func @transform_8(%arg0: i32) -> (i32, i32, i32) {
    %c0_i32 = arith.constant 0 : i32
    %c0_i32_0 = arith.constant 0 : i32
    %c0_i32_1 = arith.constant 0 : i32
    %c0_i32_2 = arith.constant 0 : i32
    return %c0_i32, %c0_i32_0, %c0_i32_1 : i32, i32, i32
  }
  func.func @transform_9(%arg0: i32) -> (i32, i32, i32) {
    %c0_i32 = arith.constant 0 : i32
    %c0_i32_0 = arith.constant 0 : i32
    %c0_i32_1 = arith.constant 0 : i32
    %c0_i32_2 = arith.constant 0 : i32
    return %c0_i32, %c0_i32_0, %c0_i32_1 : i32, i32, i32
  }
  func.func @transform_10(%arg0: i32) -> (i32, i32, i32) {
    %c0_i32 = arith.constant 0 : i32
    %c0_i32_0 = arith.constant 0 : i32
    %c0_i32_1 = arith.constant 0 : i32
    %c0_i32_2 = arith.constant 0 : i32
    return %c0_i32, %c0_i32_0, %c0_i32_1 : i32, i32, i32
  }
  func.func @transform_11(%arg0: i32) -> (i32, i32, i32) {
    %c0_i32 = arith.constant 0 : i32
    %c0_i32_0 = arith.constant 0 : i32
    %c0_i32_1 = arith.constant 0 : i32
    %c0_i32_2 = arith.constant 0 : i32
    return %c0_i32, %c0_i32_0, %c0_i32_1 : i32, i32, i32
  }
  func.func @transform_12(%arg0: i32) -> (i32, i32, i32) {
    %c0_i32 = arith.constant 0 : i32
    %c0_i32_0 = arith.constant 0 : i32
    %c0_i32_1 = arith.constant 0 : i32
    %c0_i32_2 = arith.constant 0 : i32
    return %c0_i32, %c0_i32_0, %c0_i32_1 : i32, i32, i32
  }
  func.func @transform_13(%arg0: i32) -> (i32, i32, i32) {
    %c0_i32 = arith.constant 0 : i32
    %c0_i32_0 = arith.constant 0 : i32
    %c0_i32_1 = arith.constant 0 : i32
    %c0_i32_2 = arith.constant 0 : i32
    return %c0_i32, %c0_i32_0, %c0_i32_1 : i32, i32, i32
  }
  func.func @transform_14(%arg0: i32) -> (i32, i32, i32) {
    %c0_i32 = arith.constant 0 : i32
    %c0_i32_0 = arith.constant 0 : i32
    %c0_i32_1 = arith.constant 0 : i32
    %c0_i32_2 = arith.constant 0 : i32
    return %c0_i32, %c0_i32_0, %c0_i32_1 : i32, i32, i32
  }
  func.func @transform_15(%arg0: i32) -> (i32, i32) {
    %c0_i32 = arith.constant 0 : i32
    %c0_i32_0 = arith.constant 0 : i32
    %c0_i32_1 = arith.constant 0 : i32
    return %c0_i32, %c0_i32_0 : i32, i32
  }
  func.func @transform_16(%arg0: i32) -> (i32, i32) {
    %c0_i32 = arith.constant 0 : i32
    %c0_i32_0 = arith.constant 0 : i32
    %c0_i32_1 = arith.constant 0 : i32
    return %c0_i32, %c0_i32_0 : i32, i32
  }
  func.func @transform_17(%arg0: i32) -> (i32, i32) {
    %c0_i32 = arith.constant 0 : i32
    %c0_i32_0 = arith.constant 0 : i32
    %c0_i32_1 = arith.constant 0 : i32
    return %c0_i32, %c0_i32_0 : i32, i32
  }
  func.func @transform_18(%arg0: i32) -> (i32, i32) {
    %c0_i32 = arith.constant 0 : i32
    %c0_i32_0 = arith.constant 0 : i32
    %c0_i32_1 = arith.constant 0 : i32
    return %c0_i32, %c0_i32_0 : i32, i32
  }
  func.func @transform_19(%arg0: i32) -> (i32, i32) {
    %c0_i32 = arith.constant 0 : i32
    %c0_i32_0 = arith.constant 0 : i32
    %c0_i32_1 = arith.constant 0 : i32
    return %c0_i32, %c0_i32_0 : i32, i32
  }
  func.func @transform_20(%arg0: i32) -> (i32, i32, i32) {
    %c0_i32 = arith.constant 0 : i32
    %c0_i32_0 = arith.constant 0 : i32
    %c0_i32_1 = arith.constant 0 : i32
    return %arg0, %c0_i32, %c0_i32_0 : i32, i32, i32
  }
}

</mosaic_0001>

<llo_original>
// kernel: geomt_forward.1
$region0: #{geomt_forward.1}
  #allocation0 [shape = 'u32[]', space=smem, size = 0x4, offset = 0x4, fixed_abs, tag = 'smem constant byte address 0x4 - core index']
  #allocation1 [shape = 'u32[144,128]{1,0:T(1,128)}', space=vmem, size = 0x12000, scoped, tag = 'internal scratch']
  %s0 = inlined_call_operand.vmem [shape: bf16[2,4,192], index: 0, kind: input, shape index: {}]
  %s1 = inlined_call_operand.vmem [shape: bf16[192,128], index: 1, kind: input, shape index: {}]
  %s2 = inlined_call_operand.hbm [shape: f32[1,128], index: 2, kind: input, shape index: {}]
  %s3 = inlined_call_operand.hbm [shape: f32[1,128], index: 3, kind: input, shape index: {}]
  %s4 = inlined_call_operand.hbm [shape: f32[1,128], index: 4, kind: input, shape index: {}]
  %s5 = inlined_call_operand.hbm [shape: f32[128,128], index: 5, kind: input, shape index: {}]
  %s6 = inlined_call_operand.hbm [shape: f32[2,7,128,128], index: 6, kind: input, shape index: {}]
  %s7 = inlined_call_operand.vmem [shape: f32[2,1,128], index: 7, kind: input, shape index: {}]
  %s8 = inlined_call_operand.vmem [shape: f32[2,1,128], index: 8, kind: input, shape index: {}]
  %s9 = inlined_call_operand.vmem [shape: f32[2,1,128], index: 9, kind: input, shape index: {}]
  %s10 = inlined_call_operand.vmem [shape: bf16[2,128,512], index: 10, kind: input, shape index: {}]
  %s11 = inlined_call_operand.vmem [shape: f32[2,1,512], index: 11, kind: input, shape index: {}]
  %s12 = inlined_call_operand.vmem [shape: bf16[2,512,128], index: 12, kind: input, shape index: {}]
  %s13 = inlined_call_operand.vmem [shape: f32[2,1,128], index: 13, kind: input, shape index: {}]
  %s14 = inlined_call_operand.hbm [shape: f32[2,1,128], index: 14, kind: input, shape index: {}]
  %s15 = inlined_call_operand.vmem [shape: f32[128,32], index: 15, kind: input, shape index: {}]
  %s16 = inlined_call_operand.hbm [shape: f32[1,32], index: 16, kind: input, shape index: {}]
  %s17 = inlined_call_operand.hbm [shape: f32[1,32], index: 17, kind: input, shape index: {}]
  %s18 = inlined_call_operand.hbm [shape: bf16[32,128], index: 18, kind: input, shape index: {}]
  %s19 = inlined_call_operand.hbm [shape: f32[1,128], index: 19, kind: input, shape index: {}]
  %s20 = inlined_call_operand.vmem [shape: f32[2,1,128], index: 20, kind: output, shape index: {}]
  %s21 = sld [smem:[#allocation0]]
  $region153: #{geomt_forward.1} parent=0
    _
  %s23 = ssub.s32 1, %s21
  %s24 = scalar_select 0, %s23, %s21
  $region1: #{geomt_forward.1} parent=0
    #allocation2 [shape = 'u8[512]{0}', space=vmem, size = 0x400, scoped, tag = 'input window, operand 2, single buffered']
    #allocation3 [shape = 's32[2]{0}', space=sflag, size = 0x8, scoped, tag = 'scoped memory for geomt_forward.1']
    #allocation4 [shape = 'u8[512]{0}', space=vmem, size = 0x400, scoped, tag = 'input window, operand 3, single buffered']
    #allocation5 [shape = 's32[1]{0}', space=sflag, size = 0x4, scoped, tag = 'scoped memory for geomt_forward.1']
    #allocation6 [shape = 'u8[512]{0}', space=vmem, size = 0x400, scoped, tag = 'input window, operand 4, single buffered']
    #allocation7 [shape = 'u8[65536]{0}', space=vmem, size = 0x10000, scoped, tag = 'input window, operand 5, single buffered']
    #allocation8 [shape = 's32[1]{0}', space=sflag, size = 0x4, scoped, tag = 'scoped memory for geomt_forward.1']
    #allocation9 [shape = 'u8[917504]{0}', space=vmem, size = 0xe0000, scoped, tag = 'input window, operand 6, single buffered']
    #allocation10 [shape = 'u8[1024]{0}', space=vmem, size = 0x400, scoped, tag = 'input window, operand 14, single buffered']
    #allocation11 [shape = 's32[1]{0}', space=sflag, size = 0x4, scoped, tag = 'scoped memory for geomt_forward.1']
    #allocation12 [shape = 'u8[512]{0}', space=vmem, size = 0x400, scoped, tag = 'input window, operand 16, single buffered']
    #allocation13 [shape = 'u8[512]{0}', space=vmem, size = 0x400, scoped, tag = 'input window, operand 17, single buffered']
    #allocation14 [shape = 's32[1]{0}', space=sflag, size = 0x4, scoped, tag = 'scoped memory for geomt_forward.1']
    #allocation15 [shape = 'u8[8192]{0}', space=vmem, size = 0x2000, scoped, tag = 'input window, operand 18, single buffered']
    #allocation16 [shape = 'u8[512]{0}', space=vmem, size = 0x400, scoped, tag = 'input window, operand 19, single buffered']
    #allocation17 [shape = 's32[1]{0}', space=sflag, size = 0x4, scoped, tag = 'scoped memory for geomt_forward.1']
    %25 = vsyncpa [#allocation3], 0
    %26 = vsyncpa [#allocation5], 0
    %27 = vsyncpa [#allocation8], 0
    %28 = vsyncpa [#allocation11], 0
    %29 = vsyncpa [#allocation14], 0
    %30 = vsyncpa [#allocation17], 0
    loop: start=0, step=1, limit=4
    $region2: #{geomt_forward.1} parent=1 // loop_pre_header
      _
    $region3: #{geomt_forward.1} parent=1 // loop_header
      %s32 = sphi 0, %s36
      %p33 = scmp.ge.s32.totalorder %s32, 4
      %s42 = sphi 0, %s44
      %s45 = sphi 0, %s42
      %s46 = sphi 0, %s45
      %s62 = sphi 0, %s46
      %s66 = sphi 0, %s66
      %s68 = sphi 0, %s66
      %s69 = sphi 0, %s68
      %s83 = sphi 0, %s69
      %s87 = sphi 0, %s87
      %s89 = sphi 0, %s87
      %s90 = sphi 0, %s89
      %s104 = sphi 0, %s90
      %s108 = sphi 0, %s108
      %s110 = sphi 0, %s108
      %s111 = sphi 0, %s110
      %s125 = sphi 0, %s111
      %s129 = sphi 0, %s129
      %s131 = sphi 0, %s129
      %s132 = sphi 0, %s131
      %s146 = sphi 0, %s132
      %s150 = sphi 0, %s150
      %s152 = sphi 0, %s150
      %s153 = sphi 0, %s152
      %s167 = sphi 0, %s153
      %s171 = sphi 0, %s171
      %s173 = sphi 0, %s171
      %s174 = sphi 0, %s173
      %s188 = sphi 0, %s174
      %s192 = sphi 0, %s192
      %s194 = sphi 0, %s192
      %s195 = sphi 0, %s194
      %s209 = sphi 0, %s195
      %s213 = sphi 0, %s213
      %s215 = sphi 0, %s213
      %s216 = sphi 0, %s215
      %s230 = sphi 0, %s216
      %s234 = sphi 0, %s234
      %s236 = sphi 0, %s234
      %s237 = sphi 0, %s236
      %s251 = sphi 0, %s237
      %s255 = sphi 0, %s255
      %s257 = sphi 0, %s255
      %s258 = sphi 0, %s257
      %s272 = sphi 0, %s258
      %s276 = sphi 0, %s276
      %s278 = sphi 0, %s276
      %s279 = sphi 0, %s278
      %s293 = sphi 0, %s279
      %s297 = sphi 0, %s297
      %s299 = sphi 0, %s297
      %s300 = sphi 0, %s299
      %s314 = sphi 0, %s300
      %s318 = sphi 0, %s318
      %s320 = sphi 0, %s318
      %s321 = sphi 0, %s320
      %s335 = sphi 0, %s321
      %s339 = sphi 0, %s339
      %s341 = sphi 0, %s339
      %s342 = sphi 0, %s341
      %s356 = sphi 0, %s342
      %s360 = sphi 0, %s360
      %s362 = sphi 0, %s360
      %s363 = sphi 0, %s362
      %s377 = sphi 0, %s363
      %s381 = sphi 0, %s381
      %s383 = sphi 0, %s381
      %s384 = sphi 0, %s383
      %s398 = sphi 0, %s384
      %s402 = sphi 0, %s402
      %s404 = sphi 0, %s402
      %s405 = sphi 0, %s404
      %s419 = sphi 0, %s405
      %s423 = sphi 0, %s423
      %s425 = sphi 0, %s423
      %s426 = sphi 0, %s425
      %s440 = sphi 0, %s426
      %s444 = sphi 0, %s444
      %s446 = sphi 0, %s444
      %s447 = sphi 0, %s446
      %s461 = sphi 0, %s447
      %s467 = sphi 0, %s469
      %s470 = sphi 0, %s467
      %s471 = sphi 0, %s470
      %s487 = sphi 0, %s471
    $region4: #{geomt_forward.1} parent=1 // loop_header_branch
      %35 = sbr.rel (%p33) target = $region8
    $region5: #{geomt_forward.1} parent=1 // loop_body
      %s37 = ssub.s32 %s32, 1
      %s38 = ssub.s32 %s32, 2
      %s39 = sadd.s32 %s32, 1
      %s40 = ssub.s32 %s32, %s39
      %p41 = scmp.eq.s32.totalorder %s40, 0
      %s43 = sadd.s32 %s42, 1
      %s44 = scalar_select %p41, %s42, %s43
      %p47 = pneg %p41
      %p48 = scmp.eq.s32.totalorder %s32, 1
      %p49 = por %p47, %p48
      %p50 = scmp.ne.s32.totalorder %s42, %s45
      %p51 = scmp.eq.s32.totalorder %s32, 0
      %p52 = por %p50, %p51
      %p53 = scmp.ne.s32.totalorder %s42, %s45
      %p54 = scmp.eq.s32.totalorder %s37, 1
      %p55 = por %p53, %p54
      %p56 = scmp.ne.s32.totalorder %s45, %s46
      %p57 = scmp.eq.s32.totalorder %s37, 0
      %p58 = por %p56, %p57
      %p59 = scmp.ne.s32.totalorder %s45, %s46
      %p60 = scmp.eq.s32.totalorder %s38, 1
      %p61 = por %p59, %p60
      %p63 = scmp.ne.s32.totalorder %s46, %s62
      %p64 = scmp.eq.s32.totalorder %s38, 0
      %p65 = por %p63, %p64
      %s67 = sadd.s32 %s66, 1
      %p70 = scmp.eq.s32.totalorder %s32, 1
      %p71 = scmp.ne.s32.totalorder %s66, %s68
      %p72 = scmp.eq.s32.totalorder %s32, 0
      %p73 = por %p71, %p72
      %p74 = scmp.ne.s32.totalorder %s66, %s68
      %p75 = scmp.eq.s32.totalorder %s37, 1
      %p76 = por %p74, %p75
      %p77 = scmp.ne.s32.totalorder %s68, %s69
      %p78 = scmp.eq.s32.totalorder %s37, 0
      %p79 = por %p77, %p78
      %p80 = scmp.ne.s32.totalorder %s68, %s69
      %p81 = scmp.eq.s32.totalorder %s38, 1
      %p82 = por %p80, %p81
      %p84 = scmp.ne.s32.totalorder %s69, %s83
      %p85 = scmp.eq.s32.totalorder %s38, 0
      %p86 = por %p84, %p85
      %s88 = sadd.s32 %s87, 1
      %p91 = scmp.eq.s32.totalorder %s32, 1
      %p92 = scmp.ne.s32.totalorder %s87, %s89
      %p93 = scmp.eq.s32.totalorder %s32, 0
      %p94 = por %p92, %p93
      %p95 = scmp.ne.s32.totalorder %s87, %s89
      %p96 = scmp.eq.s32.totalorder %s37, 1
      %p97 = por %p95, %p96
      %p98 = scmp.ne.s32.totalorder %s89, %s90
      %p99 = scmp.eq.s32.totalorder %s37, 0
      %p100 = por %p98, %p99
      %p101 = scmp.ne.s32.totalorder %s89, %s90
      %p102 = scmp.eq.s32.totalorder %s38, 1
      %p103 = por %p101, %p102
      %p105 = scmp.ne.s32.totalorder %s90, %s104
      %p106 = scmp.eq.s32.totalorder %s38, 0
      %p107 = por %p105, %p106
      %s109 = sadd.s32 %s108, 1
      %p112 = scmp.eq.s32.totalorder %s32, 1
      %p113 = scmp.ne.s32.totalorder %s108, %s110
      %p114 = scmp.eq.s32.totalorder %s32, 0
      %p115 = por %p113, %p114
      %p116 = scmp.ne.s32.totalorder %s108, %s110
      %p117 = scmp.eq.s32.totalorder %s37, 1
      %p118 = por %p116, %p117
      %p119 = scmp.ne.s32.totalorder %s110, %s111
      %p120 = scmp.eq.s32.totalorder %s37, 0
      %p121 = por %p119, %p120
      %p122 = scmp.ne.s32.totalorder %s110, %s111
      %p123 = scmp.eq.s32.totalorder %s38, 1
      %p124 = por %p122, %p123
      %p126 = scmp.ne.s32.totalorder %s111, %s125
      %p127 = scmp.eq.s32.totalorder %s38, 0
      %p128 = por %p126, %p127
      %s130 = sadd.s32 %s129, 1
      %p133 = scmp.eq.s32.totalorder %s32, 1
      %p134 = scmp.ne.s32.totalorder %s129, %s131
      %p135 = scmp.eq.s32.totalorder %s32, 0
      %p136 = por %p134, %p135
      %p137 = scmp.ne.s32.totalorder %s129, %s131
      %p138 = scmp.eq.s32.totalorder %s37, 1
      %p139 = por %p137, %p138
      %p140 = scmp.ne.s32.totalorder %s131, %s132
      %p141 = scmp.eq.s32.totalorder %s37, 0
      %p142 = por %p140, %p141
      %p143 = scmp.ne.s32.totalorder %s131, %s132
      %p144 = scmp.eq.s32.totalorder %s38, 1
      %p145 = por %p143, %p144
      %p147 = scmp.ne.s32.totalorder %s132, %s146
      %p148 = scmp.eq.s32.totalorder %s38, 0
      %p149 = por %p147, %p148
      %s151 = sadd.s32 %s150, 1
      %p154 = scmp.eq.s32.totalorder %s32, 1
      %p155 = scmp.ne.s32.totalorder %s150, %s152
      %p156 = scmp.eq.s32.totalorder %s32, 0
      %p157 = por %p155, %p156
      %p158 = scmp.ne.s32.totalorder %s150, %s152
      %p159 = scmp.eq.s32.totalorder %s37, 1
      %p160 = por %p158, %p159
      %p161 = scmp.ne.s32.totalorder %s152, %s153
      %p162 = scmp.eq.s32.totalorder %s37, 0
      %p163 = por %p161, %p162
      %p164 = scmp.ne.s32.totalorder %s152, %s153
      %p165 = scmp.eq.s32.totalorder %s38, 1
      %p166 = por %p164, %p165
      %p168 = scmp.ne.s32.totalorder %s153, %s167
      %p169 = scmp.eq.s32.totalorder %s38, 0
      %p170 = por %p168, %p169
      %s172 = sadd.s32 %s171, 1
      %p175 = scmp.eq.s32.totalorder %s32, 1
      %p176 = scmp.ne.s32.totalorder %s171, %s173
      %p177 = scmp.eq.s32.totalorder %s32, 0
      %p178 = por %p176, %p177
      %p179 = scmp.ne.s32.totalorder %s171, %s173
      %p180 = scmp.eq.s32.totalorder %s37, 1
      %p181 = por %p179, %p180
      %p182 = scmp.ne.s32.totalorder %s173, %s174
      %p183 = scmp.eq.s32.totalorder %s37, 0
      %p184 = por %p182, %p183
      %p185 = scmp.ne.s32.totalorder %s173, %s174
      %p186 = scmp.eq.s32.totalorder %s38, 1
      %p187 = por %p185, %p186
      %p189 = scmp.ne.s32.totalorder %s174, %s188
      %p190 = scmp.eq.s32.totalorder %s38, 0
      %p191 = por %p189, %p190
      %s193 = sadd.s32 %s192, 1
      %p196 = scmp.eq.s32.totalorder %s32, 1
      %p197 = scmp.ne.s32.totalorder %s192, %s194
      %p198 = scmp.eq.s32.totalorder %s32, 0
      %p199 = por %p197, %p198
      %p200 = scmp.ne.s32.totalorder %s192, %s194
      %p201 = scmp.eq.s32.totalorder %s37, 1
      %p202 = por %p200, %p201
      %p203 = scmp.ne.s32.totalorder %s194, %s195
      %p204 = scmp.eq.s32.totalorder %s37, 0
      %p205 = por %p203, %p204
      %p206 = scmp.ne.s32.totalorder %s194, %s195
      %p207 = scmp.eq.s32.totalorder %s38, 1
      %p208 = por %p206, %p207
      %p210 = scmp.ne.s32.totalorder %s195, %s209
      %p211 = scmp.eq.s32.totalorder %s38, 0
      %p212 = por %p210, %p211
      %s214 = sadd.s32 %s213, 1
      %p217 = scmp.eq.s32.totalorder %s32, 1
      %p218 = scmp.ne.s32.totalorder %s213, %s215
      %p219 = scmp.eq.s32.totalorder %s32, 0
      %p220 = por %p218, %p219
      %p221 = scmp.ne.s32.totalorder %s213, %s215
      %p222 = scmp.eq.s32.totalorder %s37, 1
      %p223 = por %p221, %p222
      %p224 = scmp.ne.s32.totalorder %s215, %s216
      %p225 = scmp.eq.s32.totalorder %s37, 0
      %p226 = por %p224, %p225
      %p227 = scmp.ne.s32.totalorder %s215, %s216
      %p228 = scmp.eq.s32.totalorder %s38, 1
      %p229 = por %p227, %p228
      %p231 = scmp.ne.s32.totalorder %s216, %s230
      %p232 = scmp.eq.s32.totalorder %s38, 0
      %p233 = por %p231, %p232
      %s235 = sadd.s32 %s234, 1
      %p238 = scmp.eq.s32.totalorder %s32, 1
      %p239 = scmp.ne.s32.totalorder %s234, %s236
      %p240 = scmp.eq.s32.totalorder %s32, 0
      %p241 = por %p239, %p240
      %p242 = scmp.ne.s32.totalorder %s234, %s236
      %p243 = scmp.eq.s32.totalorder %s37, 1
      %p244 = por %p242, %p243
      %p245 = scmp.ne.s32.totalorder %s236, %s237
      %p246 = scmp.eq.s32.totalorder %s37, 0
      %p247 = por %p245, %p246
      %p248 = scmp.ne.s32.totalorder %s236, %s237
      %p249 = scmp.eq.s32.totalorder %s38, 1
      %p250 = por %p248, %p249
      %p252 = scmp.ne.s32.totalorder %s237, %s251
      %p253 = scmp.eq.s32.totalorder %s38, 0
      %p254 = por %p252, %p253
      %s256 = sadd.s32 %s255, 1
      %p259 = scmp.eq.s32.totalorder %s32, 1
      %p260 = scmp.ne.s32.totalorder %s255, %s257
      %p261 = scmp.eq.s32.totalorder %s32, 0
      %p262 = por %p260, %p261
      %p263 = scmp.ne.s32.totalorder %s255, %s257
      %p264 = scmp.eq.s32.totalorder %s37, 1
      %p265 = por %p263, %p264
      %p266 = scmp.ne.s32.totalorder %s257, %s258
      %p267 = scmp.eq.s32.totalorder %s37, 0
      %p268 = por %p266, %p267
      %p269 = scmp.ne.s32.totalorder %s257, %s258
      %p270 = scmp.eq.s32.totalorder %s38, 1
      %p271 = por %p269, %p270
      %p273 = scmp.ne.s32.totalorder %s258, %s272
      %p274 = scmp.eq.s32.totalorder %s38, 0
      %p275 = por %p273, %p274
      %s277 = sadd.s32 %s276, 1
      %p280 = scmp.eq.s32.totalorder %s32, 1
      %p281 = scmp.ne.s32.totalorder %s276, %s278
      %p282 = scmp.eq.s32.totalorder %s32, 0
      %p283 = por %p281, %p282
      %p284 = scmp.ne.s32.totalorder %s276, %s278
      %p285 = scmp.eq.s32.totalorder %s37, 1
      %p286 = por %p284, %p285
      %p287 = scmp.ne.s32.totalorder %s278, %s279
      %p288 = scmp.eq.s32.totalorder %s37, 0
      %p289 = por %p287, %p288
      %p290 = scmp.ne.s32.totalorder %s278, %s279
      %p291 = scmp.eq.s32.totalorder %s38, 1
      %p292 = por %p290, %p291
      %p294 = scmp.ne.s32.totalorder %s279, %s293
      %p295 = scmp.eq.s32.totalorder %s38, 0
      %p296 = por %p294, %p295
      %s298 = sadd.s32 %s297, 1
      %p301 = scmp.eq.s32.totalorder %s32, 1
      %p302 = scmp.ne.s32.totalorder %s297, %s299
      %p303 = scmp.eq.s32.totalorder %s32, 0
      %p304 = por %p302, %p303
      %p305 = scmp.ne.s32.totalorder %s297, %s299
      %p306 = scmp.eq.s32.totalorder %s37, 1
      %p307 = por %p305, %p306
      %p308 = scmp.ne.s32.totalorder %s299, %s300
      %p309 = scmp.eq.s32.totalorder %s37, 0
      %p310 = por %p308, %p309
      %p311 = scmp.ne.s32.totalorder %s299, %s300
      %p312 = scmp.eq.s32.totalorder %s38, 1
      %p313 = por %p311, %p312
      %p315 = scmp.ne.s32.totalorder %s300, %s314
      %p316 = scmp.eq.s32.totalorder %s38, 0
      %p317 = por %p315, %p316
      %s319 = sadd.s32 %s318, 1
      %p322 = scmp.eq.s32.totalorder %s32, 1
      %p323 = scmp.ne.s32.totalorder %s318, %s320
      %p324 = scmp.eq.s32.totalorder %s32, 0
      %p325 = por %p323, %p324
      %p326 = scmp.ne.s32.totalorder %s318, %s320
      %p327 = scmp.eq.s32.totalorder %s37, 1
      %p328 = por %p326, %p327
      %p329 = scmp.ne.s32.totalorder %s320, %s321
      %p330 = scmp.eq.s32.totalorder %s37, 0
      %p331 = por %p329, %p330
      %p332 = scmp.ne.s32.totalorder %s320, %s321
      %p333 = scmp.eq.s32.totalorder %s38, 1
      %p334 = por %p332, %p333
      %p336 = scmp.ne.s32.totalorder %s321, %s335
      %p337 = scmp.eq.s32.totalorder %s38, 0
      %p338 = por %p336, %p337
      %s340 = sadd.s32 %s339, 1
      %p343 = scmp.eq.s32.totalorder %s32, 1
      %p344 = scmp.ne.s32.totalorder %s339, %s341
      %p345 = scmp.eq.s32.totalorder %s32, 0
      %p346 = por %p344, %p345
      %p347 = scmp.ne.s32.totalorder %s339, %s341
      %p348 = scmp.eq.s32.totalorder %s37, 1
      %p349 = por %p347, %p348
      %p350 = scmp.ne.s32.totalorder %s341, %s342
      %p351 = scmp.eq.s32.totalorder %s37, 0
      %p352 = por %p350, %p351
      %p353 = scmp.ne.s32.totalorder %s341, %s342
      %p354 = scmp.eq.s32.totalorder %s38, 1
      %p355 = por %p353, %p354
      %p357 = scmp.ne.s32.totalorder %s342, %s356
      %p358 = scmp.eq.s32.totalorder %s38, 0
      %p359 = por %p357, %p358
      %s361 = sadd.s32 %s360, 1
      %p364 = scmp.eq.s32.totalorder %s32, 1
      %p365 = scmp.ne.s32.totalorder %s360, %s362
      %p366 = scmp.eq.s32.totalorder %s32, 0
      %p367 = por %p365, %p366
      %p368 = scmp.ne.s32.totalorder %s360, %s362
      %p369 = scmp.eq.s32.totalorder %s37, 1
      %p370 = por %p368, %p369
      %p371 = scmp.ne.s32.totalorder %s362, %s363
      %p372 = scmp.eq.s32.totalorder %s37, 0
      %p373 = por %p371, %p372
      %p374 = scmp.ne.s32.totalorder %s362, %s363
      %p375 = scmp.eq.s32.totalorder %s38, 1
      %p376 = por %p374, %p375
      %p378 = scmp.ne.s32.totalorder %s363, %s377
      %p379 = scmp.eq.s32.totalorder %s38, 0
      %p380 = por %p378, %p379
      %s382 = sadd.s32 %s381, 1
      %p385 = scmp.eq.s32.totalorder %s32, 1
      %p386 = scmp.ne.s32.totalorder %s381, %s383
      %p387 = scmp.eq.s32.totalorder %s32, 0
      %p388 = por %p386, %p387
      %p389 = scmp.ne.s32.totalorder %s381, %s383
      %p390 = scmp.eq.s32.totalorder %s37, 1
      %p391 = por %p389, %p390
      %p392 = scmp.ne.s32.totalorder %s383, %s384
      %p393 = scmp.eq.s32.totalorder %s37, 0
      %p394 = por %p392, %p393
      %p395 = scmp.ne.s32.totalorder %s383, %s384
      %p396 = scmp.eq.s32.totalorder %s38, 1
      %p397 = por %p395, %p396
      %p399 = scmp.ne.s32.totalorder %s384, %s398
      %p400 = scmp.eq.s32.totalorder %s38, 0
      %p401 = por %p399, %p400
      %s403 = sadd.s32 %s402, 1
      %p406 = scmp.eq.s32.totalorder %s32, 1
      %p407 = scmp.ne.s32.totalorder %s402, %s404
      %p408 = scmp.eq.s32.totalorder %s32, 0
      %p409 = por %p407, %p408
      %p410 = scmp.ne.s32.totalorder %s402, %s404
      %p411 = scmp.eq.s32.totalorder %s37, 1
      %p412 = por %p410, %p411
      %p413 = scmp.ne.s32.totalorder %s404, %s405
      %p414 = scmp.eq.s32.totalorder %s37, 0
      %p415 = por %p413, %p414
      %p416 = scmp.ne.s32.totalorder %s404, %s405
      %p417 = scmp.eq.s32.totalorder %s38, 1
      %p418 = por %p416, %p417
      %p420 = scmp.ne.s32.totalorder %s405, %s419
      %p421 = scmp.eq.s32.totalorder %s38, 0
      %p422 = por %p420, %p421
      %s424 = sadd.s32 %s423, 1
      %p427 = scmp.eq.s32.totalorder %s32, 1
      %p428 = scmp.ne.s32.totalorder %s423, %s425
      %p429 = scmp.eq.s32.totalorder %s32, 0
      %p430 = por %p428, %p429
      %p431 = scmp.ne.s32.totalorder %s423, %s425
      %p432 = scmp.eq.s32.totalorder %s37, 1
      %p433 = por %p431, %p432
      %p434 = scmp.ne.s32.totalorder %s425, %s426
      %p435 = scmp.eq.s32.totalorder %s37, 0
      %p436 = por %p434, %p435
      %p437 = scmp.ne.s32.totalorder %s425, %s426
      %p438 = scmp.eq.s32.totalorder %s38, 1
      %p439 = por %p437, %p438
      %p441 = scmp.ne.s32.totalorder %s426, %s440
      %p442 = scmp.eq.s32.totalorder %s38, 0
      %p443 = por %p441, %p442
      %s445 = sadd.s32 %s444, 1
      %p448 = scmp.eq.s32.totalorder %s32, 1
      %p449 = scmp.ne.s32.totalorder %s444, %s446
      %p450 = scmp.eq.s32.totalorder %s32, 0
      %p451 = por %p449, %p450
      %p452 = scmp.ne.s32.totalorder %s444, %s446
      %p453 = scmp.eq.s32.totalorder %s37, 1
      %p454 = por %p452, %p453
      %p455 = scmp.ne.s32.totalorder %s446, %s447
      %p456 = scmp.eq.s32.totalorder %s37, 0
      %p457 = por %p455, %p456
      %p458 = scmp.ne.s32.totalorder %s446, %s447
      %p459 = scmp.eq.s32.totalorder %s38, 1
      %p460 = por %p458, %p459
      %p462 = scmp.ne.s32.totalorder %s447, %s461
      %p463 = scmp.eq.s32.totalorder %s38, 0
      %p464 = por %p462, %p463
      %s465 = ssub.s32 %s32, %s39
      %p466 = scmp.eq.s32.totalorder %s465, 0
      %s468 = sadd.s32 %s467, 1
      %s469 = scalar_select %p466, %s467, %s468
      %p472 = pneg %p466
      %p473 = scmp.eq.s32.totalorder %s32, 1
      %p474 = por %p472, %p473
      %p475 = scmp.ne.s32.totalorder %s467, %s470
      %p476 = scmp.eq.s32.totalorder %s32, 0
      %p477 = por %p475, %p476
      %p478 = scmp.ne.s32.totalorder %s467, %s470
      %p479 = scmp.eq.s32.totalorder %s37, 1
      %p480 = por %p478, %p479
      %p481 = scmp.ne.s32.totalorder %s470, %s471
      %p482 = scmp.eq.s32.totalorder %s37, 0
      %p483 = por %p481, %p482
      %p484 = scmp.ne.s32.totalorder %s470, %s471
      %p485 = scmp.eq.s32.totalorder %s38, 1
      %p486 = por %p484, %p485
      %p488 = scmp.ne.s32.totalorder %s471, %s487
      %p489 = scmp.eq.s32.totalorder %s38, 0
      %p490 = por %p488, %p489
      %p491 = scmp.le.s32.totalorder 1, %s32
      %p492 = scmp.lt.s32.totalorder %s32, 3
      %p493 = pnand %p491, %p492
      %p494 = pneg %p493
      // Predicated region
      $region9: #{geomt_forward.1} parent=5 // pred_check
        _
      $region10: #{geomt_forward.1} parent=5 // pred_check_branch
        %496 = sbr.rel (%p493) target = $region12
      $region11: #{geomt_forward.1} parent=5 // pred_region
        %s497 = ssub.s32 %s32, 1
        // Predicated region
        $region13: #{geomt_forward.1} parent=11 // pred_check
          %p498 = pneg %p79
        $region14: #{geomt_forward.1} parent=11 // pred_check_branch
          %500 = sbr.rel (%p498) target = $region16
        $region15: #{geomt_forward.1} parent=11 // pred_region
          _
        $region16: #{geomt_forward.1} parent=11 // pred_fallthru
          _
        // Predicated region
        $region17: #{geomt_forward.1} parent=11 // pred_check
          %p501 = pneg %p100
        $region18: #{geomt_forward.1} parent=11 // pred_check_branch
          %503 = sbr.rel (%p501) target = $region20
        $region19: #{geomt_forward.1} parent=11 // pred_region
          %s505 = ssub.s32 16, 16
          %506 = vsyncadd [#allocation3], %s505
          %s508 = sshll.u32 [#allocation2], 4
          %s509 = int_to_ptr.vmem [resolvable:$true] %s508
          %511 = dma.hbm_to_vmem [thread:$0]  %s2, 16, %s509, [#allocation3]
        $region20: #{geomt_forward.1} parent=11 // pred_fallthru
          _
        // Predicated region
        $region21: #{geomt_forward.1} parent=11 // pred_check
          %p512 = pneg %p121
        $region22: #{geomt_forward.1} parent=11 // pred_check_branch
          %514 = sbr.rel (%p512) target = $region24
        $region23: #{geomt_forward.1} parent=11 // pred_region
          %s516 = ssub.s32 16, 16
          %517 = vsyncadd [#allocation5], %s516
          %s519 = sshll.u32 [#allocation4], 4
          %s520 = int_to_ptr.vmem [resolvable:$true] %s519
          %522 = dma.hbm_to_vmem [thread:$0]  %s3, 16, %s520, [#allocation5]
        $region24: #{geomt_forward.1} parent=11 // pred_fallthru
          _
        // Predicated region
        $region25: #{geomt_forward.1} parent=11 // pred_check
          %p523 = pneg %p142
        $region26: #{geomt_forward.1} parent=11 // pred_check_branch
          %525 = sbr.rel (%p523) target = $region28
        $region27: #{geomt_forward.1} parent=11 // pred_region
          %s527 = ssub.s32 16, 16
          %528 = vsyncadd [#allocation5], %s527
          %s530 = sshll.u32 [#allocation6], 4
          %s531 = int_to_ptr.vmem [resolvable:$true] %s530
          %533 = dma.hbm_to_vmem [thread:$0]  %s4, 16, %s531, [#allocation5]
        $region28: #{geomt_forward.1} parent=11 // pred_fallthru
          _
        // Predicated region
        $region29: #{geomt_forward.1} parent=11 // pred_check
          %p534 = pneg %p163
        $region30: #{geomt_forward.1} parent=11 // pred_check_branch
          %536 = sbr.rel (%p534) target = $region32
        $region31: #{geomt_forward.1} parent=11 // pred_region
          %s538 = ssub.s32 2048, 2048
          %539 = vsyncadd [#allocation8], %s538
          %s540 = sshll.u32 [#allocation7], 4
          %s541 = int_to_ptr.vmem [resolvable:$true] %s540
          %546 = dma.hbm_to_vmem [thread:$0]  %s5, 2048, %s541, [#allocation8], 128, 128, 8
        $region32: #{geomt_forward.1} parent=11 // pred_fallthru
          _
        // Predicated region
        $region33: #{geomt_forward.1} parent=11 // pred_check
          %p547 = pneg %p184
        $region34: #{geomt_forward.1} parent=11 // pred_check_branch
          %549 = sbr.rel (%p547) target = $region36
        $region35: #{geomt_forward.1} parent=11 // pred_region
          %s551 = ssub.s32 28672, 28672
          %552 = vsyncadd [#allocation8], %s551
          %s553 = sshll.u32 [#allocation9], 4
          %s554 = int_to_ptr.vmem [resolvable:$true] %s553
          %559 = dma.hbm_to_vmem [thread:$0]  %s6, 28672, %s554, [#allocation8], 128, 128, 8
        $region36: #{geomt_forward.1} parent=11 // pred_fallthru
          _
        // Predicated region
        $region37: #{geomt_forward.1} parent=11 // pred_check
          %p560 = pneg %p205
        $region38: #{geomt_forward.1} parent=11 // pred_check_branch
          %562 = sbr.rel (%p560) target = $region40
        $region39: #{geomt_forward.1} parent=11 // pred_region
          _
        $region40: #{geomt_forward.1} parent=11 // pred_fallthru
          _
        // Predicated region
        $region41: #{geomt_forward.1} parent=11 // pred_check
          %p563 = pneg %p226
        $region42: #{geomt_forward.1} parent=11 // pred_check_branch
          %565 = sbr.rel (%p563) target = $region44
        $region43: #{geomt_forward.1} parent=11 // pred_region
          _
        $region44: #{geomt_forward.1} parent=11 // pred_fallthru
          _
        // Predicated region
        $region45: #{geomt_forward.1} parent=11 // pred_check
          %p566 = pneg %p247
        $region46: #{geomt_forward.1} parent=11 // pred_check_branch
          %568 = sbr.rel (%p566) target = $region48
        $region47: #{geomt_forward.1} parent=11 // pred_region
          _
        $region48: #{geomt_forward.1} parent=11 // pred_fallthru
          _
        // Predicated region
        $region49: #{geomt_forward.1} parent=11 // pred_check
          %p569 = pneg %p268
        $region50: #{geomt_forward.1} parent=11 // pred_check_branch
          %571 = sbr.rel (%p569) target = $region52
        $region51: #{geomt_forward.1} parent=11 // pred_region
          _
        $region52: #{geomt_forward.1} parent=11 // pred_fallthru
          _
        // Predicated region
        $region53: #{geomt_forward.1} parent=11 // pred_check
          %p572 = pneg %p289
        $region54: #{geomt_forward.1} parent=11 // pred_check_branch
          %574 = sbr.rel (%p572) target = $region56
        $region55: #{geomt_forward.1} parent=11 // pred_region
          _
        $region56: #{geomt_forward.1} parent=11 // pred_fallthru
          _
        // Predicated region
        $region57: #{geomt_forward.1} parent=11 // pred_check
          %p575 = pneg %p310
        $region58: #{geomt_forward.1} parent=11 // pred_check_branch
          %577 = sbr.rel (%p575) target = $region60
        $region59: #{geomt_forward.1} parent=11 // pred_region
          _
        $region60: #{geomt_forward.1} parent=11 // pred_fallthru
          _
        // Predicated region
        $region61: #{geomt_forward.1} parent=11 // pred_check
          %p578 = pneg %p331
        $region62: #{geomt_forward.1} parent=11 // pred_check_branch
          %580 = sbr.rel (%p578) target = $region64
        $region63: #{geomt_forward.1} parent=11 // pred_region
          _
        $region64: #{geomt_forward.1} parent=11 // pred_fallthru
          _
        // Predicated region
        $region65: #{geomt_forward.1} parent=11 // pred_check
          %p581 = pneg %p352
        $region66: #{geomt_forward.1} parent=11 // pred_check_branch
          %583 = sbr.rel (%p581) target = $region68
        $region67: #{geomt_forward.1} parent=11 // pred_region
          %s585 = ssub.s32 32, 32
          %586 = vsyncadd [#allocation11], %s585
          %s587 = sshll.u32 [#allocation10], 4
          %s588 = int_to_ptr.vmem [resolvable:$true] %s587
          %593 = dma.hbm_to_vmem [thread:$0]  %s14, 32, %s588, [#allocation11], 16, 16, 1
        $region68: #{geomt_forward.1} parent=11 // pred_fallthru
          _
        // Predicated region
        $region69: #{geomt_forward.1} parent=11 // pred_check
          %p594 = pneg %p373
        $region70: #{geomt_forward.1} parent=11 // pred_check_branch
          %596 = sbr.rel (%p594) target = $region72
        $region71: #{geomt_forward.1} parent=11 // pred_region
          _
        $region72: #{geomt_forward.1} parent=11 // pred_fallthru
          _
        // Predicated region
        $region73: #{geomt_forward.1} parent=11 // pred_check
          %p597 = pneg %p394
        $region74: #{geomt_forward.1} parent=11 // pred_check_branch
          %599 = sbr.rel (%p597) target = $region76
        $region75: #{geomt_forward.1} parent=11 // pred_region
          %s601 = ssub.s32 16, 16
          %602 = vsyncadd [#allocation11], %s601
          %s604 = sshll.u32 [#allocation12], 4
          %s605 = int_to_ptr.vmem [resolvable:$true] %s604
          %607 = dma.hbm_to_vmem [thread:$0]  %s16, 16, %s605, [#allocation11]
        $region76: #{geomt_forward.1} parent=11 // pred_fallthru
          _
        // Predicated region
        $region77: #{geomt_forward.1} parent=11 // pred_check
          %p608 = pneg %p415
        $region78: #{geomt_forward.1} parent=11 // pred_check_branch
          %610 = sbr.rel (%p608) target = $region80
        $region79: #{geomt_forward.1} parent=11 // pred_region
          %s612 = ssub.s32 16, 16
          %613 = vsyncadd [#allocation14], %s612
          %s615 = sshll.u32 [#allocation13], 4
          %s616 = int_to_ptr.vmem [resolvable:$true] %s615
          %618 = dma.hbm_to_vmem [thread:$0]  %s17, 16, %s616, [#allocation14]
        $region80: #{geomt_forward.1} parent=11 // pred_fallthru
          _
        // Predicated region
        $region81: #{geomt_forward.1} parent=11 // pred_check
          %p619 = pneg %p436
        $region82: #{geomt_forward.1} parent=11 // pred_check_branch
          %621 = sbr.rel (%p619) target = $region84
        $region83: #{geomt_forward.1} parent=11 // pred_region
          %s623 = ssub.s32 256, 256
          %624 = vsyncadd [#allocation14], %s623
          %s625 = sshll.u32 [#allocation15], 4
          %s626 = int_to_ptr.vmem [resolvable:$true] %s625
          %631 = dma.hbm_to_vmem [thread:$0]  %s18, 256, %s626, [#allocation14], 64, 64, 4
        $region84: #{geomt_forward.1} parent=11 // pred_fallthru
          _
        // Predicated region
        $region85: #{geomt_forward.1} parent=11 // pred_check
          %p632 = pneg %p457
        $region86: #{geomt_forward.1} parent=11 // pred_check_branch
          %634 = sbr.rel (%p632) target = $region88
        $region87: #{geomt_forward.1} parent=11 // pred_region
          %s636 = ssub.s32 16, 16
          %637 = vsyncadd [#allocation17], %s636
          %s639 = sshll.u32 [#allocation16], 4
          %s640 = int_to_ptr.vmem [resolvable:$true] %s639
          %642 = dma.hbm_to_vmem [thread:$0]  %s19, 16, %s640, [#allocation17]
        $region88: #{geomt_forward.1} parent=11 // pred_fallthru
          _
      $region12: #{geomt_forward.1} parent=5 // pred_fallthru
        _
      %p643 = scmp.lt.s32.totalorder %s32, 2
      // Predicated region
      $region89: #{geomt_forward.1} parent=5 // pred_check
        %p644 = pneg %p643
      $region90: #{geomt_forward.1} parent=5 // pred_check_branch
        %646 = sbr.rel (%p644) target = $region92
      $region91: #{geomt_forward.1} parent=5 // pred_region
        // Predicated region
        $region93: #{geomt_forward.1} parent=91 // pred_check
          %p647 = pneg %p52
        $region94: #{geomt_forward.1} parent=91 // pred_check_branch
          %649 = sbr.rel (%p647) target = $region96
        $region95: #{geomt_forward.1} parent=91 // pred_region
          %p650 = scmp.lt.s32.totalorder %s32, 1
          %s651 = scalar_select %p650, %s32, 1
          %s652 = smul.addr %s651, 2
          %s653 = smul.addr %s652, 2
          %s654 = scalar_lea.vmem %s0, %s653
        $region96: #{geomt_forward.1} parent=91 // pred_fallthru
          _
      $region92: #{geomt_forward.1} parent=5 // pred_fallthru
        _
      %p655 = scmp.le.s32.totalorder 1, %s32
      %p656 = scmp.lt.s32.totalorder %s32, 3
      %p657 = pnand %p655, %p656
      %p658 = pneg %p657
      // Predicated region
      $region97: #{geomt_forward.1} parent=5 // pred_check
        _
      $region98: #{geomt_forward.1} parent=5 // pred_check_branch
        %660 = sbr.rel (%p657) target = $region100
      $region99: #{geomt_forward.1} parent=5 // pred_region
        %s661 = ssub.s32 %s32, 1
        // Predicated region
        $region101: #{geomt_forward.1} parent=99 // pred_check
          %p662 = pneg %p100
        $region102: #{geomt_forward.1} parent=99 // pred_check_branch
          %664 = sbr.rel (%p662) target = $region104
        $region103: #{geomt_forward.1} parent=99 // pred_region
          %665 = dma.done [#allocation3], 16
        $region104: #{geomt_forward.1} parent=99 // pred_fallthru
          _
        // Predicated region
        $region105: #{geomt_forward.1} parent=99 // pred_check
          %p666 = pneg %p121
        $region106: #{geomt_forward.1} parent=99 // pred_check_branch
          %668 = sbr.rel (%p666) target = $region108
        $region107: #{geomt_forward.1} parent=99 // pred_region
          %669 = dma.done [#allocation5], 16
        $region108: #{geomt_forward.1} parent=99 // pred_fallthru
          _
        // Predicated region
        $region109: #{geomt_forward.1} parent=99 // pred_check
          %p670 = pneg %p142
        $region110: #{geomt_forward.1} parent=99 // pred_check_branch
          %672 = sbr.rel (%p670) target = $region112
        $region111: #{geomt_forward.1} parent=99 // pred_region
          %673 = dma.done [#allocation5], 16
        $region112: #{geomt_forward.1} parent=99 // pred_fallthru
          _
        // Predicated region
        $region113: #{geomt_forward.1} parent=99 // pred_check
          %p674 = pneg %p163
        $region114: #{geomt_forward.1} parent=99 // pred_check_branch
          %676 = sbr.rel (%p674) target = $region116
        $region115: #{geomt_forward.1} parent=99 // pred_region
          %677 = dma.done [#allocation8], 2048
        $region116: #{geomt_forward.1} parent=99 // pred_fallthru
          _
        // Predicated region
        $region117: #{geomt_forward.1} parent=99 // pred_check
          %p678 = pneg %p184
        $region118: #{geomt_forward.1} parent=99 // pred_check_branch
          %680 = sbr.rel (%p678) target = $region120
        $region119: #{geomt_forward.1} parent=99 // pred_region
          %681 = dma.done [#allocation8], 28672
        $region120: #{geomt_forward.1} parent=99 // pred_fallthru
          _
        // Predicated region
        $region121: #{geomt_forward.1} parent=99 // pred_check
          %p682 = pneg %p352
        $region122: #{geomt_forward.1} parent=99 // pred_check_branch
          %684 = sbr.rel (%p682) target = $region124
        $region123: #{geomt_forward.1} parent=99 // pred_region
          %685 = dma.done [#allocation11], 32
        $region124: #{geomt_forward.1} parent=99 // pred_fallthru
          _
        // Predicated region
        $region125: #{geomt_forward.1} parent=99 // pred_check
          %p686 = pneg %p394
        $region126: #{geomt_forward.1} parent=99 // pred_check_branch
          %688 = sbr.rel (%p686) target = $region128
        $region127: #{geomt_forward.1} parent=99 // pred_region
          %689 = dma.done [#allocation11], 16
        $region128: #{geomt_forward.1} parent=99 // pred_fallthru
          _
        // Predicated region
        $region129: #{geomt_forward.1} parent=99 // pred_check
          %p690 = pneg %p415
        $region130: #{geomt_forward.1} parent=99 // pred_check_branch
          %692 = sbr.rel (%p690) target = $region132
        $region131: #{geomt_forward.1} parent=99 // pred_region
          %693 = dma.done [#allocation14], 16
        $region132: #{geomt_forward.1} parent=99 // pred_fallthru
          _
        // Predicated region
        $region133: #{geomt_forward.1} parent=99 // pred_check
          %p694 = pneg %p436
        $region134: #{geomt_forward.1} parent=99 // pred_check_branch
          %696 = sbr.rel (%p694) target = $region136
        $region135: #{geomt_forward.1} parent=99 // pred_region
          %697 = dma.done [#allocation14], 256
        $region136: #{geomt_forward.1} parent=99 // pred_fallthru
          _
        // Predicated region
        $region137: #{geomt_forward.1} parent=99 // pred_check
          %p698 = pneg %p457
        $region138: #{geomt_forward.1} parent=99 // pred_check_branch
          %700 = sbr.rel (%p698) target = $region140
        $region139: #{geomt_forward.1} parent=99 // pred_region
          %701 = dma.done [#allocation17], 16
        $region140: #{geomt_forward.1} parent=99 // pred_fallthru
          _
        %p702 = scmp.lt.s32.totalorder %s37, 1
        %s703 = scalar_select %p702, %s37, 1
        %s704 = smul.addr %s703, 2
        %s705 = smul.addr %s704, 2
        %s706 = scalar_lea.vmem %s0, %s705
        %p707 = pneg %p58
        %p708 = pneg %p55
        %p709 = pneg %p79
        %p710 = pneg %p76
        %p711 = pneg %p100
        %p712 = pneg %p97
        %p713 = pneg %p121
        %p714 = pneg %p118
        %p715 = pneg %p142
        %p716 = pneg %p139
        %p717 = pneg %p163
        %p718 = pneg %p160
        %p719 = pneg %p184
        %p720 = pneg %p181
        %p721 = pneg %p205
        %p722 = pneg %p202
        %p723 = pneg %p226
        %p724 = pneg %p223
        %p725 = pneg %p247
        %p726 = pneg %p244
        %p727 = pneg %p268
        %p728 = pneg %p265
        %p729 = pneg %p289
        %p730 = pneg %p286
        %p731 = pneg %p310
        %p732 = pneg %p307
        %p733 = pneg %p331
        %p734 = pneg %p328
        %p735 = pneg %p352
        %p736 = pneg %p349
        %p737 = pneg %p373
        %p738 = pneg %p370
        %p739 = pneg %p394
        %p740 = pneg %p391
        %p741 = pneg %p415
        %p742 = pneg %p412
        %p743 = pneg %p436
        %p744 = pneg %p433
        %p745 = pneg %p457
        %p746 = pneg %p454
        %p747 = pneg %p483
        %p748 = pneg %p480
        %p749 = scmp.lt.s32.totalorder %s37, 1
        %s750 = scalar_select %p749, %s37, 1
        %s751 = scalar_lea.vmem %s20, %s750
        %p752 = scmp.lt.s32.totalorder %s37, 1
        %s753 = scalar_select %p752, %s37, 1
        %s754 = smul.addr %s753, 2
        %s755 = smul.addr %s754, 2
        %s756 = scalar_lea.vmem %s0, %s755
        %p757 = scmp.lt.s32.totalorder %s37, 1
        %s758 = scalar_select %p757, %s37, 1
        %s759 = scalar_lea.vmem %s20, %s758
        %v761 = vld [vmem:[#allocation7] sm:$0xff]
        %v762 = vld [vmem:[#allocation7 + $0x8] sm:$0xff]
        %v763 = vld [vmem:[#allocation7 + $0x10] sm:$0xff]
        %v764 = vld [vmem:[#allocation7 + $0x18] sm:$0xff]
        %v765 = vld [vmem:[#allocation7 + $0x20] sm:$0xff]
        %v766 = vld [vmem:[#allocation7 + $0x28] sm:$0xff]
        %v767 = vld [vmem:[#allocation7 + $0x30] sm:$0xff]
        %v768 = vld [vmem:[#allocation7 + $0x38] sm:$0xff]
        %v769 = vld [vmem:[#allocation7 + $0x40] sm:$0xff]
        %v770 = vld [vmem:[#allocation7 + $0x48] sm:$0xff]
        %v771 = vld [vmem:[#allocation7 + $0x50] sm:$0xff]
        %v772 = vld [vmem:[#allocation7 + $0x58] sm:$0xff]
        %v773 = vld [vmem:[#allocation7 + $0x60] sm:$0xff]
        %v774 = vld [vmem:[#allocation7 + $0x68] sm:$0xff]
        %v775 = vld [vmem:[#allocation7 + $0x70] sm:$0xff]
        %v776 = vld [vmem:[#allocation7 + $0x78] sm:$0xff]
        %v777 = vld [vmem:[%s756] sm:$0xf]
        %v778 = vld [vmem:[%s1] sm:$0xf]
        %v779 = vld [vmem:[%s1 + $0x4] sm:$0xf]
        %v780 = vld [vmem:[%s1 + $0x8] sm:$0xf]
        %v781 = vld [vmem:[%s1 + $0xc] sm:$0xf]
        %v782 = vld [vmem:[%s1 + $0x10] sm:$0xf]
        %v783 = vld [vmem:[%s1 + $0x14] sm:$0xf]
        %v784 = vld [vmem:[%s1 + $0x18] sm:$0xf]
        %v785 = vld [vmem:[%s1 + $0x1c] sm:$0xf]
        %v786 = vld [vmem:[%s1 + $0x20] sm:$0xf]
        %v787 = vld [vmem:[%s1 + $0x24] sm:$0xf]
        %v788 = vld [vmem:[%s1 + $0x28] sm:$0xf]
        %v789 = vld [vmem:[%s1 + $0x2c] sm:$0xf]
        %v790 = vld [vmem:[%s1 + $0x30] sm:$0xf]
        %v791 = vld [vmem:[%s1 + $0x34] sm:$0xf]
        %v792 = vld [vmem:[%s1 + $0x38] sm:$0xf]
        %v793 = vld [vmem:[%s1 + $0x3c] sm:$0xf]
        %v794 = vld [vmem:[%s1 + $0x40] sm:$0xf]
        %v795 = vld [vmem:[%s1 + $0x44] sm:$0xf]
        %v796 = vld [vmem:[%s1 + $0x48] sm:$0xf]
        %v797 = vld [vmem:[%s1 + $0x4c] sm:$0xf]
        %v798 = vld [vmem:[%s1 + $0x50] sm:$0xf]
        %v799 = vld [vmem:[%s1 + $0x54] sm:$0xf]
        %v800 = vld [vmem:[%s1 + $0x58] sm:$0xf]
        %v801 = vld [vmem:[%s1 + $0x5c] sm:$0xf]
        %v802 = vld [vmem:[#allocation2] sm:$0x1]
        %v804 = vlaneseq
        %v805 = vshrl.u32 %v804, 7
        %v806 = vsub.s32 0, %v805
        %v807 = vrot.slane %v802, %v806
        %v811 = vunpack.c.l.s4 1983009808
        %v812 = vunpack.c.0.s8 %v811
        %v813 = vlaneseq
        %v814 = vshrl.u32 %v813, 7
        %v815 = vsub.s32 %v812, %v814
        %v816 = vrot.slane %v777, %v815
        %v817 = vcombine.high %v816, %v816
        %v843 = vunpack.c.l.b16 %v778
        %v844 = vunpack.c.l.b16 %v779
        %v845 = vunpack.c.l.b16 %v780
        %v846 = vunpack.c.l.b16 %v781
        %v847 = vunpack.c.l.b16 %v782
        %v848 = vunpack.c.l.b16 %v783
        %v849 = vunpack.c.l.b16 %v784
        %v850 = vunpack.c.l.b16 %v785
        %v851 = vunpack.c.l.b16 %v786
        %v852 = vunpack.c.l.b16 %v787
        %v853 = vunpack.c.l.b16 %v788
        %v854 = vunpack.c.l.b16 %v789
        %v855 = vunpack.c.l.b16 %v790
        %v856 = vunpack.c.l.b16 %v791
        %v857 = vunpack.c.l.b16 %v792
        %v858 = vunpack.c.l.b16 %v793
        %v859 = vunpack.c.l.b16 %v794
        %v860 = vunpack.c.l.b16 %v795
        %v861 = vunpack.c.l.b16 %v796
        %v862 = vunpack.c.l.b16 %v797
        %v863 = vunpack.c.l.b16 %v798
        %v864 = vunpack.c.l.b16 %v799
        %v865 = vunpack.c.l.b16 %v800
        %v866 = vunpack.c.l.b16 %v801
        %v867 = vpack.c.b16 %v844, %v843
        %v868 = vpack.c.b16 %v846, %v845
        %v869 = vpack.c.b16 %v848, %v847
        %v870 = vpack.c.b16 %v850, %v849
        %v871 = vpack.c.b16 %v852, %v851
        %v872 = vpack.c.b16 %v854, %v853
        %v873 = vpack.c.b16 %v856, %v855
        %v874 = vpack.c.b16 %v858, %v857
        %v875 = vpack.c.b16 %v860, %v859
        %v876 = vpack.c.b16 %v862, %v861
        %v877 = vpack.c.b16 %v864, %v863
        %v878 = vpack.c.b16 %v866, %v865
        %vm891 = vcmask 523264
        %v893 = vsel %vm891, %v817, 0
        %895 = vmatprep.subr.bf16.mxu0 0
        %896 = vmatpush1.bf16.msra.mxu0 %v867
        %897 = vmatprep.subr.bf16.mxu0 0
        %898 = vmatpush1.bf16.msra.mxu0 %v868
        %899 = vmatprep.subr.bf16.mxu0 0
        %900 = vmatpush1.bf16.msra.mxu0 %v869
        %901 = vmatprep.subr.bf16.mxu0 0
        %902 = vmatpush1.bf16.msra.mxu0 %v870
        %903 = vmatprep.subr.bf16.mxu0 0
        %904 = vmatpush1.bf16.msra.mxu0 %v871
        %905 = vmatprep.subr.bf16.mxu0 0
        %906 = vmatpush1.bf16.msra.mxu0 %v872
        %907 = vmatprep.subr.bf16.mxu0 0
        %908 = vmatpush1.bf16.msra.mxu0 %v873
        %909 = vmatprep.subr.bf16.mxu0 0
        %910 = vmatpush1.bf16.msra.mxu0 %v874
        %911 = vmatprep.subr.bf16.mxu0 0
        %912 = vmatpush1.bf16.msra.mxu0 %v875
        %913 = vmatprep.subr.bf16.mxu0 0
        %914 = vmatpush1.bf16.msra.mxu0 %v876
        %915 = vmatprep.subr.bf16.mxu0 0
        %916 = vmatpush1.bf16.msra.mxu0 %v877
        %917 = vmatprep.subr.bf16.mxu0 0
        %918 = vmatpush1.bf16.msra.mxu0 %v878
        %919 = vmatprep.subr.bf16.mxu0 0
        %920 = vmatpush1.bf16.msra.mxu0 0
        %921 = vmatprep.subr.bf16.mxu0 0
        %922 = vmatpush1.bf16.msra.mxu0 0
        %923 = vmatprep.subr.bf16.mxu0 0
        %924 = vmatpush1.bf16.msra.mxu0 0
        %925 = vmatprep.subr.bf16.mxu0 0
        %926 = vmatpush1.bf16.msra.mxu0 0
        %927 = vmatprep.mubr.bf16.mxu0 %v893
        %928 = vmatmul.mubr.bf16.gmra.mrb[0].mxu0 %v816
        %v929 = vpop.f32.mrb[0].mxu0
        %v930 = vadd.f32 %v807, %v929
        %v931 = vpop.f32.mrb[0].mxu0
        %v932 = vpop.f32.mrb[0].mxu0
        %v933 = vpop.f32.mrb[0].mxu0
        %934 = vdwg.mxu0
        %v935 = vld [vmem:[#allocation4] sm:$0x1]
        %v936 = vld [vmem:[#allocation6] sm:$0x1]
        %937 = vmatprep.subr.mxu0 0.0
        %938 = vmatpush1.msra.mxu0 %v761
        %939 = vmatprep.subr.mxu0 0.0
        %940 = vmatpush1.msra.mxu0 %v762
        %941 = vmatprep.subr.mxu0 0.0
        %942 = vmatpush1.msra.mxu0 %v763
        %943 = vmatprep.subr.mxu0 0.0
        %944 = vmatpush1.msra.mxu0 %v764
        %945 = vmatprep.subr.mxu0 0.0
        %946 = vmatpush1.msra.mxu0 %v765
        %947 = vmatprep.subr.mxu0 0.0
        %948 = vmatpush1.msra.mxu0 %v766
        %949 = vmatprep.subr.mxu0 0.0
        %950 = vmatpush1.msra.mxu0 %v767
        %951 = vmatprep.subr.mxu0 0.0
        %952 = vmatpush1.msra.mxu0 %v768
        %953 = vmatprep.subr.mxu0 0.0
        %954 = vmatpush1.msra.mxu0 %v769
        %955 = vmatprep.subr.mxu0 0.0
        %956 = vmatpush1.msra.mxu0 %v770
        %957 = vmatprep.subr.mxu0 0.0
        %958 = vmatpush1.msra.mxu0 %v771
        %959 = vmatprep.subr.mxu0 0.0
        %960 = vmatpush1.msra.mxu0 %v772
        %961 = vmatprep.subr.mxu0 0.0
        %962 = vmatpush1.msra.mxu0 %v773
        %963 = vmatprep.subr.mxu0 0.0
        %964 = vmatpush1.msra.mxu0 %v774
        %965 = vmatprep.subr.mxu0 0.0
        %966 = vmatpush1.msra.mxu0 %v775
        %967 = vmatprep.subr.mxu0 0.0
        %968 = vmatpush1.msra.mxu0 %v776
        %969 = vmatprep.subr.mxu0 0.0
        %970 = vmatpush1.msra.mxu0 0.0
        %971 = vmatprep.subr.mxu0 0.0
        %972 = vmatpush1.msra.mxu0 0.0
        %973 = vmatprep.subr.mxu0 0.0
        %974 = vmatpush1.msra.mxu0 0.0
        %975 = vmatprep.subr.mxu0 0.0
        %976 = vmatpush1.msra.mxu0 0.0
        %977 = vmatprep.subr.mxu0 0.0
        %978 = vmatpush1.msra.mxu0 0.0
        %979 = vmatprep.subr.mxu0 0.0
        %980 = vmatpush1.msra.mxu0 0.0
        %981 = vmatprep.subr.mxu0 0.0
        %982 = vmatpush1.msra.mxu0 0.0
        %983 = vmatprep.subr.mxu0 0.0
        %984 = vmatpush1.msra.mxu0 0.0
        %985 = vmatprep.subr.mxu0 0.0
        %986 = vmatpush1.msra.mxu0 0.0
        %987 = vmatprep.subr.mxu0 0.0
        %988 = vmatpush1.msra.mxu0 0.0
        %989 = vmatprep.subr.mxu0 0.0
        %990 = vmatpush1.msra.mxu0 0.0
        %991 = vmatprep.subr.mxu0 0.0
        %992 = vmatpush1.msra.mxu0 0.0
        %993 = vmatprep.subr.mxu0 0.0
        %994 = vmatpush1.msra.mxu0 0.0
        %995 = vmatprep.subr.mxu0 0.0
        %996 = vmatpush1.msra.mxu0 0.0
        %997 = vmatprep.subr.mxu0 0.0
        %998 = vmatpush1.msra.mxu0 0.0
        %999 = vmatprep.subr.mxu0 0.0
        %1000 = vmatpush1.msra.mxu0 0.0
        %1001 = vmatprep.mubr.f32.mxu0 0.0
        %1002 = vmatmul.mubr.f32.gmra.mrb[0].mxu0 %v930
        %v1003 = vpop.f32.mrb[0].mxu0
        %v1004 = vadd.f32 0.0, %v1003
        %v1005 = vpop.f32.mrb[0].mxu0
        %1006 = vdwg.mxu0
        %v1007 = vsub.f32 %v930, %v1004
        %v1008 = vmul.f32 %v1007, %v1007
        %1009 = vmatprep.subr.mxu0 0.0
        %1010 = vmatpush1.msra.mxu0 %v761
        %1011 = vmatprep.subr.mxu0 0.0
        %1012 = vmatpush1.msra.mxu0 %v762
        %1013 = vmatprep.subr.mxu0 0.0
        %1014 = vmatpush1.msra.mxu0 %v763
        %1015 = vmatprep.subr.mxu0 0.0
        %1016 = vmatpush1.msra.mxu0 %v764
        %1017 = vmatprep.subr.mxu0 0.0
        %1018 = vmatpush1.msra.mxu0 %v765
        %1019 = vmatprep.subr.mxu0 0.0
        %1020 = vmatpush1.msra.mxu0 %v766
        %1021 = vmatprep.subr.mxu0 0.0
        %1022 = vmatpush1.msra.mxu0 %v767
        %1023 = vmatprep.subr.mxu0 0.0
        %1024 = vmatpush1.msra.mxu0 %v768
        %1025 = vmatprep.subr.mxu0 0.0
        %1026 = vmatpush1.msra.mxu0 %v769
        %1027 = vmatprep.subr.mxu0 0.0
        %1028 = vmatpush1.msra.mxu0 %v770
        %1029 = vmatprep.subr.mxu0 0.0
        %1030 = vmatpush1.msra.mxu0 %v771
        %1031 = vmatprep.subr.mxu0 0.0
        %1032 = vmatpush1.msra.mxu0 %v772
        %1033 = vmatprep.subr.mxu0 0.0
        %1034 = vmatpush1.msra.mxu0 %v773
        %1035 = vmatprep.subr.mxu0 0.0
        %1036 = vmatpush1.msra.mxu0 %v774
        %1037 = vmatprep.subr.mxu0 0.0
        %1038 = vmatpush1.msra.mxu0 %v775
        %1039 = vmatprep.subr.mxu0 0.0
        %1040 = vmatpush1.msra.mxu0 %v776
        %1041 = vmatprep.subr.mxu0 0.0
        %1042 = vmatpush1.msra.mxu0 0.0
        %1043 = vmatprep.subr.mxu0 0.0
        %1044 = vmatpush1.msra.mxu0 0.0
        %1045 = vmatprep.subr.mxu0 0.0
        %1046 = vmatpush1.msra.mxu0 0.0
        %1047 = vmatprep.subr.mxu0 0.0
        %1048 = vmatpush1.msra.mxu0 0.0
        %1049 = vmatprep.subr.mxu0 0.0
        %1050 = vmatpush1.msra.mxu0 0.0
        %1051 = vmatprep.subr.mxu0 0.0
        %1052 = vmatpush1.msra.mxu0 0.0
        %1053 = vmatprep.subr.mxu0 0.0
        %1054 = vmatpush1.msra.mxu0 0.0
        %1055 = vmatprep.subr.mxu0 0.0
        %1056 = vmatpush1.msra.mxu0 0.0
        %1057 = vmatprep.subr.mxu0 0.0
        %1058 = vmatpush1.msra.mxu0 0.0
        %1059 = vmatprep.subr.mxu0 0.0
        %1060 = vmatpush1.msra.mxu0 0.0
        %1061 = vmatprep.subr.mxu0 0.0
        %1062 = vmatpush1.msra.mxu0 0.0
        %1063 = vmatprep.subr.mxu0 0.0
        %1064 = vmatpush1.msra.mxu0 0.0
        %1065 = vmatprep.subr.mxu0 0.0
        %1066 = vmatpush1.msra.mxu0 0.0
        %1067 = vmatprep.subr.mxu0 0.0
        %1068 = vmatpush1.msra.mxu0 0.0
        %1069 = vmatprep.subr.mxu0 0.0
        %1070 = vmatpush1.msra.mxu0 0.0
        %1071 = vmatprep.subr.mxu0 0.0
        %1072 = vmatpush1.msra.mxu0 0.0
        %1073 = vmatprep.mubr.f32.mxu0 0.0
        %1074 = vmatmul.mubr.f32.gmra.mrb[0].mxu0 %v1008
        %v1075 = vpop.f32.mrb[0].mxu0
        %v1076 = vadd.f32 1e-06, %v1075
        %v1077 = vpop.f32.mrb[0].mxu0
        %1078 = vdwg.mxu0
        %v1079 = vrsqrt.pop %v1076
        %v1080 = vmul.f32 %v1007, %v1079
        %v1082 = vlaneseq
        %v1083 = vshrl.u32 %v1082, 7
        %v1084 = vsub.s32 0, %v1083
        %v1085 = vrot.slane %v935, %v1084
        %v1087 = vmul.f32 %v1080, %v1085
        %v1089 = vlaneseq
        %v1090 = vshrl.u32 %v1089, 7
        %v1091 = vsub.s32 0, %v1090
        %v1092 = vrot.slane %v936, %v1091
        %v1094 = vadd.f32 %v1087, %v1092
        %v1096 = vrot.slane %v1094, 5
        %vm1098 = vcmask 1042432
        %v1099 = vsel %vm1098, 0.0, %v1096
        %vm1100 = vcmask 1046528
        %v1101 = vsel %vm1100, %v1099, 0.0
        %v1102 = vld [vmem:[#allocation9] sm:$0xff]
        %v1103 = vld [vmem:[#allocation9 + $0x8] sm:$0xff]
        %v1104 = vld [vmem:[#allocation9 + $0x10] sm:$0xff]
        %v1105 = vld [vmem:[#allocation9 + $0x18] sm:$0xff]
        %v1106 = vld [vmem:[#allocation9 + $0x20] sm:$0xff]
        %v1107 = vld [vmem:[#allocation9 + $0x28] sm:$0xff]
        %v1108 = vld [vmem:[#allocation9 + $0x30] sm:$0xff]
        %v1109 = vld [vmem:[#allocation9 + $0x38] sm:$0xff]
        %v1110 = vld [vmem:[#allocation9 + $0x40] sm:$0xff]
        %v1111 = vld [vmem:[#allocation9 + $0x48] sm:$0xff]
        %v1112 = vld [vmem:[#allocation9 + $0x50] sm:$0xff]
        %v1113 = vld [vmem:[#allocation9 + $0x58] sm:$0xff]
        %v1114 = vld [vmem:[#allocation9 + $0x60] sm:$0xff]
        %v1115 = vld [vmem:[#allocation9 + $0x68] sm:$0xff]
        %v1116 = vld [vmem:[#allocation9 + $0x70] sm:$0xff]
        %v1117 = vld [vmem:[#allocation9 + $0x78] sm:$0xff]
        %s1118 = scalar_lea.vmem [#allocation9], 128
        %v1119 = vld [vmem:[%s1118] sm:$0xff]
        %v1120 = vld [vmem:[%s1118 + $0x8] sm:$0xff]
        %v1121 = vld [vmem:[%s1118 + $0x10] sm:$0xff]
        %v1122 = vld [vmem:[%s1118 + $0x18] sm:$0xff]
        %v1123 = vld [vmem:[%s1118 + $0x20] sm:$0xff]
        %v1124 = vld [vmem:[%s1118 + $0x28] sm:$0xff]
        %v1125 = vld [vmem:[%s1118 + $0x30] sm:$0xff]
        %v1126 = vld [vmem:[%s1118 + $0x38] sm:$0xff]
        %v1127 = vld [vmem:[%s1118 + $0x40] sm:$0xff]
        %v1128 = vld [vmem:[%s1118 + $0x48] sm:$0xff]
        %v1129 = vld [vmem:[%s1118 + $0x50] sm:$0xff]
        %v1130 = vld [vmem:[%s1118 + $0x58] sm:$0xff]
        %v1131 = vld [vmem:[%s1118 + $0x60] sm:$0xff]
        %v1132 = vld [vmem:[%s1118 + $0x68] sm:$0xff]
        %v1133 = vld [vmem:[%s1118 + $0x70] sm:$0xff]
        %v1134 = vld [vmem:[%s1118 + $0x78] sm:$0xff]
        %v1136 = vrot.slane %v1101, 1
        %1138 = vmatprep.subr.mxu0 0.0
        %1139 = vmatpush1.msra.mxu0 %v1119
        %1140 = vmatprep.subr.mxu0 0.0
        %1141 = vmatpush1.msra.mxu0 %v1120
        %1142 = vmatprep.subr.mxu0 0.0
        %1143 = vmatpush1.msra.mxu0 %v1121
        %1144 = vmatprep.subr.mxu0 0.0
        %1145 = vmatpush1.msra.mxu0 %v1122
        %1146 = vmatprep.subr.mxu0 0.0
        %1147 = vmatpush1.msra.mxu0 %v1123
        %1148 = vmatprep.subr.mxu0 0.0
        %1149 = vmatpush1.msra.mxu0 %v1124
        %1150 = vmatprep.subr.mxu0 0.0
        %1151 = vmatpush1.msra.mxu0 %v1125
        %1152 = vmatprep.subr.mxu0 0.0
        %1153 = vmatpush1.msra.mxu0 %v1126
        %1154 = vmatprep.subr.mxu0 0.0
        %1155 = vmatpush1.msra.mxu0 %v1127
        %1156 = vmatprep.subr.mxu0 0.0
        %1157 = vmatpush1.msra.mxu0 %v1128
        %1158 = vmatprep.subr.mxu0 0.0
        %1159 = vmatpush1.msra.mxu0 %v1129
        %1160 = vmatprep.subr.mxu0 0.0
        %1161 = vmatpush1.msra.mxu0 %v1130
        %1162 = vmatprep.subr.mxu0 0.0
        %1163 = vmatpush1.msra.mxu0 %v1131
        %1164 = vmatprep.subr.mxu0 0.0
        %1165 = vmatpush1.msra.mxu0 %v1132
        %1166 = vmatprep.subr.mxu0 0.0
        %1167 = vmatpush1.msra.mxu0 %v1133
        %1168 = vmatprep.subr.mxu0 0.0
        %1169 = vmatpush1.msra.mxu0 %v1134
        %1170 = vmatprep.subr.mxu0 0.0
        %1171 = vmatpush1.msra.mxu0 0.0
        %1172 = vmatprep.subr.mxu0 0.0
        %1173 = vmatpush1.msra.mxu0 0.0
        %1174 = vmatprep.subr.mxu0 0.0
        %1175 = vmatpush1.msra.mxu0 0.0
        %1176 = vmatprep.subr.mxu0 0.0
        %1177 = vmatpush1.msra.mxu0 0.0
        %1178 = vmatprep.subr.mxu0 0.0
        %1179 = vmatpush1.msra.mxu0 0.0
        %1180 = vmatprep.subr.mxu0 0.0
        %1181 = vmatpush1.msra.mxu0 0.0
        %1182 = vmatprep.subr.mxu0 0.0
        %1183 = vmatpush1.msra.mxu0 0.0
        %1184 = vmatprep.subr.mxu0 0.0
        %1185 = vmatpush1.msra.mxu0 0.0
        %1186 = vmatprep.subr.mxu0 0.0
        %1187 = vmatpush1.msra.mxu0 0.0
        %1188 = vmatprep.subr.mxu0 0.0
        %1189 = vmatpush1.msra.mxu0 0.0
        %1190 = vmatprep.subr.mxu0 0.0
        %1191 = vmatpush1.msra.mxu0 0.0
        %1192 = vmatprep.subr.mxu0 0.0
        %1193 = vmatpush1.msra.mxu0 0.0
        %1194 = vmatprep.subr.mxu0 0.0
        %1195 = vmatpush1.msra.mxu0 0.0
        %1196 = vmatprep.subr.mxu0 0.0
        %1197 = vmatpush1.msra.mxu0 0.0
        %1198 = vmatprep.subr.mxu0 0.0
        %1199 = vmatpush1.msra.mxu0 0.0
        %1200 = vmatprep.subr.mxu0 0.0
        %1201 = vmatpush1.msra.mxu0 0.0
        %1202 = vmatprep.mubr.f32.mxu0 0.0
        %1203 = vmatmul.mubr.f32.gmra.mrb[0].mxu0 %v1136
        %v1204 = vpop.f32.mrb[0].mxu0
        %v1205 = vadd.f32 0.0, %v1204
        %v1206 = vpop.f32.mrb[0].mxu0
        %1207 = vdwg.mxu0
        %1208 = vmatprep.subr.mxu0 0.0
        %1209 = vmatpush1.msra.mxu0 %v1102
        %1210 = vmatprep.subr.mxu0 0.0
        %1211 = vmatpush1.msra.mxu0 %v1103
        %1212 = vmatprep.subr.mxu0 0.0
        %1213 = vmatpush1.msra.mxu0 %v1104
        %1214 = vmatprep.subr.mxu0 0.0
        %1215 = vmatpush1.msra.mxu0 %v1105
        %1216 = vmatprep.subr.mxu0 0.0
        %1217 = vmatpush1.msra.mxu0 %v1106
        %1218 = vmatprep.subr.mxu0 0.0
        %1219 = vmatpush1.msra.mxu0 %v1107
        %1220 = vmatprep.subr.mxu0 0.0
        %1221 = vmatpush1.msra.mxu0 %v1108
        %1222 = vmatprep.subr.mxu0 0.0
        %1223 = vmatpush1.msra.mxu0 %v1109
        %1224 = vmatprep.subr.mxu0 0.0
        %1225 = vmatpush1.msra.mxu0 %v1110
        %1226 = vmatprep.subr.mxu0 0.0
        %1227 = vmatpush1.msra.mxu0 %v1111
        %1228 = vmatprep.subr.mxu0 0.0
        %1229 = vmatpush1.msra.mxu0 %v1112
        %1230 = vmatprep.subr.mxu0 0.0
        %1231 = vmatpush1.msra.mxu0 %v1113
        %1232 = vmatprep.subr.mxu0 0.0
        %1233 = vmatpush1.msra.mxu0 %v1114
        %1234 = vmatprep.subr.mxu0 0.0
        %1235 = vmatpush1.msra.mxu0 %v1115
        %1236 = vmatprep.subr.mxu0 0.0
        %1237 = vmatpush1.msra.mxu0 %v1116
        %1238 = vmatprep.subr.mxu0 0.0
        %1239 = vmatpush1.msra.mxu0 %v1117
        %1240 = vmatprep.subr.mxu0 0.0
        %1241 = vmatpush1.msra.mxu0 0.0
        %1242 = vmatprep.subr.mxu0 0.0
        %1243 = vmatpush1.msra.mxu0 0.0
        %1244 = vmatprep.subr.mxu0 0.0
        %1245 = vmatpush1.msra.mxu0 0.0
        %1246 = vmatprep.subr.mxu0 0.0
        %1247 = vmatpush1.msra.mxu0 0.0
        %1248 = vmatprep.subr.mxu0 0.0
        %1249 = vmatpush1.msra.mxu0 0.0
        %1250 = vmatprep.subr.mxu0 0.0
        %1251 = vmatpush1.msra.mxu0 0.0
        %1252 = vmatprep.subr.mxu0 0.0
        %1253 = vmatpush1.msra.mxu0 0.0
        %1254 = vmatprep.subr.mxu0 0.0
        %1255 = vmatpush1.msra.mxu0 0.0
        %1256 = vmatprep.subr.mxu0 0.0
        %1257 = vmatpush1.msra.mxu0 0.0
        %1258 = vmatprep.subr.mxu0 0.0
        %1259 = vmatpush1.msra.mxu0 0.0
        %1260 = vmatprep.subr.mxu0 0.0
        %1261 = vmatpush1.msra.mxu0 0.0
        %1262 = vmatprep.subr.mxu0 0.0
        %1263 = vmatpush1.msra.mxu0 0.0
        %1264 = vmatprep.subr.mxu0 0.0
        %1265 = vmatpush1.msra.mxu0 0.0
        %1266 = vmatprep.subr.mxu0 0.0
        %1267 = vmatpush1.msra.mxu0 0.0
        %1268 = vmatprep.subr.mxu0 0.0
        %1269 = vmatpush1.msra.mxu0 0.0
        %1270 = vmatprep.subr.mxu0 0.0
        %1271 = vmatpush1.msra.mxu0 0.0
        %1272 = vmatprep.mubr.f32.mxu0 0.0
        %1273 = vmatmul.mubr.f32.gmra.mrb[0].mxu0 %v1101
        %v1274 = vpop.f32.mrb[0].mxu0
        %v1275 = vadd.f32 %v1205, %v1274
        %v1276 = vpop.f32.mrb[0].mxu0
        %1277 = vdwg.mxu0
        %s1278 = scalar_lea.vmem [#allocation9], 256
        %v1279 = vld [vmem:[%s1278] sm:$0xff]
        %v1280 = vld [vmem:[%s1278 + $0x8] sm:$0xff]
        %v1281 = vld [vmem:[%s1278 + $0x10] sm:$0xff]
        %v1282 = vld [vmem:[%s1278 + $0x18] sm:$0xff]
        %v1283 = vld [vmem:[%s1278 + $0x20] sm:$0xff]
        %v1284 = vld [vmem:[%s1278 + $0x28] sm:$0xff]
        %v1285 = vld [vmem:[%s1278 + $0x30] sm:$0xff]
        %v1286 = vld [vmem:[%s1278 + $0x38] sm:$0xff]
        %v1287 = vld [vmem:[%s1278 + $0x40] sm:$0xff]
        %v1288 = vld [vmem:[%s1278 + $0x48] sm:$0xff]
        %v1289 = vld [vmem:[%s1278 + $0x50] sm:$0xff]
        %v1290 = vld [vmem:[%s1278 + $0x58] sm:$0xff]
        %v1291 = vld [vmem:[%s1278 + $0x60] sm:$0xff]
        %v1292 = vld [vmem:[%s1278 + $0x68] sm:$0xff]
        %v1293 = vld [vmem:[%s1278 + $0x70] sm:$0xff]
        %v1294 = vld [vmem:[%s1278 + $0x78] sm:$0xff]
        %v1295 = vrot.slane %v1101, 2
        %1297 = vmatprep.subr.mxu0 0.0
        %1298 = vmatpush1.msra.mxu0 %v1279
        %1299 = vmatprep.subr.mxu0 0.0
        %1300 = vmatpush1.msra.mxu0 %v1280
        %1301 = vmatprep.subr.mxu0 0.0
        %1302 = vmatpush1.msra.mxu0 %v1281
        %1303 = vmatprep.subr.mxu0 0.0
        %1304 = vmatpush1.msra.mxu0 %v1282
        %1305 = vmatprep.subr.mxu0 0.0
        %1306 = vmatpush1.msra.mxu0 %v1283
        %1307 = vmatprep.subr.mxu0 0.0
        %1308 = vmatpush1.msra.mxu0 %v1284
        %1309 = vmatprep.subr.mxu0 0.0
        %1310 = vmatpush1.msra.mxu0 %v1285
        %1311 = vmatprep.subr.mxu0 0.0
        %1312 = vmatpush1.msra.mxu0 %v1286
        %1313 = vmatprep.subr.mxu0 0.0
        %1314 = vmatpush1.msra.mxu0 %v1287
        %1315 = vmatprep.subr.mxu0 0.0
        %1316 = vmatpush1.msra.mxu0 %v1288
        %1317 = vmatprep.subr.mxu0 0.0
        %1318 = vmatpush1.msra.mxu0 %v1289
        %1319 = vmatprep.subr.mxu0 0.0
        %1320 = vmatpush1.msra.mxu0 %v1290
        %1321 = vmatprep.subr.mxu0 0.0
        %1322 = vmatpush1.msra.mxu0 %v1291
        %1323 = vmatprep.subr.mxu0 0.0
        %1324 = vmatpush1.msra.mxu0 %v1292
        %1325 = vmatprep.subr.mxu0 0.0
        %1326 = vmatpush1.msra.mxu0 %v1293
        %1327 = vmatprep.subr.mxu0 0.0
        %1328 = vmatpush1.msra.mxu0 %v1294
        %1329 = vmatprep.subr.mxu0 0.0
        %1330 = vmatpush1.msra.mxu0 0.0
        %1331 = vmatprep.subr.mxu0 0.0
        %1332 = vmatpush1.msra.mxu0 0.0
        %1333 = vmatprep.subr.mxu0 0.0
        %1334 = vmatpush1.msra.mxu0 0.0
        %1335 = vmatprep.subr.mxu0 0.0
        %1336 = vmatpush1.msra.mxu0 0.0
        %1337 = vmatprep.subr.mxu0 0.0
        %1338 = vmatpush1.msra.mxu0 0.0
        %1339 = vmatprep.subr.mxu0 0.0
        %1340 = vmatpush1.msra.mxu0 0.0
        %1341 = vmatprep.subr.mxu0 0.0
        %1342 = vmatpush1.msra.mxu0 0.0
        %1343 = vmatprep.subr.mxu0 0.0
        %1344 = vmatpush1.msra.mxu0 0.0
        %1345 = vmatprep.subr.mxu0 0.0
        %1346 = vmatpush1.msra.mxu0 0.0
        %1347 = vmatprep.subr.mxu0 0.0
        %1348 = vmatpush1.msra.mxu0 0.0
        %1349 = vmatprep.subr.mxu0 0.0
        %1350 = vmatpush1.msra.mxu0 0.0
        %1351 = vmatprep.subr.mxu0 0.0
        %1352 = vmatpush1.msra.mxu0 0.0
        %1353 = vmatprep.subr.mxu0 0.0
        %1354 = vmatpush1.msra.mxu0 0.0
        %1355 = vmatprep.subr.mxu0 0.0
        %1356 = vmatpush1.msra.mxu0 0.0
        %1357 = vmatprep.subr.mxu0 0.0
        %1358 = vmatpush1.msra.mxu0 0.0
        %1359 = vmatprep.subr.mxu0 0.0
        %1360 = vmatpush1.msra.mxu0 0.0
        %1361 = vmatprep.mubr.f32.mxu0 0.0
        %1362 = vmatmul.mubr.f32.gmra.mrb[0].mxu0 %v1295
        %v1363 = vpop.f32.mrb[0].mxu0
        %v1364 = vadd.f32 0.0, %v1363
        %v1365 = vpop.f32.mrb[0].mxu0
        %1366 = vdwg.mxu0
        %v1367 = vadd.f32 %v1275, %v1364
        %s1368 = scalar_lea.vmem [#allocation9], 384
        %v1369 = vld [vmem:[%s1368] sm:$0xff]
        %v1370 = vld [vmem:[%s1368 + $0x8] sm:$0xff]
        %v1371 = vld [vmem:[%s1368 + $0x10] sm:$0xff]
        %v1372 = vld [vmem:[%s1368 + $0x18] sm:$0xff]
        %v1373 = vld [vmem:[%s1368 + $0x20] sm:$0xff]
        %v1374 = vld [vmem:[%s1368 + $0x28] sm:$0xff]
        %v1375 = vld [vmem:[%s1368 + $0x30] sm:$0xff]
        %v1376 = vld [vmem:[%s1368 + $0x38] sm:$0xff]
        %v1377 = vld [vmem:[%s1368 + $0x40] sm:$0xff]
        %v1378 = vld [vmem:[%s1368 + $0x48] sm:$0xff]
        %v1379 = vld [vmem:[%s1368 + $0x50] sm:$0xff]
        %v1380 = vld [vmem:[%s1368 + $0x58] sm:$0xff]
        %v1381 = vld [vmem:[%s1368 + $0x60] sm:$0xff]
        %v1382 = vld [vmem:[%s1368 + $0x68] sm:$0xff]
        %v1383 = vld [vmem:[%s1368 + $0x70] sm:$0xff]
        %v1384 = vld [vmem:[%s1368 + $0x78] sm:$0xff]
        %v1385 = vrot.slane %v1101, 3
        %1387 = vmatprep.subr.mxu0 0.0
        %1388 = vmatpush1.msra.mxu0 %v1369
        %1389 = vmatprep.subr.mxu0 0.0
        %1390 = vmatpush1.msra.mxu0 %v1370
        %1391 = vmatprep.subr.mxu0 0.0
        %1392 = vmatpush1.msra.mxu0 %v1371
        %1393 = vmatprep.subr.mxu0 0.0
        %1394 = vmatpush1.msra.mxu0 %v1372
        %1395 = vmatprep.subr.mxu0 0.0
        %1396 = vmatpush1.msra.mxu0 %v1373
        %1397 = vmatprep.subr.mxu0 0.0
        %1398 = vmatpush1.msra.mxu0 %v1374
        %1399 = vmatprep.subr.mxu0 0.0
        %1400 = vmatpush1.msra.mxu0 %v1375
        %1401 = vmatprep.subr.mxu0 0.0
        %1402 = vmatpush1.msra.mxu0 %v1376
        %1403 = vmatprep.subr.mxu0 0.0
        %1404 = vmatpush1.msra.mxu0 %v1377
        %1405 = vmatprep.subr.mxu0 0.0
        %1406 = vmatpush1.msra.mxu0 %v1378
        %1407 = vmatprep.subr.mxu0 0.0
        %1408 = vmatpush1.msra.mxu0 %v1379
        %1409 = vmatprep.subr.mxu0 0.0
        %1410 = vmatpush1.msra.mxu0 %v1380
        %1411 = vmatprep.subr.mxu0 0.0
        %1412 = vmatpush1.msra.mxu0 %v1381
        %1413 = vmatprep.subr.mxu0 0.0
        %1414 = vmatpush1.msra.mxu0 %v1382
        %1415 = vmatprep.subr.mxu0 0.0
        %1416 = vmatpush1.msra.mxu0 %v1383
        %1417 = vmatprep.subr.mxu0 0.0
        %1418 = vmatpush1.msra.mxu0 %v1384
        %1419 = vmatprep.subr.mxu0 0.0
        %1420 = vmatpush1.msra.mxu0 0.0
        %1421 = vmatprep.subr.mxu0 0.0
        %1422 = vmatpush1.msra.mxu0 0.0
        %1423 = vmatprep.subr.mxu0 0.0
        %1424 = vmatpush1.msra.mxu0 0.0
        %1425 = vmatprep.subr.mxu0 0.0
        %1426 = vmatpush1.msra.mxu0 0.0
        %1427 = vmatprep.subr.mxu0 0.0
        %1428 = vmatpush1.msra.mxu0 0.0
        %1429 = vmatprep.subr.mxu0 0.0
        %1430 = vmatpush1.msra.mxu0 0.0
        %1431 = vmatprep.subr.mxu0 0.0
        %1432 = vmatpush1.msra.mxu0 0.0
        %1433 = vmatprep.subr.mxu0 0.0
        %1434 = vmatpush1.msra.mxu0 0.0
        %1435 = vmatprep.subr.mxu0 0.0
        %1436 = vmatpush1.msra.mxu0 0.0
        %1437 = vmatprep.subr.mxu0 0.0
        %1438 = vmatpush1.msra.mxu0 0.0
        %1439 = vmatprep.subr.mxu0 0.0
        %1440 = vmatpush1.msra.mxu0 0.0
        %1441 = vmatprep.subr.mxu0 0.0
        %1442 = vmatpush1.msra.mxu0 0.0
        %1443 = vmatprep.subr.mxu0 0.0
        %1444 = vmatpush1.msra.mxu0 0.0
        %1445 = vmatprep.subr.mxu0 0.0
        %1446 = vmatpush1.msra.mxu0 0.0
        %1447 = vmatprep.subr.mxu0 0.0
        %1448 = vmatpush1.msra.mxu0 0.0
        %1449 = vmatprep.subr.mxu0 0.0
        %1450 = vmatpush1.msra.mxu0 0.0
        %1451 = vmatprep.mubr.f32.mxu0 0.0
        %1452 = vmatmul.mubr.f32.gmra.mrb[0].mxu0 %v1385
        %v1453 = vpop.f32.mrb[0].mxu0
        %v1454 = vadd.f32 0.0, %v1453
        %v1455 = vpop.f32.mrb[0].mxu0
        %1456 = vdwg.mxu0
        %v1457 = vadd.f32 %v1367, %v1454
        %s1458 = scalar_lea.vmem [#allocation9], 512
        %v1459 = vld [vmem:[%s1458] sm:$0xff]
        %v1460 = vld [vmem:[%s1458 + $0x8] sm:$0xff]
        %v1461 = vld [vmem:[%s1458 + $0x10] sm:$0xff]
        %v1462 = vld [vmem:[%s1458 + $0x18] sm:$0xff]
        %v1463 = vld [vmem:[%s1458 + $0x20] sm:$0xff]
        %v1464 = vld [vmem:[%s1458 + $0x28] sm:$0xff]
        %v1465 = vld [vmem:[%s1458 + $0x30] sm:$0xff]
        %v1466 = vld [vmem:[%s1458 + $0x38] sm:$0xff]
        %v1467 = vld [vmem:[%s1458 + $0x40] sm:$0xff]
        %v1468 = vld [vmem:[%s1458 + $0x48] sm:$0xff]
        %v1469 = vld [vmem:[%s1458 + $0x50] sm:$0xff]
        %v1470 = vld [vmem:[%s1458 + $0x58] sm:$0xff]
        %v1471 = vld [vmem:[%s1458 + $0x60] sm:$0xff]
        %v1472 = vld [vmem:[%s1458 + $0x68] sm:$0xff]
        %v1473 = vld [vmem:[%s1458 + $0x70] sm:$0xff]
        %v1474 = vld [vmem:[%s1458 + $0x78] sm:$0xff]
        %v1475 = vrot.slane %v1101, 4
        %1477 = vmatprep.subr.mxu0 0.0
        %1478 = vmatpush1.msra.mxu0 %v1459
        %1479 = vmatprep.subr.mxu0 0.0
        %1480 = vmatpush1.msra.mxu0 %v1460
        %1481 = vmatprep.subr.mxu0 0.0
        %1482 = vmatpush1.msra.mxu0 %v1461
        %1483 = vmatprep.subr.mxu0 0.0
        %1484 = vmatpush1.msra.mxu0 %v1462
        %1485 = vmatprep.subr.mxu0 0.0
        %1486 = vmatpush1.msra.mxu0 %v1463
        %1487 = vmatprep.subr.mxu0 0.0
        %1488 = vmatpush1.msra.mxu0 %v1464
        %1489 = vmatprep.subr.mxu0 0.0
        %1490 = vmatpush1.msra.mxu0 %v1465
        %1491 = vmatprep.subr.mxu0 0.0
        %1492 = vmatpush1.msra.mxu0 %v1466
        %1493 = vmatprep.subr.mxu0 0.0
        %1494 = vmatpush1.msra.mxu0 %v1467
        %1495 = vmatprep.subr.mxu0 0.0
        %1496 = vmatpush1.msra.mxu0 %v1468
        %1497 = vmatprep.subr.mxu0 0.0
        %1498 = vmatpush1.msra.mxu0 %v1469
        %1499 = vmatprep.subr.mxu0 0.0
        %1500 = vmatpush1.msra.mxu0 %v1470
        %1501 = vmatprep.subr.mxu0 0.0
        %1502 = vmatpush1.msra.mxu0 %v1471
        %1503 = vmatprep.subr.mxu0 0.0
        %1504 = vmatpush1.msra.mxu0 %v1472
        %1505 = vmatprep.subr.mxu0 0.0
        %1506 = vmatpush1.msra.mxu0 %v1473
        %1507 = vmatprep.subr.mxu0 0.0
        %1508 = vmatpush1.msra.mxu0 %v1474
        %1509 = vmatprep.subr.mxu0 0.0
        %1510 = vmatpush1.msra.mxu0 0.0
        %1511 = vmatprep.subr.mxu0 0.0
        %1512 = vmatpush1.msra.mxu0 0.0
        %1513 = vmatprep.subr.mxu0 0.0
        %1514 = vmatpush1.msra.mxu0 0.0
        %1515 = vmatprep.subr.mxu0 0.0
        %1516 = vmatpush1.msra.mxu0 0.0
        %1517 = vmatprep.subr.mxu0 0.0
        %1518 = vmatpush1.msra.mxu0 0.0
        %1519 = vmatprep.subr.mxu0 0.0
        %1520 = vmatpush1.msra.mxu0 0.0
        %1521 = vmatprep.subr.mxu0 0.0
        %1522 = vmatpush1.msra.mxu0 0.0
        %1523 = vmatprep.subr.mxu0 0.0
        %1524 = vmatpush1.msra.mxu0 0.0
        %1525 = vmatprep.subr.mxu0 0.0
        %1526 = vmatpush1.msra.mxu0 0.0
        %1527 = vmatprep.subr.mxu0 0.0
        %1528 = vmatpush1.msra.mxu0 0.0
        %1529 = vmatprep.subr.mxu0 0.0
        %1530 = vmatpush1.msra.mxu0 0.0
        %1531 = vmatprep.subr.mxu0 0.0
        %1532 = vmatpush1.msra.mxu0 0.0
        %1533 = vmatprep.subr.mxu0 0.0
        %1534 = vmatpush1.msra.mxu0 0.0
        %1535 = vmatprep.subr.mxu0 0.0
        %1536 = vmatpush1.msra.mxu0 0.0
        %1537 = vmatprep.subr.mxu0 0.0
        %1538 = vmatpush1.msra.mxu0 0.0
        %1539 = vmatprep.subr.mxu0 0.0
        %1540 = vmatpush1.msra.mxu0 0.0
        %1541 = vmatprep.mubr.f32.mxu0 0.0
        %1542 = vmatmul.mubr.f32.gmra.mrb[0].mxu0 %v1475
        %v1543 = vpop.f32.mrb[0].mxu0
        %v1544 = vadd.f32 0.0, %v1543
        %v1545 = vpop.f32.mrb[0].mxu0
        %1546 = vdwg.mxu0
        %v1547 = vadd.f32 %v1457, %v1544
        %s1548 = scalar_lea.vmem [#allocation9], 640
        %v1549 = vld [vmem:[%s1548] sm:$0xff]
        %v1550 = vld [vmem:[%s1548 + $0x8] sm:$0xff]
        %v1551 = vld [vmem:[%s1548 + $0x10] sm:$0xff]
        %v1552 = vld [vmem:[%s1548 + $0x18] sm:$0xff]
        %v1553 = vld [vmem:[%s1548 + $0x20] sm:$0xff]
        %v1554 = vld [vmem:[%s1548 + $0x28] sm:$0xff]
        %v1555 = vld [vmem:[%s1548 + $0x30] sm:$0xff]
        %v1556 = vld [vmem:[%s1548 + $0x38] sm:$0xff]
        %v1557 = vld [vmem:[%s1548 + $0x40] sm:$0xff]
        %v1558 = vld [vmem:[%s1548 + $0x48] sm:$0xff]
        %v1559 = vld [vmem:[%s1548 + $0x50] sm:$0xff]
        %v1560 = vld [vmem:[%s1548 + $0x58] sm:$0xff]
        %v1561 = vld [vmem:[%s1548 + $0x60] sm:$0xff]
        %v1562 = vld [vmem:[%s1548 + $0x68] sm:$0xff]
        %v1563 = vld [vmem:[%s1548 + $0x70] sm:$0xff]
        %v1564 = vld [vmem:[%s1548 + $0x78] sm:$0xff]
        %v1566 = vrot.slane %v1101, 5
        %v1567 = vrot.slane 0.0, 5
        %v1568 = vsel %vm1098, %v1566, %v1567
        %1570 = vmatprep.subr.mxu0 0.0
        %1571 = vmatpush1.msra.mxu0 %v1549
        %1572 = vmatprep.subr.mxu0 0.0
        %1573 = vmatpush1.msra.mxu0 %v1550
        %1574 = vmatprep.subr.mxu0 0.0
        %1575 = vmatpush1.msra.mxu0 %v1551
        %1576 = vmatprep.subr.mxu0 0.0
        %1577 = vmatpush1.msra.mxu0 %v1552
        %1578 = vmatprep.subr.mxu0 0.0
        %1579 = vmatpush1.msra.mxu0 %v1553
        %1580 = vmatprep.subr.mxu0 0.0
        %1581 = vmatpush1.msra.mxu0 %v1554
        %1582 = vmatprep.subr.mxu0 0.0
        %1583 = vmatpush1.msra.mxu0 %v1555
        %1584 = vmatprep.subr.mxu0 0.0
        %1585 = vmatpush1.msra.mxu0 %v1556
        %1586 = vmatprep.subr.mxu0 0.0
        %1587 = vmatpush1.msra.mxu0 %v1557
        %1588 = vmatprep.subr.mxu0 0.0
        %1589 = vmatpush1.msra.mxu0 %v1558
        %1590 = vmatprep.subr.mxu0 0.0
        %1591 = vmatpush1.msra.mxu0 %v1559
        %1592 = vmatprep.subr.mxu0 0.0
        %1593 = vmatpush1.msra.mxu0 %v1560
        %1594 = vmatprep.subr.mxu0 0.0
        %1595 = vmatpush1.msra.mxu0 %v1561
        %1596 = vmatprep.subr.mxu0 0.0
        %1597 = vmatpush1.msra.mxu0 %v1562
        %1598 = vmatprep.subr.mxu0 0.0
        %1599 = vmatpush1.msra.mxu0 %v1563
        %1600 = vmatprep.subr.mxu0 0.0
        %1601 = vmatpush1.msra.mxu0 %v1564
        %1602 = vmatprep.subr.mxu0 0.0
        %1603 = vmatpush1.msra.mxu0 0.0
        %1604 = vmatprep.subr.mxu0 0.0
        %1605 = vmatpush1.msra.mxu0 0.0
        %1606 = vmatprep.subr.mxu0 0.0
        %1607 = vmatpush1.msra.mxu0 0.0
        %1608 = vmatprep.subr.mxu0 0.0
        %1609 = vmatpush1.msra.mxu0 0.0
        %1610 = vmatprep.subr.mxu0 0.0
        %1611 = vmatpush1.msra.mxu0 0.0
        %1612 = vmatprep.subr.mxu0 0.0
        %1613 = vmatpush1.msra.mxu0 0.0
        %1614 = vmatprep.subr.mxu0 0.0
        %1615 = vmatpush1.msra.mxu0 0.0
        %1616 = vmatprep.subr.mxu0 0.0
        %1617 = vmatpush1.msra.mxu0 0.0
        %1618 = vmatprep.subr.mxu0 0.0
        %1619 = vmatpush1.msra.mxu0 0.0
        %1620 = vmatprep.subr.mxu0 0.0
        %1621 = vmatpush1.msra.mxu0 0.0
        %1622 = vmatprep.subr.mxu0 0.0
        %1623 = vmatpush1.msra.mxu0 0.0
        %1624 = vmatprep.subr.mxu0 0.0
        %1625 = vmatpush1.msra.mxu0 0.0
        %1626 = vmatprep.subr.mxu0 0.0
        %1627 = vmatpush1.msra.mxu0 0.0
        %1628 = vmatprep.subr.mxu0 0.0
        %1629 = vmatpush1.msra.mxu0 0.0
        %1630 = vmatprep.subr.mxu0 0.0
        %1631 = vmatpush1.msra.mxu0 0.0
        %1632 = vmatprep.subr.mxu0 0.0
        %1633 = vmatpush1.msra.mxu0 0.0
        %1634 = vmatprep.mubr.f32.mxu0 0.0
        %1635 = vmatmul.mubr.f32.gmra.mrb[0].mxu0 %v1568
        %v1636 = vpop.f32.mrb[0].mxu0
        %v1637 = vadd.f32 0.0, %v1636
        %v1638 = vpop.f32.mrb[0].mxu0
        %1639 = vdwg.mxu0
        %v1640 = vadd.f32 %v1547, %v1637
        %s1641 = scalar_lea.vmem [#allocation9], 768
        %v1642 = vld [vmem:[%s1641] sm:$0xff]
        %v1643 = vld [vmem:[%s1641 + $0x8] sm:$0xff]
        %v1644 = vld [vmem:[%s1641 + $0x10] sm:$0xff]
        %v1645 = vld [vmem:[%s1641 + $0x18] sm:$0xff]
        %v1646 = vld [vmem:[%s1641 + $0x20] sm:$0xff]
        %v1647 = vld [vmem:[%s1641 + $0x28] sm:$0xff]
        %v1648 = vld [vmem:[%s1641 + $0x30] sm:$0xff]
        %v1649 = vld [vmem:[%s1641 + $0x38] sm:$0xff]
        %v1650 = vld [vmem:[%s1641 + $0x40] sm:$0xff]
        %v1651 = vld [vmem:[%s1641 + $0x48] sm:$0xff]
        %v1652 = vld [vmem:[%s1641 + $0x50] sm:$0xff]
        %v1653 = vld [vmem:[%s1641 + $0x58] sm:$0xff]
        %v1654 = vld [vmem:[%s1641 + $0x60] sm:$0xff]
        %v1655 = vld [vmem:[%s1641 + $0x68] sm:$0xff]
        %v1656 = vld [vmem:[%s1641 + $0x70] sm:$0xff]
        %v1657 = vld [vmem:[%s1641 + $0x78] sm:$0xff]
        %vm1658 = vcmask 1041408
        %v1659 = vrot.slane %v1101, 6
        %v1660 = vrot.slane 0.0, 6
        %v1661 = vsel %vm1658, %v1659, %v1660
        %1663 = vmatprep.subr.mxu0 0.0
        %1664 = vmatpush1.msra.mxu0 %v1642
        %1665 = vmatprep.subr.mxu0 0.0
        %1666 = vmatpush1.msra.mxu0 %v1643
        %1667 = vmatprep.subr.mxu0 0.0
        %1668 = vmatpush1.msra.mxu0 %v1644
        %1669 = vmatprep.subr.mxu0 0.0
        %1670 = vmatpush1.msra.mxu0 %v1645
        %1671 = vmatprep.subr.mxu0 0.0
        %1672 = vmatpush1.msra.mxu0 %v1646
        %1673 = vmatprep.subr.mxu0 0.0
        %1674 = vmatpush1.msra.mxu0 %v1647
        %1675 = vmatprep.subr.mxu0 0.0
        %1676 = vmatpush1.msra.mxu0 %v1648
        %1677 = vmatprep.subr.mxu0 0.0
        %1678 = vmatpush1.msra.mxu0 %v1649
        %1679 = vmatprep.subr.mxu0 0.0
        %1680 = vmatpush1.msra.mxu0 %v1650
        %1681 = vmatprep.subr.mxu0 0.0
        %1682 = vmatpush1.msra.mxu0 %v1651
        %1683 = vmatprep.subr.mxu0 0.0
        %1684 = vmatpush1.msra.mxu0 %v1652
        %1685 = vmatprep.subr.mxu0 0.0
        %1686 = vmatpush1.msra.mxu0 %v1653
        %1687 = vmatprep.subr.mxu0 0.0
        %1688 = vmatpush1.msra.mxu0 %v1654
        %1689 = vmatprep.subr.mxu0 0.0
        %1690 = vmatpush1.msra.mxu0 %v1655
        %1691 = vmatprep.subr.mxu0 0.0
        %1692 = vmatpush1.msra.mxu0 %v1656
        %1693 = vmatprep.subr.mxu0 0.0
        %1694 = vmatpush1.msra.mxu0 %v1657
        %1695 = vmatprep.subr.mxu0 0.0
        %1696 = vmatpush1.msra.mxu0 0.0
        %1697 = vmatprep.subr.mxu0 0.0
        %1698 = vmatpush1.msra.mxu0 0.0
        %1699 = vmatprep.subr.mxu0 0.0
        %1700 = vmatpush1.msra.mxu0 0.0
        %1701 = vmatprep.subr.mxu0 0.0
        %1702 = vmatpush1.msra.mxu0 0.0
        %1703 = vmatprep.subr.mxu0 0.0
        %1704 = vmatpush1.msra.mxu0 0.0
        %1705 = vmatprep.subr.mxu0 0.0
        %1706 = vmatpush1.msra.mxu0 0.0
        %1707 = vmatprep.subr.mxu0 0.0
        %1708 = vmatpush1.msra.mxu0 0.0
        %1709 = vmatprep.subr.mxu0 0.0
        %1710 = vmatpush1.msra.mxu0 0.0
        %1711 = vmatprep.subr.mxu0 0.0
        %1712 = vmatpush1.msra.mxu0 0.0
        %1713 = vmatprep.subr.mxu0 0.0
        %1714 = vmatpush1.msra.mxu0 0.0
        %1715 = vmatprep.subr.mxu0 0.0
        %1716 = vmatpush1.msra.mxu0 0.0
        %1717 = vmatprep.subr.mxu0 0.0
        %1718 = vmatpush1.msra.mxu0 0.0
        %1719 = vmatprep.subr.mxu0 0.0
        %1720 = vmatpush1.msra.mxu0 0.0
        %1721 = vmatprep.subr.mxu0 0.0
        %1722 = vmatpush1.msra.mxu0 0.0
        %1723 = vmatprep.subr.mxu0 0.0
        %1724 = vmatpush1.msra.mxu0 0.0
        %1725 = vmatprep.subr.mxu0 0.0
        %1726 = vmatpush1.msra.mxu0 0.0
        %1727 = vmatprep.mubr.f32.mxu0 0.0
        %1728 = vmatmul.mubr.f32.gmra.mrb[0].mxu0 %v1661
        %v1729 = vpop.f32.mrb[0].mxu0
        %v1730 = vadd.f32 0.0, %v1729
        %v1731 = vpop.f32.mrb[0].mxu0
        %1732 = vdwg.mxu0
        %v1733 = vadd.f32 %v1640, %v1730
        %v1734 = vld [vmem:[%s7] sm:$0x1]
        %v1736 = vlaneseq
        %v1737 = vshrl.u32 %v1736, 7
        %v1738 = vsub.s32 0, %v1737
        %v1739 = vrot.slane %v1734, %v1738
        %v1741 = vadd.f32 %v1733, %v1739
        %v1742 = vld [vmem:[%s8] sm:$0x1]
        %v1743 = vld [vmem:[%s9] sm:$0x1]
        %1744 = vmatprep.subr.mxu0 0.0
        %1745 = vmatpush1.msra.mxu0 %v761
        %1746 = vmatprep.subr.mxu0 0.0
        %1747 = vmatpush1.msra.mxu0 %v762
        %1748 = vmatprep.subr.mxu0 0.0
        %1749 = vmatpush1.msra.mxu0 %v763
        %1750 = vmatprep.subr.mxu0 0.0
        %1751 = vmatpush1.msra.mxu0 %v764
        %1752 = vmatprep.subr.mxu0 0.0
        %1753 = vmatpush1.msra.mxu0 %v765
        %1754 = vmatprep.subr.mxu0 0.0
        %1755 = vmatpush1.msra.mxu0 %v766
        %1756 = vmatprep.subr.mxu0 0.0
        %1757 = vmatpush1.msra.mxu0 %v767
        %1758 = vmatprep.subr.mxu0 0.0
        %1759 = vmatpush1.msra.mxu0 %v768
        %1760 = vmatprep.subr.mxu0 0.0
        %1761 = vmatpush1.msra.mxu0 %v769
        %1762 = vmatprep.subr.mxu0 0.0
        %1763 = vmatpush1.msra.mxu0 %v770
        %1764 = vmatprep.subr.mxu0 0.0
        %1765 = vmatpush1.msra.mxu0 %v771
        %1766 = vmatprep.subr.mxu0 0.0
        %1767 = vmatpush1.msra.mxu0 %v772
        %1768 = vmatprep.subr.mxu0 0.0
        %1769 = vmatpush1.msra.mxu0 %v773
        %1770 = vmatprep.subr.mxu0 0.0
        %1771 = vmatpush1.msra.mxu0 %v774
        %1772 = vmatprep.subr.mxu0 0.0
        %1773 = vmatpush1.msra.mxu0 %v775
        %1774 = vmatprep.subr.mxu0 0.0
        %1775 = vmatpush1.msra.mxu0 %v776
        %1776 = vmatprep.subr.mxu0 0.0
        %1777 = vmatpush1.msra.mxu0 0.0
        %1778 = vmatprep.subr.mxu0 0.0
        %1779 = vmatpush1.msra.mxu0 0.0
        %1780 = vmatprep.subr.mxu0 0.0
        %1781 = vmatpush1.msra.mxu0 0.0
        %1782 = vmatprep.subr.mxu0 0.0
        %1783 = vmatpush1.msra.mxu0 0.0
        %1784 = vmatprep.subr.mxu0 0.0
        %1785 = vmatpush1.msra.mxu0 0.0
        %1786 = vmatprep.subr.mxu0 0.0
        %1787 = vmatpush1.msra.mxu0 0.0
        %1788 = vmatprep.subr.mxu0 0.0
        %1789 = vmatpush1.msra.mxu0 0.0
        %1790 = vmatprep.subr.mxu0 0.0
        %1791 = vmatpush1.msra.mxu0 0.0
        %1792 = vmatprep.subr.mxu0 0.0
        %1793 = vmatpush1.msra.mxu0 0.0
        %1794 = vmatprep.subr.mxu0 0.0
        %1795 = vmatpush1.msra.mxu0 0.0
        %1796 = vmatprep.subr.mxu0 0.0
        %1797 = vmatpush1.msra.mxu0 0.0
        %1798 = vmatprep.subr.mxu0 0.0
        %1799 = vmatpush1.msra.mxu0 0.0
        %1800 = vmatprep.subr.mxu0 0.0
        %1801 = vmatpush1.msra.mxu0 0.0
        %1802 = vmatprep.subr.mxu0 0.0
        %1803 = vmatpush1.msra.mxu0 0.0
        %1804 = vmatprep.subr.mxu0 0.0
        %1805 = vmatpush1.msra.mxu0 0.0
        %1806 = vmatprep.subr.mxu0 0.0
        %1807 = vmatpush1.msra.mxu0 0.0
        %1808 = vmatprep.mubr.f32.mxu0 0.0
        %1809 = vmatmul.mubr.f32.gmra.mrb[0].mxu0 %v1741
        %v1810 = vpop.f32.mrb[0].mxu0
        %v1811 = vadd.f32 0.0, %v1810
        %v1812 = vpop.f32.mrb[0].mxu0
        %1813 = vdwg.mxu0
        %v1814 = vsub.f32 %v1741, %v1811
        %v1815 = vmul.f32 %v1814, %v1814
        %1816 = vmatprep.subr.mxu0 0.0
        %1817 = vmatpush1.msra.mxu0 %v761
        %1818 = vmatprep.subr.mxu0 0.0
        %1819 = vmatpush1.msra.mxu0 %v762
        %1820 = vmatprep.subr.mxu0 0.0
        %1821 = vmatpush1.msra.mxu0 %v763
        %1822 = vmatprep.subr.mxu0 0.0
        %1823 = vmatpush1.msra.mxu0 %v764
        %1824 = vmatprep.subr.mxu0 0.0
        %1825 = vmatpush1.msra.mxu0 %v765
        %1826 = vmatprep.subr.mxu0 0.0
        %1827 = vmatpush1.msra.mxu0 %v766
        %1828 = vmatprep.subr.mxu0 0.0
        %1829 = vmatpush1.msra.mxu0 %v767
        %1830 = vmatprep.subr.mxu0 0.0
        %1831 = vmatpush1.msra.mxu0 %v768
        %1832 = vmatprep.subr.mxu0 0.0
        %1833 = vmatpush1.msra.mxu0 %v769
        %1834 = vmatprep.subr.mxu0 0.0
        %1835 = vmatpush1.msra.mxu0 %v770
        %1836 = vmatprep.subr.mxu0 0.0
        %1837 = vmatpush1.msra.mxu0 %v771
        %1838 = vmatprep.subr.mxu0 0.0
        %1839 = vmatpush1.msra.mxu0 %v772
        %1840 = vmatprep.subr.mxu0 0.0
        %1841 = vmatpush1.msra.mxu0 %v773
        %1842 = vmatprep.subr.mxu0 0.0
        %1843 = vmatpush1.msra.mxu0 %v774
        %1844 = vmatprep.subr.mxu0 0.0
        %1845 = vmatpush1.msra.mxu0 %v775
        %1846 = vmatprep.subr.mxu0 0.0
        %1847 = vmatpush1.msra.mxu0 %v776
        %1848 = vmatprep.subr.mxu0 0.0
        %1849 = vmatpush1.msra.mxu0 0.0
        %1850 = vmatprep.subr.mxu0 0.0
        %1851 = vmatpush1.msra.mxu0 0.0
        %1852 = vmatprep.subr.mxu0 0.0
        %1853 = vmatpush1.msra.mxu0 0.0
        %1854 = vmatprep.subr.mxu0 0.0
        %1855 = vmatpush1.msra.mxu0 0.0
        %1856 = vmatprep.subr.mxu0 0.0
        %1857 = vmatpush1.msra.mxu0 0.0
        %1858 = vmatprep.subr.mxu0 0.0
        %1859 = vmatpush1.msra.mxu0 0.0
        %1860 = vmatprep.subr.mxu0 0.0
        %1861 = vmatpush1.msra.mxu0 0.0
        %1862 = vmatprep.subr.mxu0 0.0
        %1863 = vmatpush1.msra.mxu0 0.0
        %1864 = vmatprep.subr.mxu0 0.0
        %1865 = vmatpush1.msra.mxu0 0.0
        %1866 = vmatprep.subr.mxu0 0.0
        %1867 = vmatpush1.msra.mxu0 0.0
        %1868 = vmatprep.subr.mxu0 0.0
        %1869 = vmatpush1.msra.mxu0 0.0
        %1870 = vmatprep.subr.mxu0 0.0
        %1871 = vmatpush1.msra.mxu0 0.0
        %1872 = vmatprep.subr.mxu0 0.0
        %1873 = vmatpush1.msra.mxu0 0.0
        %1874 = vmatprep.subr.mxu0 0.0
        %1875 = vmatpush1.msra.mxu0 0.0
        %1876 = vmatprep.subr.mxu0 0.0
        %1877 = vmatpush1.msra.mxu0 0.0
        %1878 = vmatprep.subr.mxu0 0.0
        %1879 = vmatpush1.msra.mxu0 0.0
        %1880 = vmatprep.mubr.f32.mxu0 0.0
        %1881 = vmatmul.mubr.f32.gmra.mrb[0].mxu0 %v1815
        %v1882 = vpop.f32.mrb[0].mxu0
        %v1883 = vadd.f32 1e-06, %v1882
        %v1884 = vpop.f32.mrb[0].mxu0
        %1885 = vdwg.mxu0
        %v1886 = vrsqrt.pop %v1883
        %v1887 = vmul.f32 %v1814, %v1886
        %v1889 = vlaneseq
        %v1890 = vshrl.u32 %v1889, 7
        %v1891 = vsub.s32 0, %v1890
        %v1892 = vrot.slane %v1742, %v1891
        %v1894 = vmul.f32 %v1887, %v1892
        %v1896 = vlaneseq
        %v1897 = vshrl.u32 %v1896, 7
        %v1898 = vsub.s32 0, %v1897
        %v1899 = vrot.slane %v1743, %v1898
        %v1901 = vadd.f32 %v1894, %v1899
        %v1902 = vpack.c.bf16 %v1901, %v1901
        %v1903 = vld [vmem:[%s10] sm:$0xff]
        %v1904 = vld [vmem:[%s10 + $0x8] sm:$0xff]
        %v1905 = vld [vmem:[%s10 + $0x10] sm:$0xff]
        %v1906 = vld [vmem:[%s10 + $0x18] sm:$0xff]
        %v1907 = vld [vmem:[%s10 + $0x20] sm:$0xff]
        %v1908 = vld [vmem:[%s10 + $0x28] sm:$0xff]
        %v1909 = vld [vmem:[%s10 + $0x30] sm:$0xff]
        %v1910 = vld [vmem:[%s10 + $0x38] sm:$0xff]
        %v1911 = vld [vmem:[%s10 + $0x40] sm:$0xff]
        %v1912 = vld [vmem:[%s10 + $0x48] sm:$0xff]
        %v1913 = vld [vmem:[%s10 + $0x50] sm:$0xff]
        %v1914 = vld [vmem:[%s10 + $0x58] sm:$0xff]
        %v1915 = vld [vmem:[%s10 + $0x60] sm:$0xff]
        %v1916 = vld [vmem:[%s10 + $0x68] sm:$0xff]
        %v1917 = vld [vmem:[%s10 + $0x70] sm:$0xff]
        %v1918 = vld [vmem:[%s10 + $0x78] sm:$0xff]
        %v1919 = vld [vmem:[%s10 + $0x80] sm:$0xff]
        %v1920 = vld [vmem:[%s10 + $0x88] sm:$0xff]
        %v1921 = vld [vmem:[%s10 + $0x90] sm:$0xff]
        %v1922 = vld [vmem:[%s10 + $0x98] sm:$0xff]
        %v1923 = vld [vmem:[%s10 + $0xa0] sm:$0xff]
        %v1924 = vld [vmem:[%s10 + $0xa8] sm:$0xff]
        %v1925 = vld [vmem:[%s10 + $0xb0] sm:$0xff]
        %v1926 = vld [vmem:[%s10 + $0xb8] sm:$0xff]
        %v1927 = vld [vmem:[%s10 + $0xc0] sm:$0xff]
        %v1928 = vld [vmem:[%s10 + $0xc8] sm:$0xff]
        %v1929 = vld [vmem:[%s10 + $0xd0] sm:$0xff]
        %v1930 = vld [vmem:[%s10 + $0xd8] sm:$0xff]
        %v1931 = vld [vmem:[%s10 + $0xe0] sm:$0xff]
        %v1932 = vld [vmem:[%s10 + $0xe8] sm:$0xff]
        %v1933 = vld [vmem:[%s10 + $0xf0] sm:$0xff]
        %v1934 = vld [vmem:[%s10 + $0xf8] sm:$0xff]
        %v1935 = vld [vmem:[%s11] sm:$0xf]
        %v1937 = vlaneseq
        %v1938 = vshrl.u32 %v1937, 7
        %v1939 = vsub.s32 0, %v1938
        %v1940 = vrot.slane %v1935, %v1939
        %v1941 = vlaneseq
        %v1942 = vshrl.u32 %v1941, 7
        %v1943 = vsub.s32 1, %v1942
        %v1944 = vrot.slane %v1935, %v1943
        %v1945 = vlaneseq
        %v1946 = vshrl.u32 %v1945, 7
        %v1947 = vsub.s32 2, %v1946
        %v1948 = vrot.slane %v1935, %v1947
        %v1949 = vlaneseq
        %v1950 = vshrl.u32 %v1949, 7
        %v1951 = vsub.s32 3, %v1950
        %v1952 = vrot.slane %v1935, %v1951
        %v1989 = vunpack.c.l.b16 %v1903
        %v1990 = vunpack.c.h.b16 %v1903
        %v1991 = vunpack.c.l.b16 %v1904
        %v1992 = vunpack.c.h.b16 %v1904
        %v1993 = vunpack.c.l.b16 %v1905
        %v1994 = vunpack.c.h.b16 %v1905
        %v1995 = vunpack.c.l.b16 %v1906
        %v1996 = vunpack.c.h.b16 %v1906
        %v1997 = vunpack.c.l.b16 %v1907
        %v1998 = vunpack.c.h.b16 %v1907
        %v1999 = vunpack.c.l.b16 %v1908
        %v2000 = vunpack.c.h.b16 %v1908
        %v2001 = vunpack.c.l.b16 %v1909
        %v2002 = vunpack.c.h.b16 %v1909
        %v2003 = vunpack.c.l.b16 %v1910
        %v2004 = vunpack.c.h.b16 %v1910
        %v2005 = vunpack.c.l.b16 %v1911
        %v2006 = vunpack.c.h.b16 %v1911
        %v2007 = vunpack.c.l.b16 %v1912
        %v2008 = vunpack.c.h.b16 %v1912
        %v2009 = vunpack.c.l.b16 %v1913
        %v2010 = vunpack.c.h.b16 %v1913
        %v2011 = vunpack.c.l.b16 %v1914
        %v2012 = vunpack.c.h.b16 %v1914
        %v2013 = vunpack.c.l.b16 %v1915
        %v2014 = vunpack.c.h.b16 %v1915
        %v2015 = vunpack.c.l.b16 %v1916
        %v2016 = vunpack.c.h.b16 %v1916
        %v2017 = vunpack.c.l.b16 %v1917
        %v2018 = vunpack.c.h.b16 %v1917
        %v2019 = vunpack.c.l.b16 %v1918
        %v2020 = vunpack.c.h.b16 %v1918
        %v2021 = vunpack.c.l.b16 %v1919
        %v2022 = vunpack.c.h.b16 %v1919
        %v2023 = vunpack.c.l.b16 %v1920
        %v2024 = vunpack.c.h.b16 %v1920
        %v2025 = vunpack.c.l.b16 %v1921
        %v2026 = vunpack.c.h.b16 %v1921
        %v2027 = vunpack.c.l.b16 %v1922
        %v2028 = vunpack.c.h.b16 %v1922
        %v2029 = vunpack.c.l.b16 %v1923
        %v2030 = vunpack.c.h.b16 %v1923
        %v2031 = vunpack.c.l.b16 %v1924
        %v2032 = vunpack.c.h.b16 %v1924
        %v2033 = vunpack.c.l.b16 %v1925
        %v2034 = vunpack.c.h.b16 %v1925
        %v2035 = vunpack.c.l.b16 %v1926
        %v2036 = vunpack.c.h.b16 %v1926
        %v2037 = vunpack.c.l.b16 %v1927
        %v2038 = vunpack.c.h.b16 %v1927
        %v2039 = vunpack.c.l.b16 %v1928
        %v2040 = vunpack.c.h.b16 %v1928
        %v2041 = vunpack.c.l.b16 %v1929
        %v2042 = vunpack.c.h.b16 %v1929
        %v2043 = vunpack.c.l.b16 %v1930
        %v2044 = vunpack.c.h.b16 %v1930
        %v2045 = vunpack.c.l.b16 %v1931
        %v2046 = vunpack.c.h.b16 %v1931
        %v2047 = vunpack.c.l.b16 %v1932
        %v2048 = vunpack.c.h.b16 %v1932
        %v2049 = vunpack.c.l.b16 %v1933
        %v2050 = vunpack.c.h.b16 %v1933
        %v2051 = vunpack.c.l.b16 %v1934
        %v2052 = vunpack.c.h.b16 %v1934
        %v2053 = vpack.c.b16 %v1993, %v1989
        %v2054 = vpack.c.b16 %v1994, %v1990
        %v2055 = vpack.c.b16 %v1995, %v1991
        %v2056 = vpack.c.b16 %v1996, %v1992
        %v2057 = vpack.c.b16 %v2001, %v1997
        %v2058 = vpack.c.b16 %v2002, %v1998
        %v2059 = vpack.c.b16 %v2003, %v1999
        %v2060 = vpack.c.b16 %v2004, %v2000
        %v2061 = vpack.c.b16 %v2009, %v2005
        %v2062 = vpack.c.b16 %v2010, %v2006
        %v2063 = vpack.c.b16 %v2011, %v2007
        %v2064 = vpack.c.b16 %v2012, %v2008
        %v2065 = vpack.c.b16 %v2017, %v2013
        %v2066 = vpack.c.b16 %v2018, %v2014
        %v2067 = vpack.c.b16 %v2019, %v2015
        %v2068 = vpack.c.b16 %v2020, %v2016
        %v2069 = vpack.c.b16 %v2025, %v2021
        %v2070 = vpack.c.b16 %v2026, %v2022
        %v2071 = vpack.c.b16 %v2027, %v2023
        %v2072 = vpack.c.b16 %v2028, %v2024
        %v2073 = vpack.c.b16 %v2033, %v2029
        %v2074 = vpack.c.b16 %v2034, %v2030
        %v2075 = vpack.c.b16 %v2035, %v2031
        %v2076 = vpack.c.b16 %v2036, %v2032
        %v2077 = vpack.c.b16 %v2041, %v2037
        %v2078 = vpack.c.b16 %v2042, %v2038
        %v2079 = vpack.c.b16 %v2043, %v2039
        %v2080 = vpack.c.b16 %v2044, %v2040
        %v2081 = vpack.c.b16 %v2049, %v2045
        %v2082 = vpack.c.b16 %v2050, %v2046
        %v2083 = vpack.c.b16 %v2051, %v2047
        %v2084 = vpack.c.b16 %v2052, %v2048
        %2117 = vmatprep.subr.bf16.mxu0 %v2054
        %2118 = vmatpush1.bf16.msra.mxu0 %v2053
        %2119 = vmatprep.subr.bf16.mxu0 %v2058
        %2120 = vmatpush1.bf16.msra.mxu0 %v2057
        %2121 = vmatprep.subr.bf16.mxu0 %v2062
        %2122 = vmatpush1.bf16.msra.mxu0 %v2061
        %2123 = vmatprep.subr.bf16.mxu0 %v2066
        %2124 = vmatpush1.bf16.msra.mxu0 %v2065
        %2125 = vmatprep.subr.bf16.mxu0 %v2070
        %2126 = vmatpush1.bf16.msra.mxu0 %v2069
        %2127 = vmatprep.subr.bf16.mxu0 %v2074
        %2128 = vmatpush1.bf16.msra.mxu0 %v2073
        %2129 = vmatprep.subr.bf16.mxu0 %v2078
        %2130 = vmatpush1.bf16.msra.mxu0 %v2077
        %2131 = vmatprep.subr.bf16.mxu0 %v2082
        %2132 = vmatpush1.bf16.msra.mxu0 %v2081
        %2133 = vmatprep.subr.bf16.mxu0 0
        %2134 = vmatpush1.bf16.msra.mxu0 0
        %2135 = vmatprep.subr.bf16.mxu0 0
        %2136 = vmatpush1.bf16.msra.mxu0 0
        %2137 = vmatprep.subr.bf16.mxu0 0
        %2138 = vmatpush1.bf16.msra.mxu0 0
        %2139 = vmatprep.subr.bf16.mxu0 0
        %2140 = vmatpush1.bf16.msra.mxu0 0
        %2141 = vmatprep.subr.bf16.mxu0 0
        %2142 = vmatpush1.bf16.msra.mxu0 0
        %2143 = vmatprep.subr.bf16.mxu0 0
        %2144 = vmatpush1.bf16.msra.mxu0 0
        %2145 = vmatprep.subr.bf16.mxu0 0
        %2146 = vmatpush1.bf16.msra.mxu0 0
        %2147 = vmatprep.subr.bf16.mxu0 0
        %2148 = vmatpush1.bf16.msra.mxu0 0
        %2149 = vmatprep.mubr.bf16.mxu0 0
        %2150 = vmatmul.mubr.bf16.gmra.mrb[0].mxu0 %v1902
        %v2151 = vpop.f32.mrb[0].mxu0
        %v2152 = vadd.f32 %v1940, %v2151
        %v2153 = vpop.f32.mrb[0].mxu0
        %v2154 = vadd.f32 %v1944, %v2153
        %v2155 = vpop.f32.mrb[0].mxu0
        %v2156 = vpop.f32.mrb[0].mxu0
        %2157 = vdwg.mxu0
        %2158 = vmatprep.subr.bf16.mxu0 %v2056
        %2159 = vmatpush1.bf16.msra.mxu0 %v2055
        %2160 = vmatprep.subr.bf16.mxu0 %v2060
        %2161 = vmatpush1.bf16.msra.mxu0 %v2059
        %2162 = vmatprep.subr.bf16.mxu0 %v2064
        %2163 = vmatpush1.bf16.msra.mxu0 %v2063
        %2164 = vmatprep.subr.bf16.mxu0 %v2068
        %2165 = vmatpush1.bf16.msra.mxu0 %v2067
        %2166 = vmatprep.subr.bf16.mxu0 %v2072
        %2167 = vmatpush1.bf16.msra.mxu0 %v2071
        %2168 = vmatprep.subr.bf16.mxu0 %v2076
        %2169 = vmatpush1.bf16.msra.mxu0 %v2075
        %2170 = vmatprep.subr.bf16.mxu0 %v2080
        %2171 = vmatpush1.bf16.msra.mxu0 %v2079
        %2172 = vmatprep.subr.bf16.mxu0 %v2084
        %2173 = vmatpush1.bf16.msra.mxu0 %v2083
        %2174 = vmatprep.subr.bf16.mxu0 0
        %2175 = vmatpush1.bf16.msra.mxu0 0
        %2176 = vmatprep.subr.bf16.mxu0 0
        %2177 = vmatpush1.bf16.msra.mxu0 0
        %2178 = vmatprep.subr.bf16.mxu0 0
        %2179 = vmatpush1.bf16.msra.mxu0 0
        %2180 = vmatprep.subr.bf16.mxu0 0
        %2181 = vmatpush1.bf16.msra.mxu0 0
        %2182 = vmatprep.subr.bf16.mxu0 0
        %2183 = vmatpush1.bf16.msra.mxu0 0
        %2184 = vmatprep.subr.bf16.mxu0 0
        %2185 = vmatpush1.bf16.msra.mxu0 0
        %2186 = vmatprep.subr.bf16.mxu0 0
        %2187 = vmatpush1.bf16.msra.mxu0 0
        %2188 = vmatprep.subr.bf16.mxu0 0
        %2189 = vmatpush1.bf16.msra.mxu0 0
        %2190 = vmatprep.mubr.bf16.mxu0 0
        %2191 = vmatmul.mubr.bf16.gmra.mrb[0].mxu0 %v1902
        %v2192 = vpop.f32.mrb[0].mxu0
        %v2193 = vadd.f32 %v1948, %v2192
        %v2194 = vpop.f32.mrb[0].mxu0
        %v2195 = vadd.f32 %v1952, %v2194
        %v2196 = vpop.f32.mrb[0].mxu0
        %v2197 = vpop.f32.mrb[0].mxu0
        %2198 = vdwg.mxu0
        %v2199 = vmul.f32 %v2152, 0.5
        %v2200 = vmul.f32 %v2154, 0.5
        %v2201 = vmul.f32 %v2193, 0.5
        %v2202 = vmul.f32 %v2195, 0.5
        %v2203 = vmul.f32 %v2152, 0.044715
        %v2204 = vmul.f32 %v2154, 0.044715
        %v2205 = vmul.f32 %v2193, 0.044715
        %v2206 = vmul.f32 %v2195, 0.044715
        %v2207 = vmul.f32 %v2203, %v2152
        %v2208 = vmul.f32 %v2204, %v2154
        %v2209 = vmul.f32 %v2205, %v2193
        %v2210 = vmul.f32 %v2206, %v2195
        %v2211 = vmul.f32 %v2207, %v2152
        %v2212 = vmul.f32 %v2208, %v2154
        %v2213 = vmul.f32 %v2209, %v2193
        %v2214 = vmul.f32 %v2210, %v2195
        %v2215 = vadd.f32 %v2152, %v2211
        %v2216 = vadd.f32 %v2154, %v2212
        %v2217 = vadd.f32 %v2193, %v2213
        %v2218 = vadd.f32 %v2195, %v2214
        %v2219 = vmul.f32 %v2215, 0.7978846
        %v2220 = vmul.f32 %v2216, 0.7978846
        %v2221 = vmul.f32 %v2217, 0.7978846
        %v2222 = vmul.f32 %v2218, 0.7978846
        %v2223 = vtanh.pop %v2219
        %v2224 = vtanh.pop %v2220
        %v2225 = vtanh.pop %v2221
        %v2226 = vtanh.pop %v2222
        %v2227 = vadd.f32 %v2223, 1.0
        %v2228 = vadd.f32 %v2224, 1.0
        %v2229 = vadd.f32 %v2225, 1.0
        %v2230 = vadd.f32 %v2226, 1.0
        %v2231 = vmul.f32 %v2199, %v2227
        %v2232 = vmul.f32 %v2200, %v2228
        %v2233 = vmul.f32 %v2201, %v2229
        %v2234 = vmul.f32 %v2202, %v2230
        %v2235 = vpack.c.bf16 %v2231, %v2231
        %v2236 = vpack.c.bf16 %v2232, %v2232
        %v2237 = vpack.c.bf16 %v2233, %v2233
        %v2238 = vpack.c.bf16 %v2234, %v2234
        %v2239 = vld [vmem:[%s12] sm:$0xf]
        %v2240 = vld [vmem:[%s12 + $0x4] sm:$0xf]
        %v2241 = vld [vmem:[%s12 + $0x8] sm:$0xf]
        %v2242 = vld [vmem:[%s12 + $0xc] sm:$0xf]
        %v2243 = vld [vmem:[%s12 + $0x10] sm:$0xf]
        %v2244 = vld [vmem:[%s12 + $0x14] sm:$0xf]
        %v2245 = vld [vmem:[%s12 + $0x18] sm:$0xf]
        %v2246 = vld [vmem:[%s12 + $0x1c] sm:$0xf]
        %v2247 = vld [vmem:[%s12 + $0x20] sm:$0xf]
        %v2248 = vld [vmem:[%s12 + $0x24] sm:$0xf]
        %v2249 = vld [vmem:[%s12 + $0x28] sm:$0xf]
        %v2250 = vld [vmem:[%s12 + $0x2c] sm:$0xf]
        %v2251 = vld [vmem:[%s12 + $0x30] sm:$0xf]
        %v2252 = vld [vmem:[%s12 + $0x34] sm:$0xf]
        %v2253 = vld [vmem:[%s12 + $0x38] sm:$0xf]
        %v2254 = vld [vmem:[%s12 + $0x3c] sm:$0xf]
        %v2255 = vld [vmem:[%s12 + $0x40] sm:$0xf]
        %v2256 = vld [vmem:[%s12 + $0x44] sm:$0xf]
        %v2257 = vld [vmem:[%s12 + $0x48] sm:$0xf]
        %v2258 = vld [vmem:[%s12 + $0x4c] sm:$0xf]
        %v2259 = vld [vmem:[%s12 + $0x50] sm:$0xf]
        %v2260 = vld [vmem:[%s12 + $0x54] sm:$0xf]
        %v2261 = vld [vmem:[%s12 + $0x58] sm:$0xf]
        %v2262 = vld [vmem:[%s12 + $0x5c] sm:$0xf]
        %v2263 = vld [vmem:[%s12 + $0x60] sm:$0xf]
        %v2264 = vld [vmem:[%s12 + $0x64] sm:$0xf]
        %v2265 = vld [vmem:[%s12 + $0x68] sm:$0xf]
        %v2266 = vld [vmem:[%s12 + $0x6c] sm:$0xf]
        %v2267 = vld [vmem:[%s12 + $0x70] sm:$0xf]
        %v2268 = vld [vmem:[%s12 + $0x74] sm:$0xf]
        %v2269 = vld [vmem:[%s12 + $0x78] sm:$0xf]
        %v2270 = vld [vmem:[%s12 + $0x7c] sm:$0xf]
        %v2271 = vld [vmem:[%s12 + $0x80] sm:$0xf]
        %v2272 = vld [vmem:[%s12 + $0x84] sm:$0xf]
        %v2273 = vld [vmem:[%s12 + $0x88] sm:$0xf]
        %v2274 = vld [vmem:[%s12 + $0x8c] sm:$0xf]
        %v2275 = vld [vmem:[%s12 + $0x90] sm:$0xf]
        %v2276 = vld [vmem:[%s12 + $0x94] sm:$0xf]
        %v2277 = vld [vmem:[%s12 + $0x98] sm:$0xf]
        %v2278 = vld [vmem:[%s12 + $0x9c] sm:$0xf]
        %v2279 = vld [vmem:[%s12 + $0xa0] sm:$0xf]
        %v2280 = vld [vmem:[%s12 + $0xa4] sm:$0xf]
        %v2281 = vld [vmem:[%s12 + $0xa8] sm:$0xf]
        %v2282 = vld [vmem:[%s12 + $0xac] sm:$0xf]
        %v2283 = vld [vmem:[%s12 + $0xb0] sm:$0xf]
        %v2284 = vld [vmem:[%s12 + $0xb4] sm:$0xf]
        %v2285 = vld [vmem:[%s12 + $0xb8] sm:$0xf]
        %v2286 = vld [vmem:[%s12 + $0xbc] sm:$0xf]
        %v2287 = vld [vmem:[%s12 + $0xc0] sm:$0xf]
        %v2288 = vld [vmem:[%s12 + $0xc4] sm:$0xf]
        %v2289 = vld [vmem:[%s12 + $0xc8] sm:$0xf]
        %v2290 = vld [vmem:[%s12 + $0xcc] sm:$0xf]
        %v2291 = vld [vmem:[%s12 + $0xd0] sm:$0xf]
        %v2292 = vld [vmem:[%s12 + $0xd4] sm:$0xf]
        %v2293 = vld [vmem:[%s12 + $0xd8] sm:$0xf]
        %v2294 = vld [vmem:[%s12 + $0xdc] sm:$0xf]
        %v2295 = vld [vmem:[%s12 + $0xe0] sm:$0xf]
        %v2296 = vld [vmem:[%s12 + $0xe4] sm:$0xf]
        %v2297 = vld [vmem:[%s12 + $0xe8] sm:$0xf]
        %v2298 = vld [vmem:[%s12 + $0xec] sm:$0xf]
        %v2299 = vld [vmem:[%s12 + $0xf0] sm:$0xf]
        %v2300 = vld [vmem:[%s12 + $0xf4] sm:$0xf]
        %v2301 = vld [vmem:[%s12 + $0xf8] sm:$0xf]
        %v2302 = vld [vmem:[%s12 + $0xfc] sm:$0xf]
        %v2303 = vld [vmem:[%s13] sm:$0x1]
        %v2305 = vlaneseq
        %v2306 = vshrl.u32 %v2305, 7
        %v2307 = vsub.s32 0, %v2306
        %v2308 = vrot.slane %v2303, %v2307
        %v2374 = vunpack.c.l.b16 %v2239
        %v2375 = vunpack.c.l.b16 %v2240
        %v2376 = vunpack.c.l.b16 %v2241
        %v2377 = vunpack.c.l.b16 %v2242
        %v2378 = vunpack.c.l.b16 %v2243
        %v2379 = vunpack.c.l.b16 %v2244
        %v2380 = vunpack.c.l.b16 %v2245
        %v2381 = vunpack.c.l.b16 %v2246
        %v2382 = vunpack.c.l.b16 %v2247
        %v2383 = vunpack.c.l.b16 %v2248
        %v2384 = vunpack.c.l.b16 %v2249
        %v2385 = vunpack.c.l.b16 %v2250
        %v2386 = vunpack.c.l.b16 %v2251
        %v2387 = vunpack.c.l.b16 %v2252
        %v2388 = vunpack.c.l.b16 %v2253
        %v2389 = vunpack.c.l.b16 %v2254
        %v2390 = vunpack.c.l.b16 %v2255
        %v2391 = vunpack.c.l.b16 %v2256
        %v2392 = vunpack.c.l.b16 %v2257
        %v2393 = vunpack.c.l.b16 %v2258
        %v2394 = vunpack.c.l.b16 %v2259
        %v2395 = vunpack.c.l.b16 %v2260
        %v2396 = vunpack.c.l.b16 %v2261
        %v2397 = vunpack.c.l.b16 %v2262
        %v2398 = vunpack.c.l.b16 %v2263
        %v2399 = vunpack.c.l.b16 %v2264
        %v2400 = vunpack.c.l.b16 %v2265
        %v2401 = vunpack.c.l.b16 %v2266
        %v2402 = vunpack.c.l.b16 %v2267
        %v2403 = vunpack.c.l.b16 %v2268
        %v2404 = vunpack.c.l.b16 %v2269
        %v2405 = vunpack.c.l.b16 %v2270
        %v2406 = vunpack.c.l.b16 %v2271
        %v2407 = vunpack.c.l.b16 %v2272
        %v2408 = vunpack.c.l.b16 %v2273
        %v2409 = vunpack.c.l.b16 %v2274
        %v2410 = vunpack.c.l.b16 %v2275
        %v2411 = vunpack.c.l.b16 %v2276
        %v2412 = vunpack.c.l.b16 %v2277
        %v2413 = vunpack.c.l.b16 %v2278
        %v2414 = vunpack.c.l.b16 %v2279
        %v2415 = vunpack.c.l.b16 %v2280
        %v2416 = vunpack.c.l.b16 %v2281
        %v2417 = vunpack.c.l.b16 %v2282
        %v2418 = vunpack.c.l.b16 %v2283
        %v2419 = vunpack.c.l.b16 %v2284
        %v2420 = vunpack.c.l.b16 %v2285
        %v2421 = vunpack.c.l.b16 %v2286
        %v2422 = vunpack.c.l.b16 %v2287
        %v2423 = vunpack.c.l.b16 %v2288
        %v2424 = vunpack.c.l.b16 %v2289
        %v2425 = vunpack.c.l.b16 %v2290
        %v2426 = vunpack.c.l.b16 %v2291
        %v2427 = vunpack.c.l.b16 %v2292
        %v2428 = vunpack.c.l.b16 %v2293
        %v2429 = vunpack.c.l.b16 %v2294
        %v2430 = vunpack.c.l.b16 %v2295
        %v2431 = vunpack.c.l.b16 %v2296
        %v2432 = vunpack.c.l.b16 %v2297
        %v2433 = vunpack.c.l.b16 %v2298
        %v2434 = vunpack.c.l.b16 %v2299
        %v2435 = vunpack.c.l.b16 %v2300
        %v2436 = vunpack.c.l.b16 %v2301
        %v2437 = vunpack.c.l.b16 %v2302
        %v2438 = vpack.c.b16 %v2375, %v2374
        %v2439 = vpack.c.b16 %v2377, %v2376
        %v2440 = vpack.c.b16 %v2379, %v2378
        %v2441 = vpack.c.b16 %v2381, %v2380
        %v2442 = vpack.c.b16 %v2383, %v2382
        %v2443 = vpack.c.b16 %v2385, %v2384
        %v2444 = vpack.c.b16 %v2387, %v2386
        %v2445 = vpack.c.b16 %v2389, %v2388
        %v2446 = vpack.c.b16 %v2391, %v2390
        %v2447 = vpack.c.b16 %v2393, %v2392
        %v2448 = vpack.c.b16 %v2395, %v2394
        %v2449 = vpack.c.b16 %v2397, %v2396
        %v2450 = vpack.c.b16 %v2399, %v2398
        %v2451 = vpack.c.b16 %v2401, %v2400
        %v2452 = vpack.c.b16 %v2403, %v2402
        %v2453 = vpack.c.b16 %v2405, %v2404
        %v2454 = vpack.c.b16 %v2407, %v2406
        %v2455 = vpack.c.b16 %v2409, %v2408
        %v2456 = vpack.c.b16 %v2411, %v2410
        %v2457 = vpack.c.b16 %v2413, %v2412
        %v2458 = vpack.c.b16 %v2415, %v2414
        %v2459 = vpack.c.b16 %v2417, %v2416
        %v2460 = vpack.c.b16 %v2419, %v2418
        %v2461 = vpack.c.b16 %v2421, %v2420
        %v2462 = vpack.c.b16 %v2423, %v2422
        %v2463 = vpack.c.b16 %v2425, %v2424
        %v2464 = vpack.c.b16 %v2427, %v2426
        %v2465 = vpack.c.b16 %v2429, %v2428
        %v2466 = vpack.c.b16 %v2431, %v2430
        %v2467 = vpack.c.b16 %v2433, %v2432
        %v2468 = vpack.c.b16 %v2435, %v2434
        %v2469 = vpack.c.b16 %v2437, %v2436
        %2502 = vmatprep.subr.bf16.mxu0 0
        %2503 = vmatpush1.bf16.msra.mxu0 %v2438
        %2504 = vmatprep.subr.bf16.mxu0 0
        %2505 = vmatpush1.bf16.msra.mxu0 %v2439
        %2506 = vmatprep.subr.bf16.mxu0 0
        %2507 = vmatpush1.bf16.msra.mxu0 %v2440
        %2508 = vmatprep.subr.bf16.mxu0 0
        %2509 = vmatpush1.bf16.msra.mxu0 %v2441
        %2510 = vmatprep.subr.bf16.mxu0 0
        %2511 = vmatpush1.bf16.msra.mxu0 %v2442
        %2512 = vmatprep.subr.bf16.mxu0 0
        %2513 = vmatpush1.bf16.msra.mxu0 %v2443
        %2514 = vmatprep.subr.bf16.mxu0 0
        %2515 = vmatpush1.bf16.msra.mxu0 %v2444
        %2516 = vmatprep.subr.bf16.mxu0 0
        %2517 = vmatpush1.bf16.msra.mxu0 %v2445
        %2518 = vmatprep.subr.bf16.mxu0 0
        %2519 = vmatpush1.bf16.msra.mxu0 %v2446
        %2520 = vmatprep.subr.bf16.mxu0 0
        %2521 = vmatpush1.bf16.msra.mxu0 %v2447
        %2522 = vmatprep.subr.bf16.mxu0 0
        %2523 = vmatpush1.bf16.msra.mxu0 %v2448
        %2524 = vmatprep.subr.bf16.mxu0 0
        %2525 = vmatpush1.bf16.msra.mxu0 %v2449
        %2526 = vmatprep.subr.bf16.mxu0 0
        %2527 = vmatpush1.bf16.msra.mxu0 %v2450
        %2528 = vmatprep.subr.bf16.mxu0 0
        %2529 = vmatpush1.bf16.msra.mxu0 %v2451
        %2530 = vmatprep.subr.bf16.mxu0 0
        %2531 = vmatpush1.bf16.msra.mxu0 %v2452
        %2532 = vmatprep.subr.bf16.mxu0 0
        %2533 = vmatpush1.bf16.msra.mxu0 %v2453
        %2534 = vmatprep.mubr.bf16.mxu0 %v2236
        %2535 = vmatmul.mubr.bf16.gmra.mrb[0].mxu0 %v2235
        %v2536 = vpop.f32.mrb[0].mxu0
        %v2537 = vadd.f32 %v2308, %v2536
        %v2538 = vpop.f32.mrb[0].mxu0
        %v2539 = vpop.f32.mrb[0].mxu0
        %v2540 = vpop.f32.mrb[0].mxu0
        %2541 = vdwg.mxu0
        %2542 = vmatprep.subr.bf16.mxu0 0
        %2543 = vmatpush1.bf16.msra.mxu0 %v2454
        %2544 = vmatprep.subr.bf16.mxu0 0
        %2545 = vmatpush1.bf16.msra.mxu0 %v2455
        %2546 = vmatprep.subr.bf16.mxu0 0
        %2547 = vmatpush1.bf16.msra.mxu0 %v2456
        %2548 = vmatprep.subr.bf16.mxu0 0
        %2549 = vmatpush1.bf16.msra.mxu0 %v2457
        %2550 = vmatprep.subr.bf16.mxu0 0
        %2551 = vmatpush1.bf16.msra.mxu0 %v2458
        %2552 = vmatprep.subr.bf16.mxu0 0
        %2553 = vmatpush1.bf16.msra.mxu0 %v2459
        %2554 = vmatprep.subr.bf16.mxu0 0
        %2555 = vmatpush1.bf16.msra.mxu0 %v2460
        %2556 = vmatprep.subr.bf16.mxu0 0
        %2557 = vmatpush1.bf16.msra.mxu0 %v2461
        %2558 = vmatprep.subr.bf16.mxu0 0
        %2559 = vmatpush1.bf16.msra.mxu0 %v2462
        %2560 = vmatprep.subr.bf16.mxu0 0
        %2561 = vmatpush1.bf16.msra.mxu0 %v2463
        %2562 = vmatprep.subr.bf16.mxu0 0
        %2563 = vmatpush1.bf16.msra.mxu0 %v2464
        %2564 = vmatprep.subr.bf16.mxu0 0
        %2565 = vmatpush1.bf16.msra.mxu0 %v2465
        %2566 = vmatprep.subr.bf16.mxu0 0
        %2567 = vmatpush1.bf16.msra.mxu0 %v2466
        %2568 = vmatprep.subr.bf16.mxu0 0
        %2569 = vmatpush1.bf16.msra.mxu0 %v2467
        %2570 = vmatprep.subr.bf16.mxu0 0
        %2571 = vmatpush1.bf16.msra.mxu0 %v2468
        %2572 = vmatprep.subr.bf16.mxu0 0
        %2573 = vmatpush1.bf16.msra.mxu0 %v2469
        %2574 = vmatprep.mubr.bf16.mxu0 %v2238
        %2575 = vmatmul.mubr.bf16.gmra.mrb[0].mxu0 %v2237
        %v2576 = vpop.f32.mrb[0].mxu0
        %v2577 = vadd.f32 %v2537, %v2576
        %v2578 = vpop.f32.mrb[0].mxu0
        %v2579 = vpop.f32.mrb[0].mxu0
        %v2580 = vpop.f32.mrb[0].mxu0
        %2581 = vdwg.mxu0
        %v2582 = vld [vmem:[#allocation10] sm:$0x1]
        %v2584 = vlaneseq
        %v2585 = vshrl.u32 %v2584, 7
        %v2586 = vsub.s32 0, %v2585
        %v2587 = vrot.slane %v2582, %v2586
        %v2589 = vmul.f32 %v2577, %v2587
        %v2590 = vadd.f32 %v1094, %v2589
        %v2592 = vrot.slane %v2590, 5
        %v2594 = vsel %vm1098, 0.0, %v2592
        %v2595 = vsel %vm1100, %v2594, 0.0
        %s2596 = scalar_lea.vmem [#allocation9], 896
        %v2597 = vld [vmem:[%s2596] sm:$0xff]
        %v2598 = vld [vmem:[%s2596 + $0x8] sm:$0xff]
        %v2599 = vld [vmem:[%s2596 + $0x10] sm:$0xff]
        %v2600 = vld [vmem:[%s2596 + $0x18] sm:$0xff]
        %v2601 = vld [vmem:[%s2596 + $0x20] sm:$0xff]
        %v2602 = vld [vmem:[%s2596 + $0x28] sm:$0xff]
        %v2603 = vld [vmem:[%s2596 + $0x30] sm:$0xff]
        %v2604 = vld [vmem:[%s2596 + $0x38] sm:$0xff]
        %v2605 = vld [vmem:[%s2596 + $0x40] sm:$0xff]
        %v2606 = vld [vmem:[%s2596 + $0x48] sm:$0xff]
        %v2607 = vld [vmem:[%s2596 + $0x50] sm:$0xff]
        %v2608 = vld [vmem:[%s2596 + $0x58] sm:$0xff]
        %v2609 = vld [vmem:[%s2596 + $0x60] sm:$0xff]
        %v2610 = vld [vmem:[%s2596 + $0x68] sm:$0xff]
        %v2611 = vld [vmem:[%s2596 + $0x70] sm:$0xff]
        %v2612 = vld [vmem:[%s2596 + $0x78] sm:$0xff]
        %s2613 = scalar_lea.vmem [#allocation9], 1024
        %v2614 = vld [vmem:[%s2613] sm:$0xff]
        %v2615 = vld [vmem:[%s2613 + $0x8] sm:$0xff]
        %v2616 = vld [vmem:[%s2613 + $0x10] sm:$0xff]
        %v2617 = vld [vmem:[%s2613 + $0x18] sm:$0xff]
        %v2618 = vld [vmem:[%s2613 + $0x20] sm:$0xff]
        %v2619 = vld [vmem:[%s2613 + $0x28] sm:$0xff]
        %v2620 = vld [vmem:[%s2613 + $0x30] sm:$0xff]
        %v2621 = vld [vmem:[%s2613 + $0x38] sm:$0xff]
        %v2622 = vld [vmem:[%s2613 + $0x40] sm:$0xff]
        %v2623 = vld [vmem:[%s2613 + $0x48] sm:$0xff]
        %v2624 = vld [vmem:[%s2613 + $0x50] sm:$0xff]
        %v2625 = vld [vmem:[%s2613 + $0x58] sm:$0xff]
        %v2626 = vld [vmem:[%s2613 + $0x60] sm:$0xff]
        %v2627 = vld [vmem:[%s2613 + $0x68] sm:$0xff]
        %v2628 = vld [vmem:[%s2613 + $0x70] sm:$0xff]
        %v2629 = vld [vmem:[%s2613 + $0x78] sm:$0xff]
        %v2631 = vrot.slane %v2595, 1
        %2633 = vmatprep.subr.mxu0 0.0
        %2634 = vmatpush1.msra.mxu0 %v2614
        %2635 = vmatprep.subr.mxu0 0.0
        %2636 = vmatpush1.msra.mxu0 %v2615
        %2637 = vmatprep.subr.mxu0 0.0
        %2638 = vmatpush1.msra.mxu0 %v2616
        %2639 = vmatprep.subr.mxu0 0.0
        %2640 = vmatpush1.msra.mxu0 %v2617
        %2641 = vmatprep.subr.mxu0 0.0
        %2642 = vmatpush1.msra.mxu0 %v2618
        %2643 = vmatprep.subr.mxu0 0.0
        %2644 = vmatpush1.msra.mxu0 %v2619
        %2645 = vmatprep.subr.mxu0 0.0
        %2646 = vmatpush1.msra.mxu0 %v2620
        %2647 = vmatprep.subr.mxu0 0.0
        %2648 = vmatpush1.msra.mxu0 %v2621
        %2649 = vmatprep.subr.mxu0 0.0
        %2650 = vmatpush1.msra.mxu0 %v2622
        %2651 = vmatprep.subr.mxu0 0.0
        %2652 = vmatpush1.msra.mxu0 %v2623
        %2653 = vmatprep.subr.mxu0 0.0
        %2654 = vmatpush1.msra.mxu0 %v2624
        %2655 = vmatprep.subr.mxu0 0.0
        %2656 = vmatpush1.msra.mxu0 %v2625
        %2657 = vmatprep.subr.mxu0 0.0
        %2658 = vmatpush1.msra.mxu0 %v2626
        %2659 = vmatprep.subr.mxu0 0.0
        %2660 = vmatpush1.msra.mxu0 %v2627
        %2661 = vmatprep.subr.mxu0 0.0
        %2662 = vmatpush1.msra.mxu0 %v2628
        %2663 = vmatprep.subr.mxu0 0.0
        %2664 = vmatpush1.msra.mxu0 %v2629
        %2665 = vmatprep.subr.mxu0 0.0
        %2666 = vmatpush1.msra.mxu0 0.0
        %2667 = vmatprep.subr.mxu0 0.0
        %2668 = vmatpush1.msra.mxu0 0.0
        %2669 = vmatprep.subr.mxu0 0.0
        %2670 = vmatpush1.msra.mxu0 0.0
        %2671 = vmatprep.subr.mxu0 0.0
        %2672 = vmatpush1.msra.mxu0 0.0
        %2673 = vmatprep.subr.mxu0 0.0
        %2674 = vmatpush1.msra.mxu0 0.0
        %2675 = vmatprep.subr.mxu0 0.0
        %2676 = vmatpush1.msra.mxu0 0.0
        %2677 = vmatprep.subr.mxu0 0.0
        %2678 = vmatpush1.msra.mxu0 0.0
        %2679 = vmatprep.subr.mxu0 0.0
        %2680 = vmatpush1.msra.mxu0 0.0
        %2681 = vmatprep.subr.mxu0 0.0
        %2682 = vmatpush1.msra.mxu0 0.0
        %2683 = vmatprep.subr.mxu0 0.0
        %2684 = vmatpush1.msra.mxu0 0.0
        %2685 = vmatprep.subr.mxu0 0.0
        %2686 = vmatpush1.msra.mxu0 0.0
        %2687 = vmatprep.subr.mxu0 0.0
        %2688 = vmatpush1.msra.mxu0 0.0
        %2689 = vmatprep.subr.mxu0 0.0
        %2690 = vmatpush1.msra.mxu0 0.0
        %2691 = vmatprep.subr.mxu0 0.0
        %2692 = vmatpush1.msra.mxu0 0.0
        %2693 = vmatprep.subr.mxu0 0.0
        %2694 = vmatpush1.msra.mxu0 0.0
        %2695 = vmatprep.subr.mxu0 0.0
        %2696 = vmatpush1.msra.mxu0 0.0
        %2697 = vmatprep.mubr.f32.mxu0 0.0
        %2698 = vmatmul.mubr.f32.gmra.mrb[0].mxu0 %v2631
        %v2699 = vpop.f32.mrb[0].mxu0
        %v2700 = vadd.f32 0.0, %v2699
        %v2701 = vpop.f32.mrb[0].mxu0
        %2702 = vdwg.mxu0
        %2703 = vmatprep.subr.mxu0 0.0
        %2704 = vmatpush1.msra.mxu0 %v2597
        %2705 = vmatprep.subr.mxu0 0.0
        %2706 = vmatpush1.msra.mxu0 %v2598
        %2707 = vmatprep.subr.mxu0 0.0
        %2708 = vmatpush1.msra.mxu0 %v2599
        %2709 = vmatprep.subr.mxu0 0.0
        %2710 = vmatpush1.msra.mxu0 %v2600
        %2711 = vmatprep.subr.mxu0 0.0
        %2712 = vmatpush1.msra.mxu0 %v2601
        %2713 = vmatprep.subr.mxu0 0.0
        %2714 = vmatpush1.msra.mxu0 %v2602
        %2715 = vmatprep.subr.mxu0 0.0
        %2716 = vmatpush1.msra.mxu0 %v2603
        %2717 = vmatprep.subr.mxu0 0.0
        %2718 = vmatpush1.msra.mxu0 %v2604
        %2719 = vmatprep.subr.mxu0 0.0
        %2720 = vmatpush1.msra.mxu0 %v2605
        %2721 = vmatprep.subr.mxu0 0.0
        %2722 = vmatpush1.msra.mxu0 %v2606
        %2723 = vmatprep.subr.mxu0 0.0
        %2724 = vmatpush1.msra.mxu0 %v2607
        %2725 = vmatprep.subr.mxu0 0.0
        %2726 = vmatpush1.msra.mxu0 %v2608
        %2727 = vmatprep.subr.mxu0 0.0
        %2728 = vmatpush1.msra.mxu0 %v2609
        %2729 = vmatprep.subr.mxu0 0.0
        %2730 = vmatpush1.msra.mxu0 %v2610
        %2731 = vmatprep.subr.mxu0 0.0
        %2732 = vmatpush1.msra.mxu0 %v2611
        %2733 = vmatprep.subr.mxu0 0.0
        %2734 = vmatpush1.msra.mxu0 %v2612
        %2735 = vmatprep.subr.mxu0 0.0
        %2736 = vmatpush1.msra.mxu0 0.0
        %2737 = vmatprep.subr.mxu0 0.0
        %2738 = vmatpush1.msra.mxu0 0.0
        %2739 = vmatprep.subr.mxu0 0.0
        %2740 = vmatpush1.msra.mxu0 0.0
        %2741 = vmatprep.subr.mxu0 0.0
        %2742 = vmatpush1.msra.mxu0 0.0
        %2743 = vmatprep.subr.mxu0 0.0
        %2744 = vmatpush1.msra.mxu0 0.0
        %2745 = vmatprep.subr.mxu0 0.0
        %2746 = vmatpush1.msra.mxu0 0.0
        %2747 = vmatprep.subr.mxu0 0.0
        %2748 = vmatpush1.msra.mxu0 0.0
        %2749 = vmatprep.subr.mxu0 0.0
        %2750 = vmatpush1.msra.mxu0 0.0
        %2751 = vmatprep.subr.mxu0 0.0
        %2752 = vmatpush1.msra.mxu0 0.0
        %2753 = vmatprep.subr.mxu0 0.0
        %2754 = vmatpush1.msra.mxu0 0.0
        %2755 = vmatprep.subr.mxu0 0.0
        %2756 = vmatpush1.msra.mxu0 0.0
        %2757 = vmatprep.subr.mxu0 0.0
        %2758 = vmatpush1.msra.mxu0 0.0
        %2759 = vmatprep.subr.mxu0 0.0
        %2760 = vmatpush1.msra.mxu0 0.0
        %2761 = vmatprep.subr.mxu0 0.0
        %2762 = vmatpush1.msra.mxu0 0.0
        %2763 = vmatprep.subr.mxu0 0.0
        %2764 = vmatpush1.msra.mxu0 0.0
        %2765 = vmatprep.subr.mxu0 0.0
        %2766 = vmatpush1.msra.mxu0 0.0
        %2767 = vmatprep.mubr.f32.mxu0 0.0
        %2768 = vmatmul.mubr.f32.gmra.mrb[0].mxu0 %v2595
        %v2769 = vpop.f32.mrb[0].mxu0
        %v2770 = vadd.f32 %v2700, %v2769
        %v2771 = vpop.f32.mrb[0].mxu0
        %2772 = vdwg.mxu0
        %s2773 = scalar_lea.vmem [#allocation9], 1152
        %v2774 = vld [vmem:[%s2773] sm:$0xff]
        %v2775 = vld [vmem:[%s2773 + $0x8] sm:$0xff]
        %v2776 = vld [vmem:[%s2773 + $0x10] sm:$0xff]
        %v2777 = vld [vmem:[%s2773 + $0x18] sm:$0xff]
        %v2778 = vld [vmem:[%s2773 + $0x20] sm:$0xff]
        %v2779 = vld [vmem:[%s2773 + $0x28] sm:$0xff]
        %v2780 = vld [vmem:[%s2773 + $0x30] sm:$0xff]
        %v2781 = vld [vmem:[%s2773 + $0x38] sm:$0xff]
        %v2782 = vld [vmem:[%s2773 + $0x40] sm:$0xff]
        %v2783 = vld [vmem:[%s2773 + $0x48] sm:$0xff]
        %v2784 = vld [vmem:[%s2773 + $0x50] sm:$0xff]
        %v2785 = vld [vmem:[%s2773 + $0x58] sm:$0xff]
        %v2786 = vld [vmem:[%s2773 + $0x60] sm:$0xff]
        %v2787 = vld [vmem:[%s2773 + $0x68] sm:$0xff]
        %v2788 = vld [vmem:[%s2773 + $0x70] sm:$0xff]
        %v2789 = vld [vmem:[%s2773 + $0x78] sm:$0xff]
        %v2790 = vrot.slane %v2595, 2
        %2792 = vmatprep.subr.mxu0 0.0
        %2793 = vmatpush1.msra.mxu0 %v2774
        %2794 = vmatprep.subr.mxu0 0.0
        %2795 = vmatpush1.msra.mxu0 %v2775
        %2796 = vmatprep.subr.mxu0 0.0
        %2797 = vmatpush1.msra.mxu0 %v2776
        %2798 = vmatprep.subr.mxu0 0.0
        %2799 = vmatpush1.msra.mxu0 %v2777
        %2800 = vmatprep.subr.mxu0 0.0
        %2801 = vmatpush1.msra.mxu0 %v2778
        %2802 = vmatprep.subr.mxu0 0.0
        %2803 = vmatpush1.msra.mxu0 %v2779
        %2804 = vmatprep.subr.mxu0 0.0
        %2805 = vmatpush1.msra.mxu0 %v2780
        %2806 = vmatprep.subr.mxu0 0.0
        %2807 = vmatpush1.msra.mxu0 %v2781
        %2808 = vmatprep.subr.mxu0 0.0
        %2809 = vmatpush1.msra.mxu0 %v2782
        %2810 = vmatprep.subr.mxu0 0.0
        %2811 = vmatpush1.msra.mxu0 %v2783
        %2812 = vmatprep.subr.mxu0 0.0
        %2813 = vmatpush1.msra.mxu0 %v2784
        %2814 = vmatprep.subr.mxu0 0.0
        %2815 = vmatpush1.msra.mxu0 %v2785
        %2816 = vmatprep.subr.mxu0 0.0
        %2817 = vmatpush1.msra.mxu0 %v2786
        %2818 = vmatprep.subr.mxu0 0.0
        %2819 = vmatpush1.msra.mxu0 %v2787
        %2820 = vmatprep.subr.mxu0 0.0
        %2821 = vmatpush1.msra.mxu0 %v2788
        %2822 = vmatprep.subr.mxu0 0.0
        %2823 = vmatpush1.msra.mxu0 %v2789
        %2824 = vmatprep.subr.mxu0 0.0
        %2825 = vmatpush1.msra.mxu0 0.0
        %2826 = vmatprep.subr.mxu0 0.0
        %2827 = vmatpush1.msra.mxu0 0.0
        %2828 = vmatprep.subr.mxu0 0.0
        %2829 = vmatpush1.msra.mxu0 0.0
        %2830 = vmatprep.subr.mxu0 0.0
        %2831 = vmatpush1.msra.mxu0 0.0
        %2832 = vmatprep.subr.mxu0 0.0
        %2833 = vmatpush1.msra.mxu0 0.0
        %2834 = vmatprep.subr.mxu0 0.0
        %2835 = vmatpush1.msra.mxu0 0.0
        %2836 = vmatprep.subr.mxu0 0.0
        %2837 = vmatpush1.msra.mxu0 0.0
        %2838 = vmatprep.subr.mxu0 0.0
        %2839 = vmatpush1.msra.mxu0 0.0
        %2840 = vmatprep.subr.mxu0 0.0
        %2841 = vmatpush1.msra.mxu0 0.0
        %2842 = vmatprep.subr.mxu0 0.0
        %2843 = vmatpush1.msra.mxu0 0.0
        %2844 = vmatprep.subr.mxu0 0.0
        %2845 = vmatpush1.msra.mxu0 0.0
        %2846 = vmatprep.subr.mxu0 0.0
        %2847 = vmatpush1.msra.mxu0 0.0
        %2848 = vmatprep.subr.mxu0 0.0
        %2849 = vmatpush1.msra.mxu0 0.0
        %2850 = vmatprep.subr.mxu0 0.0
        %2851 = vmatpush1.msra.mxu0 0.0
        %2852 = vmatprep.subr.mxu0 0.0
        %2853 = vmatpush1.msra.mxu0 0.0
        %2854 = vmatprep.subr.mxu0 0.0
        %2855 = vmatpush1.msra.mxu0 0.0
        %2856 = vmatprep.mubr.f32.mxu0 0.0
        %2857 = vmatmul.mubr.f32.gmra.mrb[0].mxu0 %v2790
        %v2858 = vpop.f32.mrb[0].mxu0
        %v2859 = vadd.f32 0.0, %v2858
        %v2860 = vpop.f32.mrb[0].mxu0
        %2861 = vdwg.mxu0
        %v2862 = vadd.f32 %v2770, %v2859
        %s2863 = scalar_lea.vmem [#allocation9], 1280
        %v2864 = vld [vmem:[%s2863] sm:$0xff]
        %v2865 = vld [vmem:[%s2863 + $0x8] sm:$0xff]
        %v2866 = vld [vmem:[%s2863 + $0x10] sm:$0xff]
        %v2867 = vld [vmem:[%s2863 + $0x18] sm:$0xff]
        %v2868 = vld [vmem:[%s2863 + $0x20] sm:$0xff]
        %v2869 = vld [vmem:[%s2863 + $0x28] sm:$0xff]
        %v2870 = vld [vmem:[%s2863 + $0x30] sm:$0xff]
        %v2871 = vld [vmem:[%s2863 + $0x38] sm:$0xff]
        %v2872 = vld [vmem:[%s2863 + $0x40] sm:$0xff]
        %v2873 = vld [vmem:[%s2863 + $0x48] sm:$0xff]
        %v2874 = vld [vmem:[%s2863 + $0x50] sm:$0xff]
        %v2875 = vld [vmem:[%s2863 + $0x58] sm:$0xff]
        %v2876 = vld [vmem:[%s2863 + $0x60] sm:$0xff]
        %v2877 = vld [vmem:[%s2863 + $0x68] sm:$0xff]
        %v2878 = vld [vmem:[%s2863 + $0x70] sm:$0xff]
        %v2879 = vld [vmem:[%s2863 + $0x78] sm:$0xff]
        %v2880 = vrot.slane %v2595, 3
        %2882 = vmatprep.subr.mxu0 0.0
        %2883 = vmatpush1.msra.mxu0 %v2864
        %2884 = vmatprep.subr.mxu0 0.0
        %2885 = vmatpush1.msra.mxu0 %v2865
        %2886 = vmatprep.subr.mxu0 0.0
        %2887 = vmatpush1.msra.mxu0 %v2866
        %2888 = vmatprep.subr.mxu0 0.0
        %2889 = vmatpush1.msra.mxu0 %v2867
        %2890 = vmatprep.subr.mxu0 0.0
        %2891 = vmatpush1.msra.mxu0 %v2868
        %2892 = vmatprep.subr.mxu0 0.0
        %2893 = vmatpush1.msra.mxu0 %v2869
        %2894 = vmatprep.subr.mxu0 0.0
        %2895 = vmatpush1.msra.mxu0 %v2870
        %2896 = vmatprep.subr.mxu0 0.0
        %2897 = vmatpush1.msra.mxu0 %v2871
        %2898 = vmatprep.subr.mxu0 0.0
        %2899 = vmatpush1.msra.mxu0 %v2872
        %2900 = vmatprep.subr.mxu0 0.0
        %2901 = vmatpush1.msra.mxu0 %v2873
        %2902 = vmatprep.subr.mxu0 0.0
        %2903 = vmatpush1.msra.mxu0 %v2874
        %2904 = vmatprep.subr.mxu0 0.0
        %2905 = vmatpush1.msra.mxu0 %v2875
        %2906 = vmatprep.subr.mxu0 0.0
        %2907 = vmatpush1.msra.mxu0 %v2876
        %2908 = vmatprep.subr.mxu0 0.0
        %2909 = vmatpush1.msra.mxu0 %v2877
        %2910 = vmatprep.subr.mxu0 0.0
        %2911 = vmatpush1.msra.mxu0 %v2878
        %2912 = vmatprep.subr.mxu0 0.0
        %2913 = vmatpush1.msra.mxu0 %v2879
        %2914 = vmatprep.subr.mxu0 0.0
        %2915 = vmatpush1.msra.mxu0 0.0
        %2916 = vmatprep.subr.mxu0 0.0
        %2917 = vmatpush1.msra.mxu0 0.0
        %2918 = vmatprep.subr.mxu0 0.0
        %2919 = vmatpush1.msra.mxu0 0.0
        %2920 = vmatprep.subr.mxu0 0.0
        %2921 = vmatpush1.msra.mxu0 0.0
        %2922 = vmatprep.subr.mxu0 0.0
        %2923 = vmatpush1.msra.mxu0 0.0
        %2924 = vmatprep.subr.mxu0 0.0
        %2925 = vmatpush1.msra.mxu0 0.0
        %2926 = vmatprep.subr.mxu0 0.0
        %2927 = vmatpush1.msra.mxu0 0.0
        %2928 = vmatprep.subr.mxu0 0.0
        %2929 = vmatpush1.msra.mxu0 0.0
        %2930 = vmatprep.subr.mxu0 0.0
        %2931 = vmatpush1.msra.mxu0 0.0
        %2932 = vmatprep.subr.mxu0 0.0
        %2933 = vmatpush1.msra.mxu0 0.0
        %2934 = vmatprep.subr.mxu0 0.0
        %2935 = vmatpush1.msra.mxu0 0.0
        %2936 = vmatprep.subr.mxu0 0.0
        %2937 = vmatpush1.msra.mxu0 0.0
        %2938 = vmatprep.subr.mxu0 0.0
        %2939 = vmatpush1.msra.mxu0 0.0
        %2940 = vmatprep.subr.mxu0 0.0
        %2941 = vmatpush1.msra.mxu0 0.0
        %2942 = vmatprep.subr.mxu0 0.0
        %2943 = vmatpush1.msra.mxu0 0.0
        %2944 = vmatprep.subr.mxu0 0.0
        %2945 = vmatpush1.msra.mxu0 0.0
        %2946 = vmatprep.mubr.f32.mxu0 0.0
        %2947 = vmatmul.mubr.f32.gmra.mrb[0].mxu0 %v2880
        %v2948 = vpop.f32.mrb[0].mxu0
        %v2949 = vadd.f32 0.0, %v2948
        %v2950 = vpop.f32.mrb[0].mxu0
        %2951 = vdwg.mxu0
        %v2952 = vadd.f32 %v2862, %v2949
        %s2953 = scalar_lea.vmem [#allocation9], 1408
        %v2954 = vld [vmem:[%s2953] sm:$0xff]
        %v2955 = vld [vmem:[%s2953 + $0x8] sm:$0xff]
        %v2956 = vld [vmem:[%s2953 + $0x10] sm:$0xff]
        %v2957 = vld [vmem:[%s2953 + $0x18] sm:$0xff]
        %v2958 = vld [vmem:[%s2953 + $0x20] sm:$0xff]
        %v2959 = vld [vmem:[%s2953 + $0x28] sm:$0xff]
        %v2960 = vld [vmem:[%s2953 + $0x30] sm:$0xff]
        %v2961 = vld [vmem:[%s2953 + $0x38] sm:$0xff]
        %v2962 = vld [vmem:[%s2953 + $0x40] sm:$0xff]
        %v2963 = vld [vmem:[%s2953 + $0x48] sm:$0xff]
        %v2964 = vld [vmem:[%s2953 + $0x50] sm:$0xff]
        %v2965 = vld [vmem:[%s2953 + $0x58] sm:$0xff]
        %v2966 = vld [vmem:[%s2953 + $0x60] sm:$0xff]
        %v2967 = vld [vmem:[%s2953 + $0x68] sm:$0xff]
        %v2968 = vld [vmem:[%s2953 + $0x70] sm:$0xff]
        %v2969 = vld [vmem:[%s2953 + $0x78] sm:$0xff]
        %v2970 = vrot.slane %v2595, 4
        %2972 = vmatprep.subr.mxu0 0.0
        %2973 = vmatpush1.msra.mxu0 %v2954
        %2974 = vmatprep.subr.mxu0 0.0
        %2975 = vmatpush1.msra.mxu0 %v2955
        %2976 = vmatprep.subr.mxu0 0.0
        %2977 = vmatpush1.msra.mxu0 %v2956
        %2978 = vmatprep.subr.mxu0 0.0
        %2979 = vmatpush1.msra.mxu0 %v2957
        %2980 = vmatprep.subr.mxu0 0.0
        %2981 = vmatpush1.msra.mxu0 %v2958
        %2982 = vmatprep.subr.mxu0 0.0
        %2983 = vmatpush1.msra.mxu0 %v2959
        %2984 = vmatprep.subr.mxu0 0.0
        %2985 = vmatpush1.msra.mxu0 %v2960
        %2986 = vmatprep.subr.mxu0 0.0
        %2987 = vmatpush1.msra.mxu0 %v2961
        %2988 = vmatprep.subr.mxu0 0.0
        %2989 = vmatpush1.msra.mxu0 %v2962
        %2990 = vmatprep.subr.mxu0 0.0
        %2991 = vmatpush1.msra.mxu0 %v2963
        %2992 = vmatprep.subr.mxu0 0.0
        %2993 = vmatpush1.msra.mxu0 %v2964
        %2994 = vmatprep.subr.mxu0 0.0
        %2995 = vmatpush1.msra.mxu0 %v2965
        %2996 = vmatprep.subr.mxu0 0.0
        %2997 = vmatpush1.msra.mxu0 %v2966
        %2998 = vmatprep.subr.mxu0 0.0
        %2999 = vmatpush1.msra.mxu0 %v2967
        %3000 = vmatprep.subr.mxu0 0.0
        %3001 = vmatpush1.msra.mxu0 %v2968
        %3002 = vmatprep.subr.mxu0 0.0
        %3003 = vmatpush1.msra.mxu0 %v2969
        %3004 = vmatprep.subr.mxu0 0.0
        %3005 = vmatpush1.msra.mxu0 0.0
        %3006 = vmatprep.subr.mxu0 0.0
        %3007 = vmatpush1.msra.mxu0 0.0
        %3008 = vmatprep.subr.mxu0 0.0
        %3009 = vmatpush1.msra.mxu0 0.0
        %3010 = vmatprep.subr.mxu0 0.0
        %3011 = vmatpush1.msra.mxu0 0.0
        %3012 = vmatprep.subr.mxu0 0.0
        %3013 = vmatpush1.msra.mxu0 0.0
        %3014 = vmatprep.subr.mxu0 0.0
        %3015 = vmatpush1.msra.mxu0 0.0
        %3016 = vmatprep.subr.mxu0 0.0
        %3017 = vmatpush1.msra.mxu0 0.0
        %3018 = vmatprep.subr.mxu0 0.0
        %3019 = vmatpush1.msra.mxu0 0.0
        %3020 = vmatprep.subr.mxu0 0.0
        %3021 = vmatpush1.msra.mxu0 0.0
        %3022 = vmatprep.subr.mxu0 0.0
        %3023 = vmatpush1.msra.mxu0 0.0
        %3024 = vmatprep.subr.mxu0 0.0
        %3025 = vmatpush1.msra.mxu0 0.0
        %3026 = vmatprep.subr.mxu0 0.0
        %3027 = vmatpush1.msra.mxu0 0.0
        %3028 = vmatprep.subr.mxu0 0.0
        %3029 = vmatpush1.msra.mxu0 0.0
        %3030 = vmatprep.subr.mxu0 0.0
        %3031 = vmatpush1.msra.mxu0 0.0
        %3032 = vmatprep.subr.mxu0 0.0
        %3033 = vmatpush1.msra.mxu0 0.0
        %3034 = vmatprep.subr.mxu0 0.0
        %3035 = vmatpush1.msra.mxu0 0.0
        %3036 = vmatprep.mubr.f32.mxu0 0.0
        %3037 = vmatmul.mubr.f32.gmra.mrb[0].mxu0 %v2970
        %v3038 = vpop.f32.mrb[0].mxu0
        %v3039 = vadd.f32 0.0, %v3038
        %v3040 = vpop.f32.mrb[0].mxu0
        %3041 = vdwg.mxu0
        %v3042 = vadd.f32 %v2952, %v3039
        %s3043 = scalar_lea.vmem [#allocation9], 1536
        %v3044 = vld [vmem:[%s3043] sm:$0xff]
        %v3045 = vld [vmem:[%s3043 + $0x8] sm:$0xff]
        %v3046 = vld [vmem:[%s3043 + $0x10] sm:$0xff]
        %v3047 = vld [vmem:[%s3043 + $0x18] sm:$0xff]
        %v3048 = vld [vmem:[%s3043 + $0x20] sm:$0xff]
        %v3049 = vld [vmem:[%s3043 + $0x28] sm:$0xff]
        %v3050 = vld [vmem:[%s3043 + $0x30] sm:$0xff]
        %v3051 = vld [vmem:[%s3043 + $0x38] sm:$0xff]
        %v3052 = vld [vmem:[%s3043 + $0x40] sm:$0xff]
        %v3053 = vld [vmem:[%s3043 + $0x48] sm:$0xff]
        %v3054 = vld [vmem:[%s3043 + $0x50] sm:$0xff]
        %v3055 = vld [vmem:[%s3043 + $0x58] sm:$0xff]
        %v3056 = vld [vmem:[%s3043 + $0x60] sm:$0xff]
        %v3057 = vld [vmem:[%s3043 + $0x68] sm:$0xff]
        %v3058 = vld [vmem:[%s3043 + $0x70] sm:$0xff]
        %v3059 = vld [vmem:[%s3043 + $0x78] sm:$0xff]
        %v3060 = vrot.slane %v2595, 5
        %v3061 = vsel %vm1098, %v3060, %v1567
        %3063 = vmatprep.subr.mxu0 0.0
        %3064 = vmatpush1.msra.mxu0 %v3044
        %3065 = vmatprep.subr.mxu0 0.0
        %3066 = vmatpush1.msra.mxu0 %v3045
        %3067 = vmatprep.subr.mxu0 0.0
        %3068 = vmatpush1.msra.mxu0 %v3046
        %3069 = vmatprep.subr.mxu0 0.0
        %3070 = vmatpush1.msra.mxu0 %v3047
        %3071 = vmatprep.subr.mxu0 0.0
        %3072 = vmatpush1.msra.mxu0 %v3048
        %3073 = vmatprep.subr.mxu0 0.0
        %3074 = vmatpush1.msra.mxu0 %v3049
        %3075 = vmatprep.subr.mxu0 0.0
        %3076 = vmatpush1.msra.mxu0 %v3050
        %3077 = vmatprep.subr.mxu0 0.0
        %3078 = vmatpush1.msra.mxu0 %v3051
        %3079 = vmatprep.subr.mxu0 0.0
        %3080 = vmatpush1.msra.mxu0 %v3052
        %3081 = vmatprep.subr.mxu0 0.0
        %3082 = vmatpush1.msra.mxu0 %v3053
        %3083 = vmatprep.subr.mxu0 0.0
        %3084 = vmatpush1.msra.mxu0 %v3054
        %3085 = vmatprep.subr.mxu0 0.0
        %3086 = vmatpush1.msra.mxu0 %v3055
        %3087 = vmatprep.subr.mxu0 0.0
        %3088 = vmatpush1.msra.mxu0 %v3056
        %3089 = vmatprep.subr.mxu0 0.0
        %3090 = vmatpush1.msra.mxu0 %v3057
        %3091 = vmatprep.subr.mxu0 0.0
        %3092 = vmatpush1.msra.mxu0 %v3058
        %3093 = vmatprep.subr.mxu0 0.0
        %3094 = vmatpush1.msra.mxu0 %v3059
        %3095 = vmatprep.subr.mxu0 0.0
        %3096 = vmatpush1.msra.mxu0 0.0
        %3097 = vmatprep.subr.mxu0 0.0
        %3098 = vmatpush1.msra.mxu0 0.0
        %3099 = vmatprep.subr.mxu0 0.0
        %3100 = vmatpush1.msra.mxu0 0.0
        %3101 = vmatprep.subr.mxu0 0.0
        %3102 = vmatpush1.msra.mxu0 0.0
        %3103 = vmatprep.subr.mxu0 0.0
        %3104 = vmatpush1.msra.mxu0 0.0
        %3105 = vmatprep.subr.mxu0 0.0
        %3106 = vmatpush1.msra.mxu0 0.0
        %3107 = vmatprep.subr.mxu0 0.0
        %3108 = vmatpush1.msra.mxu0 0.0
        %3109 = vmatprep.subr.mxu0 0.0
        %3110 = vmatpush1.msra.mxu0 0.0
        %3111 = vmatprep.subr.mxu0 0.0
        %3112 = vmatpush1.msra.mxu0 0.0
        %3113 = vmatprep.subr.mxu0 0.0
        %3114 = vmatpush1.msra.mxu0 0.0
        %3115 = vmatprep.subr.mxu0 0.0
        %3116 = vmatpush1.msra.mxu0 0.0
        %3117 = vmatprep.subr.mxu0 0.0
        %3118 = vmatpush1.msra.mxu0 0.0
        %3119 = vmatprep.subr.mxu0 0.0
        %3120 = vmatpush1.msra.mxu0 0.0
        %3121 = vmatprep.subr.mxu0 0.0
        %3122 = vmatpush1.msra.mxu0 0.0
        %3123 = vmatprep.subr.mxu0 0.0
        %3124 = vmatpush1.msra.mxu0 0.0
        %3125 = vmatprep.subr.mxu0 0.0
        %3126 = vmatpush1.msra.mxu0 0.0
        %3127 = vmatprep.mubr.f32.mxu0 0.0
        %3128 = vmatmul.mubr.f32.gmra.mrb[0].mxu0 %v3061
        %v3129 = vpop.f32.mrb[0].mxu0
        %v3130 = vadd.f32 0.0, %v3129
        %v3131 = vpop.f32.mrb[0].mxu0
        %3132 = vdwg.mxu0
        %v3133 = vadd.f32 %v3042, %v3130
        %s3134 = scalar_lea.vmem [#allocation9], 1664
        %v3135 = vld [vmem:[%s3134] sm:$0xff]
        %v3136 = vld [vmem:[%s3134 + $0x8] sm:$0xff]
        %v3137 = vld [vmem:[%s3134 + $0x10] sm:$0xff]
        %v3138 = vld [vmem:[%s3134 + $0x18] sm:$0xff]
        %v3139 = vld [vmem:[%s3134 + $0x20] sm:$0xff]
        %v3140 = vld [vmem:[%s3134 + $0x28] sm:$0xff]
        %v3141 = vld [vmem:[%s3134 + $0x30] sm:$0xff]
        %v3142 = vld [vmem:[%s3134 + $0x38] sm:$0xff]
        %v3143 = vld [vmem:[%s3134 + $0x40] sm:$0xff]
        %v3144 = vld [vmem:[%s3134 + $0x48] sm:$0xff]
        %v3145 = vld [vmem:[%s3134 + $0x50] sm:$0xff]
        %v3146 = vld [vmem:[%s3134 + $0x58] sm:$0xff]
        %v3147 = vld [vmem:[%s3134 + $0x60] sm:$0xff]
        %v3148 = vld [vmem:[%s3134 + $0x68] sm:$0xff]
        %v3149 = vld [vmem:[%s3134 + $0x70] sm:$0xff]
        %v3150 = vld [vmem:[%s3134 + $0x78] sm:$0xff]
        %v3151 = vrot.slane %v2595, 6
        %v3152 = vsel %vm1658, %v3151, %v1660
        %3154 = vmatprep.subr.mxu0 0.0
        %3155 = vmatpush1.msra.mxu0 %v3135
        %3156 = vmatprep.subr.mxu0 0.0
        %3157 = vmatpush1.msra.mxu0 %v3136
        %3158 = vmatprep.subr.mxu0 0.0
        %3159 = vmatpush1.msra.mxu0 %v3137
        %3160 = vmatprep.subr.mxu0 0.0
        %3161 = vmatpush1.msra.mxu0 %v3138
        %3162 = vmatprep.subr.mxu0 0.0
        %3163 = vmatpush1.msra.mxu0 %v3139
        %3164 = vmatprep.subr.mxu0 0.0
        %3165 = vmatpush1.msra.mxu0 %v3140
        %3166 = vmatprep.subr.mxu0 0.0
        %3167 = vmatpush1.msra.mxu0 %v3141
        %3168 = vmatprep.subr.mxu0 0.0
        %3169 = vmatpush1.msra.mxu0 %v3142
        %3170 = vmatprep.subr.mxu0 0.0
        %3171 = vmatpush1.msra.mxu0 %v3143
        %3172 = vmatprep.subr.mxu0 0.0
        %3173 = vmatpush1.msra.mxu0 %v3144
        %3174 = vmatprep.subr.mxu0 0.0
        %3175 = vmatpush1.msra.mxu0 %v3145
        %3176 = vmatprep.subr.mxu0 0.0
        %3177 = vmatpush1.msra.mxu0 %v3146
        %3178 = vmatprep.subr.mxu0 0.0
        %3179 = vmatpush1.msra.mxu0 %v3147
        %3180 = vmatprep.subr.mxu0 0.0
        %3181 = vmatpush1.msra.mxu0 %v3148
        %3182 = vmatprep.subr.mxu0 0.0
        %3183 = vmatpush1.msra.mxu0 %v3149
        %3184 = vmatprep.subr.mxu0 0.0
        %3185 = vmatpush1.msra.mxu0 %v3150
        %3186 = vmatprep.subr.mxu0 0.0
        %3187 = vmatpush1.msra.mxu0 0.0
        %3188 = vmatprep.subr.mxu0 0.0
        %3189 = vmatpush1.msra.mxu0 0.0
        %3190 = vmatprep.subr.mxu0 0.0
        %3191 = vmatpush1.msra.mxu0 0.0
        %3192 = vmatprep.subr.mxu0 0.0
        %3193 = vmatpush1.msra.mxu0 0.0
        %3194 = vmatprep.subr.mxu0 0.0
        %3195 = vmatpush1.msra.mxu0 0.0
        %3196 = vmatprep.subr.mxu0 0.0
        %3197 = vmatpush1.msra.mxu0 0.0
        %3198 = vmatprep.subr.mxu0 0.0
        %3199 = vmatpush1.msra.mxu0 0.0
        %3200 = vmatprep.subr.mxu0 0.0
        %3201 = vmatpush1.msra.mxu0 0.0
        %3202 = vmatprep.subr.mxu0 0.0
        %3203 = vmatpush1.msra.mxu0 0.0
        %3204 = vmatprep.subr.mxu0 0.0
        %3205 = vmatpush1.msra.mxu0 0.0
        %3206 = vmatprep.subr.mxu0 0.0
        %3207 = vmatpush1.msra.mxu0 0.0
        %3208 = vmatprep.subr.mxu0 0.0
        %3209 = vmatpush1.msra.mxu0 0.0
        %3210 = vmatprep.subr.mxu0 0.0
        %3211 = vmatpush1.msra.mxu0 0.0
        %3212 = vmatprep.subr.mxu0 0.0
        %3213 = vmatpush1.msra.mxu0 0.0
        %3214 = vmatprep.subr.mxu0 0.0
        %3215 = vmatpush1.msra.mxu0 0.0
        %3216 = vmatprep.subr.mxu0 0.0
        %3217 = vmatpush1.msra.mxu0 0.0
        %3218 = vmatprep.mubr.f32.mxu0 0.0
        %3219 = vmatmul.mubr.f32.gmra.mrb[0].mxu0 %v3152
        %v3220 = vpop.f32.mrb[0].mxu0
        %v3221 = vadd.f32 0.0, %v3220
        %v3222 = vpop.f32.mrb[0].mxu0
        %3223 = vdwg.mxu0
        %v3224 = vadd.f32 %v3133, %v3221
        %s3225 = scalar_lea.vmem %s7, 1
        %v3226 = vld [vmem:[%s3225] sm:$0x1]
        %v3228 = vlaneseq
        %v3229 = vshrl.u32 %v3228, 7
        %v3230 = vsub.s32 0, %v3229
        %v3231 = vrot.slane %v3226, %v3230
        %v3233 = vadd.f32 %v3224, %v3231
        %s3234 = scalar_lea.vmem %s8, 1
        %v3235 = vld [vmem:[%s3234] sm:$0x1]
        %s3236 = scalar_lea.vmem %s9, 1
        %v3237 = vld [vmem:[%s3236] sm:$0x1]
        %3238 = vmatprep.subr.mxu0 0.0
        %3239 = vmatpush1.msra.mxu0 %v761
        %3240 = vmatprep.subr.mxu0 0.0
        %3241 = vmatpush1.msra.mxu0 %v762
        %3242 = vmatprep.subr.mxu0 0.0
        %3243 = vmatpush1.msra.mxu0 %v763
        %3244 = vmatprep.subr.mxu0 0.0
        %3245 = vmatpush1.msra.mxu0 %v764
        %3246 = vmatprep.subr.mxu0 0.0
        %3247 = vmatpush1.msra.mxu0 %v765
        %3248 = vmatprep.subr.mxu0 0.0
        %3249 = vmatpush1.msra.mxu0 %v766
        %3250 = vmatprep.subr.mxu0 0.0
        %3251 = vmatpush1.msra.mxu0 %v767
        %3252 = vmatprep.subr.mxu0 0.0
        %3253 = vmatpush1.msra.mxu0 %v768
        %3254 = vmatprep.subr.mxu0 0.0
        %3255 = vmatpush1.msra.mxu0 %v769
        %3256 = vmatprep.subr.mxu0 0.0
        %3257 = vmatpush1.msra.mxu0 %v770
        %3258 = vmatprep.subr.mxu0 0.0
        %3259 = vmatpush1.msra.mxu0 %v771
        %3260 = vmatprep.subr.mxu0 0.0
        %3261 = vmatpush1.msra.mxu0 %v772
        %3262 = vmatprep.subr.mxu0 0.0
        %3263 = vmatpush1.msra.mxu0 %v773
        %3264 = vmatprep.subr.mxu0 0.0
        %3265 = vmatpush1.msra.mxu0 %v774
        %3266 = vmatprep.subr.mxu0 0.0
        %3267 = vmatpush1.msra.mxu0 %v775
        %3268 = vmatprep.subr.mxu0 0.0
        %3269 = vmatpush1.msra.mxu0 %v776
        %3270 = vmatprep.subr.mxu0 0.0
        %3271 = vmatpush1.msra.mxu0 0.0
        %3272 = vmatprep.subr.mxu0 0.0
        %3273 = vmatpush1.msra.mxu0 0.0
        %3274 = vmatprep.subr.mxu0 0.0
        %3275 = vmatpush1.msra.mxu0 0.0
        %3276 = vmatprep.subr.mxu0 0.0
        %3277 = vmatpush1.msra.mxu0 0.0
        %3278 = vmatprep.subr.mxu0 0.0
        %3279 = vmatpush1.msra.mxu0 0.0
        %3280 = vmatprep.subr.mxu0 0.0
        %3281 = vmatpush1.msra.mxu0 0.0
        %3282 = vmatprep.subr.mxu0 0.0
        %3283 = vmatpush1.msra.mxu0 0.0
        %3284 = vmatprep.subr.mxu0 0.0
        %3285 = vmatpush1.msra.mxu0 0.0
        %3286 = vmatprep.subr.mxu0 0.0
        %3287 = vmatpush1.msra.mxu0 0.0
        %3288 = vmatprep.subr.mxu0 0.0
        %3289 = vmatpush1.msra.mxu0 0.0
        %3290 = vmatprep.subr.mxu0 0.0
        %3291 = vmatpush1.msra.mxu0 0.0
        %3292 = vmatprep.subr.mxu0 0.0
        %3293 = vmatpush1.msra.mxu0 0.0
        %3294 = vmatprep.subr.mxu0 0.0
        %3295 = vmatpush1.msra.mxu0 0.0
        %3296 = vmatprep.subr.mxu0 0.0
        %3297 = vmatpush1.msra.mxu0 0.0
        %3298 = vmatprep.subr.mxu0 0.0
        %3299 = vmatpush1.msra.mxu0 0.0
        %3300 = vmatprep.subr.mxu0 0.0
        %3301 = vmatpush1.msra.mxu0 0.0
        %3302 = vmatprep.mubr.f32.mxu0 0.0
        %3303 = vmatmul.mubr.f32.gmra.mrb[0].mxu0 %v3233
        %v3304 = vpop.f32.mrb[0].mxu0
        %v3305 = vadd.f32 0.0, %v3304
        %v3306 = vpop.f32.mrb[0].mxu0
        %3307 = vdwg.mxu0
        %v3308 = vsub.f32 %v3233, %v3305
        %v3309 = vmul.f32 %v3308, %v3308
        %3310 = vmatprep.subr.mxu0 0.0
        %3311 = vmatpush1.msra.mxu0 %v761
        %3312 = vmatprep.subr.mxu0 0.0
        %3313 = vmatpush1.msra.mxu0 %v762
        %3314 = vmatprep.subr.mxu0 0.0
        %3315 = vmatpush1.msra.mxu0 %v763
        %3316 = vmatprep.subr.mxu0 0.0
        %3317 = vmatpush1.msra.mxu0 %v764
        %3318 = vmatprep.subr.mxu0 0.0
        %3319 = vmatpush1.msra.mxu0 %v765
        %3320 = vmatprep.subr.mxu0 0.0
        %3321 = vmatpush1.msra.mxu0 %v766
        %3322 = vmatprep.subr.mxu0 0.0
        %3323 = vmatpush1.msra.mxu0 %v767
        %3324 = vmatprep.subr.mxu0 0.0
        %3325 = vmatpush1.msra.mxu0 %v768
        %3326 = vmatprep.subr.mxu0 0.0
        %3327 = vmatpush1.msra.mxu0 %v769
        %3328 = vmatprep.subr.mxu0 0.0
        %3329 = vmatpush1.msra.mxu0 %v770
        %3330 = vmatprep.subr.mxu0 0.0
        %3331 = vmatpush1.msra.mxu0 %v771
        %3332 = vmatprep.subr.mxu0 0.0
        %3333 = vmatpush1.msra.mxu0 %v772
        %3334 = vmatprep.subr.mxu0 0.0
        %3335 = vmatpush1.msra.mxu0 %v773
        %3336 = vmatprep.subr.mxu0 0.0
        %3337 = vmatpush1.msra.mxu0 %v774
        %3338 = vmatprep.subr.mxu0 0.0
        %3339 = vmatpush1.msra.mxu0 %v775
        %3340 = vmatprep.subr.mxu0 0.0
        %3341 = vmatpush1.msra.mxu0 %v776
        %3342 = vmatprep.subr.mxu0 0.0
        %3343 = vmatpush1.msra.mxu0 0.0
        %3344 = vmatprep.subr.mxu0 0.0
        %3345 = vmatpush1.msra.mxu0 0.0
        %3346 = vmatprep.subr.mxu0 0.0
        %3347 = vmatpush1.msra.mxu0 0.0
        %3348 = vmatprep.subr.mxu0 0.0
        %3349 = vmatpush1.msra.mxu0 0.0
        %3350 = vmatprep.subr.mxu0 0.0
        %3351 = vmatpush1.msra.mxu0 0.0
        %3352 = vmatprep.subr.mxu0 0.0
        %3353 = vmatpush1.msra.mxu0 0.0
        %3354 = vmatprep.subr.mxu0 0.0
        %3355 = vmatpush1.msra.mxu0 0.0
        %3356 = vmatprep.subr.mxu0 0.0
        %3357 = vmatpush1.msra.mxu0 0.0
        %3358 = vmatprep.subr.mxu0 0.0
        %3359 = vmatpush1.msra.mxu0 0.0
        %3360 = vmatprep.subr.mxu0 0.0
        %3361 = vmatpush1.msra.mxu0 0.0
        %3362 = vmatprep.subr.mxu0 0.0
        %3363 = vmatpush1.msra.mxu0 0.0
        %3364 = vmatprep.subr.mxu0 0.0
        %3365 = vmatpush1.msra.mxu0 0.0
        %3366 = vmatprep.subr.mxu0 0.0
        %3367 = vmatpush1.msra.mxu0 0.0
        %3368 = vmatprep.subr.mxu0 0.0
        %3369 = vmatpush1.msra.mxu0 0.0
        %3370 = vmatprep.subr.mxu0 0.0
        %3371 = vmatpush1.msra.mxu0 0.0
        %3372 = vmatprep.subr.mxu0 0.0
        %3373 = vmatpush1.msra.mxu0 0.0
        %3374 = vmatprep.mubr.f32.mxu0 0.0
        %3375 = vmatmul.mubr.f32.gmra.mrb[0].mxu0 %v3309
        %v3376 = vpop.f32.mrb[0].mxu0
        %v3377 = vadd.f32 1e-06, %v3376
        %v3378 = vpop.f32.mrb[0].mxu0
        %3379 = vdwg.mxu0
        %v3380 = vrsqrt.pop %v3377
        %v3381 = vmul.f32 %v3308, %v3380
        %v3383 = vlaneseq
        %v3384 = vshrl.u32 %v3383, 7
        %v3385 = vsub.s32 0, %v3384
        %v3386 = vrot.slane %v3235, %v3385
        %v3388 = vmul.f32 %v3381, %v3386
        %v3390 = vlaneseq
        %v3391 = vshrl.u32 %v3390, 7
        %v3392 = vsub.s32 0, %v3391
        %v3393 = vrot.slane %v3237, %v3392
        %v3395 = vadd.f32 %v3388, %v3393
        %v3396 = vpack.c.bf16 %v3395, %v3395
        %s3397 = scalar_lea.vmem %s10, 256
        %v3398 = vld [vmem:[%s3397] sm:$0xff]
        %v3399 = vld [vmem:[%s3397 + $0x8] sm:$0xff]
        %v3400 = vld [vmem:[%s3397 + $0x10] sm:$0xff]
        %v3401 = vld [vmem:[%s3397 + $0x18] sm:$0xff]
        %v3402 = vld [vmem:[%s3397 + $0x20] sm:$0xff]
        %v3403 = vld [vmem:[%s3397 + $0x28] sm:$0xff]
        %v3404 = vld [vmem:[%s3397 + $0x30] sm:$0xff]
        %v3405 = vld [vmem:[%s3397 + $0x38] sm:$0xff]
        %v3406 = vld [vmem:[%s3397 + $0x40] sm:$0xff]
        %v3407 = vld [vmem:[%s3397 + $0x48] sm:$0xff]
        %v3408 = vld [vmem:[%s3397 + $0x50] sm:$0xff]
        %v3409 = vld [vmem:[%s3397 + $0x58] sm:$0xff]
        %v3410 = vld [vmem:[%s3397 + $0x60] sm:$0xff]
        %v3411 = vld [vmem:[%s3397 + $0x68] sm:$0xff]
        %v3412 = vld [vmem:[%s3397 + $0x70] sm:$0xff]
        %v3413 = vld [vmem:[%s3397 + $0x78] sm:$0xff]
        %v3414 = vld [vmem:[%s3397 + $0x80] sm:$0xff]
        %v3415 = vld [vmem:[%s3397 + $0x88] sm:$0xff]
        %v3416 = vld [vmem:[%s3397 + $0x90] sm:$0xff]
        %v3417 = vld [vmem:[%s3397 + $0x98] sm:$0xff]
        %v3418 = vld [vmem:[%s3397 + $0xa0] sm:$0xff]
        %v3419 = vld [vmem:[%s3397 + $0xa8] sm:$0xff]
        %v3420 = vld [vmem:[%s3397 + $0xb0] sm:$0xff]
        %v3421 = vld [vmem:[%s3397 + $0xb8] sm:$0xff]
        %v3422 = vld [vmem:[%s3397 + $0xc0] sm:$0xff]
        %v3423 = vld [vmem:[%s3397 + $0xc8] sm:$0xff]
        %v3424 = vld [vmem:[%s3397 + $0xd0] sm:$0xff]
        %v3425 = vld [vmem:[%s3397 + $0xd8] sm:$0xff]
        %v3426 = vld [vmem:[%s3397 + $0xe0] sm:$0xff]
        %v3427 = vld [vmem:[%s3397 + $0xe8] sm:$0xff]
        %v3428 = vld [vmem:[%s3397 + $0xf0] sm:$0xff]
        %v3429 = vld [vmem:[%s3397 + $0xf8] sm:$0xff]
        %s3430 = scalar_lea.vmem %s11, 4
        %v3431 = vld [vmem:[%s3430] sm:$0xf]
        %v3433 = vlaneseq
        %v3434 = vshrl.u32 %v3433, 7
        %v3435 = vsub.s32 0, %v3434
        %v3436 = vrot.slane %v3431, %v3435
        %v3437 = vlaneseq
        %v3438 = vshrl.u32 %v3437, 7
        %v3439 = vsub.s32 1, %v3438
        %v3440 = vrot.slane %v3431, %v3439
        %v3441 = vlaneseq
        %v3442 = vshrl.u32 %v3441, 7
        %v3443 = vsub.s32 2, %v3442
        %v3444 = vrot.slane %v3431, %v3443
        %v3445 = vlaneseq
        %v3446 = vshrl.u32 %v3445, 7
        %v3447 = vsub.s32 3, %v3446
        %v3448 = vrot.slane %v3431, %v3447
        %v3485 = vunpack.c.l.b16 %v3398
        %v3486 = vunpack.c.h.b16 %v3398
        %v3487 = vunpack.c.l.b16 %v3399
        %v3488 = vunpack.c.h.b16 %v3399
        %v3489 = vunpack.c.l.b16 %v3400
        %v3490 = vunpack.c.h.b16 %v3400
        %v3491 = vunpack.c.l.b16 %v3401
        %v3492 = vunpack.c.h.b16 %v3401
        %v3493 = vunpack.c.l.b16 %v3402
        %v3494 = vunpack.c.h.b16 %v3402
        %v3495 = vunpack.c.l.b16 %v3403
        %v3496 = vunpack.c.h.b16 %v3403
        %v3497 = vunpack.c.l.b16 %v3404
        %v3498 = vunpack.c.h.b16 %v3404
        %v3499 = vunpack.c.l.b16 %v3405
        %v3500 = vunpack.c.h.b16 %v3405
        %v3501 = vunpack.c.l.b16 %v3406
        %v3502 = vunpack.c.h.b16 %v3406
        %v3503 = vunpack.c.l.b16 %v3407
        %v3504 = vunpack.c.h.b16 %v3407
        %v3505 = vunpack.c.l.b16 %v3408
        %v3506 = vunpack.c.h.b16 %v3408
        %v3507 = vunpack.c.l.b16 %v3409
        %v3508 = vunpack.c.h.b16 %v3409
        %v3509 = vunpack.c.l.b16 %v3410
        %v3510 = vunpack.c.h.b16 %v3410
        %v3511 = vunpack.c.l.b16 %v3411
        %v3512 = vunpack.c.h.b16 %v3411
        %v3513 = vunpack.c.l.b16 %v3412
        %v3514 = vunpack.c.h.b16 %v3412
        %v3515 = vunpack.c.l.b16 %v3413
        %v3516 = vunpack.c.h.b16 %v3413
        %v3517 = vunpack.c.l.b16 %v3414
        %v3518 = vunpack.c.h.b16 %v3414
        %v3519 = vunpack.c.l.b16 %v3415
        %v3520 = vunpack.c.h.b16 %v3415
        %v3521 = vunpack.c.l.b16 %v3416
        %v3522 = vunpack.c.h.b16 %v3416
        %v3523 = vunpack.c.l.b16 %v3417
        %v3524 = vunpack.c.h.b16 %v3417
        %v3525 = vunpack.c.l.b16 %v3418
        %v3526 = vunpack.c.h.b16 %v3418
        %v3527 = vunpack.c.l.b16 %v3419
        %v3528 = vunpack.c.h.b16 %v3419
        %v3529 = vunpack.c.l.b16 %v3420
        %v3530 = vunpack.c.h.b16 %v3420
        %v3531 = vunpack.c.l.b16 %v3421
        %v3532 = vunpack.c.h.b16 %v3421
        %v3533 = vunpack.c.l.b16 %v3422
        %v3534 = vunpack.c.h.b16 %v3422
        %v3535 = vunpack.c.l.b16 %v3423
        %v3536 = vunpack.c.h.b16 %v3423
        %v3537 = vunpack.c.l.b16 %v3424
        %v3538 = vunpack.c.h.b16 %v3424
        %v3539 = vunpack.c.l.b16 %v3425
        %v3540 = vunpack.c.h.b16 %v3425
        %v3541 = vunpack.c.l.b16 %v3426
        %v3542 = vunpack.c.h.b16 %v3426
        %v3543 = vunpack.c.l.b16 %v3427
        %v3544 = vunpack.c.h.b16 %v3427
        %v3545 = vunpack.c.l.b16 %v3428
        %v3546 = vunpack.c.h.b16 %v3428
        %v3547 = vunpack.c.l.b16 %v3429
        %v3548 = vunpack.c.h.b16 %v3429
        %v3549 = vpack.c.b16 %v3489, %v3485
        %v3550 = vpack.c.b16 %v3490, %v3486
        %v3551 = vpack.c.b16 %v3491, %v3487
        %v3552 = vpack.c.b16 %v3492, %v3488
        %v3553 = vpack.c.b16 %v3497, %v3493
        %v3554 = vpack.c.b16 %v3498, %v3494
        %v3555 = vpack.c.b16 %v3499, %v3495
        %v3556 = vpack.c.b16 %v3500, %v3496
        %v3557 = vpack.c.b16 %v3505, %v3501
        %v3558 = vpack.c.b16 %v3506, %v3502
        %v3559 = vpack.c.b16 %v3507, %v3503
        %v3560 = vpack.c.b16 %v3508, %v3504
        %v3561 = vpack.c.b16 %v3513, %v3509
        %v3562 = vpack.c.b16 %v3514, %v3510
        %v3563 = vpack.c.b16 %v3515, %v3511
        %v3564 = vpack.c.b16 %v3516, %v3512
        %v3565 = vpack.c.b16 %v3521, %v3517
        %v3566 = vpack.c.b16 %v3522, %v3518
        %v3567 = vpack.c.b16 %v3523, %v3519
        %v3568 = vpack.c.b16 %v3524, %v3520
        %v3569 = vpack.c.b16 %v3529, %v3525
        %v3570 = vpack.c.b16 %v3530, %v3526
        %v3571 = vpack.c.b16 %v3531, %v3527
        %v3572 = vpack.c.b16 %v3532, %v3528
        %v3573 = vpack.c.b16 %v3537, %v3533
        %v3574 = vpack.c.b16 %v3538, %v3534
        %v3575 = vpack.c.b16 %v3539, %v3535
        %v3576 = vpack.c.b16 %v3540, %v3536
        %v3577 = vpack.c.b16 %v3545, %v3541
        %v3578 = vpack.c.b16 %v3546, %v3542
        %v3579 = vpack.c.b16 %v3547, %v3543
        %v3580 = vpack.c.b16 %v3548, %v3544
        %3613 = vmatprep.subr.bf16.mxu0 %v3550
        %3614 = vmatpush1.bf16.msra.mxu0 %v3549
        %3615 = vmatprep.subr.bf16.mxu0 %v3554
        %3616 = vmatpush1.bf16.msra.mxu0 %v3553
        %3617 = vmatprep.subr.bf16.mxu0 %v3558
        %3618 = vmatpush1.bf16.msra.mxu0 %v3557
        %3619 = vmatprep.subr.bf16.mxu0 %v3562
        %3620 = vmatpush1.bf16.msra.mxu0 %v3561
        %3621 = vmatprep.subr.bf16.mxu0 %v3566
        %3622 = vmatpush1.bf16.msra.mxu0 %v3565
        %3623 = vmatprep.subr.bf16.mxu0 %v3570
        %3624 = vmatpush1.bf16.msra.mxu0 %v3569
        %3625 = vmatprep.subr.bf16.mxu0 %v3574
        %3626 = vmatpush1.bf16.msra.mxu0 %v3573
        %3627 = vmatprep.subr.bf16.mxu0 %v3578
        %3628 = vmatpush1.bf16.msra.mxu0 %v3577
        %3629 = vmatprep.subr.bf16.mxu0 0
        %3630 = vmatpush1.bf16.msra.mxu0 0
        %3631 = vmatprep.subr.bf16.mxu0 0
        %3632 = vmatpush1.bf16.msra.mxu0 0
        %3633 = vmatprep.subr.bf16.mxu0 0
        %3634 = vmatpush1.bf16.msra.mxu0 0
        %3635 = vmatprep.subr.bf16.mxu0 0
        %3636 = vmatpush1.bf16.msra.mxu0 0
        %3637 = vmatprep.subr.bf16.mxu0 0
        %3638 = vmatpush1.bf16.msra.mxu0 0
        %3639 = vmatprep.subr.bf16.mxu0 0
        %3640 = vmatpush1.bf16.msra.mxu0 0
        %3641 = vmatprep.subr.bf16.mxu0 0
        %3642 = vmatpush1.bf16.msra.mxu0 0
        %3643 = vmatprep.subr.bf16.mxu0 0
        %3644 = vmatpush1.bf16.msra.mxu0 0
        %3645 = vmatprep.mubr.bf16.mxu0 0
        %3646 = vmatmul.mubr.bf16.gmra.mrb[0].mxu0 %v3396
        %v3647 = vpop.f32.mrb[0].mxu0
        %v3648 = vadd.f32 %v3436, %v3647
        %v3649 = vpop.f32.mrb[0].mxu0
        %v3650 = vadd.f32 %v3440, %v3649
        %v3651 = vpop.f32.mrb[0].mxu0
        %v3652 = vpop.f32.mrb[0].mxu0
        %3653 = vdwg.mxu0
        %3654 = vmatprep.subr.bf16.mxu0 %v3552
        %3655 = vmatpush1.bf16.msra.mxu0 %v3551
        %3656 = vmatprep.subr.bf16.mxu0 %v3556
        %3657 = vmatpush1.bf16.msra.mxu0 %v3555
        %3658 = vmatprep.subr.bf16.mxu0 %v3560
        %3659 = vmatpush1.bf16.msra.mxu0 %v3559
        %3660 = vmatprep.subr.bf16.mxu0 %v3564
        %3661 = vmatpush1.bf16.msra.mxu0 %v3563
        %3662 = vmatprep.subr.bf16.mxu0 %v3568
        %3663 = vmatpush1.bf16.msra.mxu0 %v3567
        %3664 = vmatprep.subr.bf16.mxu0 %v3572
        %3665 = vmatpush1.bf16.msra.mxu0 %v3571
        %3666 = vmatprep.subr.bf16.mxu0 %v3576
        %3667 = vmatpush1.bf16.msra.mxu0 %v3575
        %3668 = vmatprep.subr.bf16.mxu0 %v3580
        %3669 = vmatpush1.bf16.msra.mxu0 %v3579
        %3670 = vmatprep.subr.bf16.mxu0 0
        %3671 = vmatpush1.bf16.msra.mxu0 0
        %3672 = vmatprep.subr.bf16.mxu0 0
        %3673 = vmatpush1.bf16.msra.mxu0 0
        %3674 = vmatprep.subr.bf16.mxu0 0
        %3675 = vmatpush1.bf16.msra.mxu0 0
        %3676 = vmatprep.subr.bf16.mxu0 0
        %3677 = vmatpush1.bf16.msra.mxu0 0
        %3678 = vmatprep.subr.bf16.mxu0 0
        %3679 = vmatpush1.bf16.msra.mxu0 0
        %3680 = vmatprep.subr.bf16.mxu0 0
        %3681 = vmatpush1.bf16.msra.mxu0 0
        %3682 = vmatprep.subr.bf16.mxu0 0
        %3683 = vmatpush1.bf16.msra.mxu0 0
        %3684 = vmatprep.subr.bf16.mxu0 0
        %3685 = vmatpush1.bf16.msra.mxu0 0
        %3686 = vmatprep.mubr.bf16.mxu0 0
        %3687 = vmatmul.mubr.bf16.gmra.mrb[0].mxu0 %v3396
        %v3688 = vpop.f32.mrb[0].mxu0
        %v3689 = vadd.f32 %v3444, %v3688
        %v3690 = vpop.f32.mrb[0].mxu0
        %v3691 = vadd.f32 %v3448, %v3690
        %v3692 = vpop.f32.mrb[0].mxu0
        %v3693 = vpop.f32.mrb[0].mxu0
        %3694 = vdwg.mxu0
        %v3695 = vmul.f32 %v3648, 0.5
        %v3696 = vmul.f32 %v3650, 0.5
        %v3697 = vmul.f32 %v3689, 0.5
        %v3698 = vmul.f32 %v3691, 0.5
        %v3699 = vmul.f32 %v3648, 0.044715
        %v3700 = vmul.f32 %v3650, 0.044715
        %v3701 = vmul.f32 %v3689, 0.044715
        %v3702 = vmul.f32 %v3691, 0.044715
        %v3703 = vmul.f32 %v3699, %v3648
        %v3704 = vmul.f32 %v3700, %v3650
        %v3705 = vmul.f32 %v3701, %v3689
        %v3706 = vmul.f32 %v3702, %v3691
        %v3707 = vmul.f32 %v3703, %v3648
        %v3708 = vmul.f32 %v3704, %v3650
        %v3709 = vmul.f32 %v3705, %v3689
        %v3710 = vmul.f32 %v3706, %v3691
        %v3711 = vadd.f32 %v3648, %v3707
        %v3712 = vadd.f32 %v3650, %v3708
        %v3713 = vadd.f32 %v3689, %v3709
        %v3714 = vadd.f32 %v3691, %v3710
        %v3715 = vmul.f32 %v3711, 0.7978846
        %v3716 = vmul.f32 %v3712, 0.7978846
        %v3717 = vmul.f32 %v3713, 0.7978846
        %v3718 = vmul.f32 %v3714, 0.7978846
        %v3719 = vtanh.pop %v3715
        %v3720 = vtanh.pop %v3716
        %v3721 = vtanh.pop %v3717
        %v3722 = vtanh.pop %v3718
        %v3723 = vadd.f32 %v3719, 1.0
        %v3724 = vadd.f32 %v3720, 1.0
        %v3725 = vadd.f32 %v3721, 1.0
        %v3726 = vadd.f32 %v3722, 1.0
        %v3727 = vmul.f32 %v3695, %v3723
        %v3728 = vmul.f32 %v3696, %v3724
        %v3729 = vmul.f32 %v3697, %v3725
        %v3730 = vmul.f32 %v3698, %v3726
        %v3731 = vpack.c.bf16 %v3727, %v3727
        %v3732 = vpack.c.bf16 %v3728, %v3728
        %v3733 = vpack.c.bf16 %v3729, %v3729
        %v3734 = vpack.c.bf16 %v3730, %v3730
        %s3735 = scalar_lea.vmem %s12, 256
        %v3736 = vld [vmem:[%s3735] sm:$0xf]
        %v3737 = vld [vmem:[%s3735 + $0x4] sm:$0xf]
        %v3738 = vld [vmem:[%s3735 + $0x8] sm:$0xf]
        %v3739 = vld [vmem:[%s3735 + $0xc] sm:$0xf]
        %v3740 = vld [vmem:[%s3735 + $0x10] sm:$0xf]
        %v3741 = vld [vmem:[%s3735 + $0x14] sm:$0xf]
        %v3742 = vld [vmem:[%s3735 + $0x18] sm:$0xf]
        %v3743 = vld [vmem:[%s3735 + $0x1c] sm:$0xf]
        %v3744 = vld [vmem:[%s3735 + $0x20] sm:$0xf]
        %v3745 = vld [vmem:[%s3735 + $0x24] sm:$0xf]
        %v3746 = vld [vmem:[%s3735 + $0x28] sm:$0xf]
        %v3747 = vld [vmem:[%s3735 + $0x2c] sm:$0xf]
        %v3748 = vld [vmem:[%s3735 + $0x30] sm:$0xf]
        %v3749 = vld [vmem:[%s3735 + $0x34] sm:$0xf]
        %v3750 = vld [vmem:[%s3735 + $0x38] sm:$0xf]
        %v3751 = vld [vmem:[%s3735 + $0x3c] sm:$0xf]
        %v3752 = vld [vmem:[%s3735 + $0x40] sm:$0xf]
        %v3753 = vld [vmem:[%s3735 + $0x44] sm:$0xf]
        %v3754 = vld [vmem:[%s3735 + $0x48] sm:$0xf]
        %v3755 = vld [vmem:[%s3735 + $0x4c] sm:$0xf]
        %v3756 = vld [vmem:[%s3735 + $0x50] sm:$0xf]
        %v3757 = vld [vmem:[%s3735 + $0x54] sm:$0xf]
        %v3758 = vld [vmem:[%s3735 + $0x58] sm:$0xf]
        %v3759 = vld [vmem:[%s3735 + $0x5c] sm:$0xf]
        %v3760 = vld [vmem:[%s3735 + $0x60] sm:$0xf]
        %v3761 = vld [vmem:[%s3735 + $0x64] sm:$0xf]
        %v3762 = vld [vmem:[%s3735 + $0x68] sm:$0xf]
        %v3763 = vld [vmem:[%s3735 + $0x6c] sm:$0xf]
        %v3764 = vld [vmem:[%s3735 + $0x70] sm:$0xf]
        %v3765 = vld [vmem:[%s3735 + $0x74] sm:$0xf]
        %v3766 = vld [vmem:[%s3735 + $0x78] sm:$0xf]
        %v3767 = vld [vmem:[%s3735 + $0x7c] sm:$0xf]
        %v3768 = vld [vmem:[%s3735 + $0x80] sm:$0xf]
        %v3769 = vld [vmem:[%s3735 + $0x84] sm:$0xf]
        %v3770 = vld [vmem:[%s3735 + $0x88] sm:$0xf]
        %v3771 = vld [vmem:[%s3735 + $0x8c] sm:$0xf]
        %v3772 = vld [vmem:[%s3735 + $0x90] sm:$0xf]
        %v3773 = vld [vmem:[%s3735 + $0x94] sm:$0xf]
        %v3774 = vld [vmem:[%s3735 + $0x98] sm:$0xf]
        %v3775 = vld [vmem:[%s3735 + $0x9c] sm:$0xf]
        %v3776 = vld [vmem:[%s3735 + $0xa0] sm:$0xf]
        %v3777 = vld [vmem:[%s3735 + $0xa4] sm:$0xf]
        %v3778 = vld [vmem:[%s3735 + $0xa8] sm:$0xf]
        %v3779 = vld [vmem:[%s3735 + $0xac] sm:$0xf]
        %v3780 = vld [vmem:[%s3735 + $0xb0] sm:$0xf]
        %v3781 = vld [vmem:[%s3735 + $0xb4] sm:$0xf]
        %v3782 = vld [vmem:[%s3735 + $0xb8] sm:$0xf]
        %v3783 = vld [vmem:[%s3735 + $0xbc] sm:$0xf]
        %v3784 = vld [vmem:[%s3735 + $0xc0] sm:$0xf]
        %v3785 = vld [vmem:[%s3735 + $0xc4] sm:$0xf]
        %v3786 = vld [vmem:[%s3735 + $0xc8] sm:$0xf]
        %v3787 = vld [vmem:[%s3735 + $0xcc] sm:$0xf]
        %v3788 = vld [vmem:[%s3735 + $0xd0] sm:$0xf]
        %v3789 = vld [vmem:[%s3735 + $0xd4] sm:$0xf]
        %v3790 = vld [vmem:[%s3735 + $0xd8] sm:$0xf]
        %v3791 = vld [vmem:[%s3735 + $0xdc] sm:$0xf]
        %v3792 = vld [vmem:[%s3735 + $0xe0] sm:$0xf]
        %v3793 = vld [vmem:[%s3735 + $0xe4] sm:$0xf]
        %v3794 = vld [vmem:[%s3735 + $0xe8] sm:$0xf]
        %v3795 = vld [vmem:[%s3735 + $0xec] sm:$0xf]
        %v3796 = vld [vmem:[%s3735 + $0xf0] sm:$0xf]
        %v3797 = vld [vmem:[%s3735 + $0xf4] sm:$0xf]
        %v3798 = vld [vmem:[%s3735 + $0xf8] sm:$0xf]
        %v3799 = vld [vmem:[%s3735 + $0xfc] sm:$0xf]
        %s3800 = scalar_lea.vmem %s13, 1
        %v3801 = vld [vmem:[%s3800] sm:$0x1]
        %v3803 = vlaneseq
        %v3804 = vshrl.u32 %v3803, 7
        %v3805 = vsub.s32 0, %v3804
        %v3806 = vrot.slane %v3801, %v3805
        %v3872 = vunpack.c.l.b16 %v3736
        %v3873 = vunpack.c.l.b16 %v3737
        %v3874 = vunpack.c.l.b16 %v3738
        %v3875 = vunpack.c.l.b16 %v3739
        %v3876 = vunpack.c.l.b16 %v3740
        %v3877 = vunpack.c.l.b16 %v3741
        %v3878 = vunpack.c.l.b16 %v3742
        %v3879 = vunpack.c.l.b16 %v3743
        %v3880 = vunpack.c.l.b16 %v3744
        %v3881 = vunpack.c.l.b16 %v3745
        %v3882 = vunpack.c.l.b16 %v3746
        %v3883 = vunpack.c.l.b16 %v3747
        %v3884 = vunpack.c.l.b16 %v3748
        %v3885 = vunpack.c.l.b16 %v3749
        %v3886 = vunpack.c.l.b16 %v3750
        %v3887 = vunpack.c.l.b16 %v3751
        %v3888 = vunpack.c.l.b16 %v3752
        %v3889 = vunpack.c.l.b16 %v3753
        %v3890 = vunpack.c.l.b16 %v3754
        %v3891 = vunpack.c.l.b16 %v3755
        %v3892 = vunpack.c.l.b16 %v3756
        %v3893 = vunpack.c.l.b16 %v3757
        %v3894 = vunpack.c.l.b16 %v3758
        %v3895 = vunpack.c.l.b16 %v3759
        %v3896 = vunpack.c.l.b16 %v3760
        %v3897 = vunpack.c.l.b16 %v3761
        %v3898 = vunpack.c.l.b16 %v3762
        %v3899 = vunpack.c.l.b16 %v3763
        %v3900 = vunpack.c.l.b16 %v3764
        %v3901 = vunpack.c.l.b16 %v3765
        %v3902 = vunpack.c.l.b16 %v3766
        %v3903 = vunpack.c.l.b16 %v3767
        %v3904 = vunpack.c.l.b16 %v3768
        %v3905 = vunpack.c.l.b16 %v3769
        %v3906 = vunpack.c.l.b16 %v3770
        %v3907 = vunpack.c.l.b16 %v3771
        %v3908 = vunpack.c.l.b16 %v3772
        %v3909 = vunpack.c.l.b16 %v3773
        %v3910 = vunpack.c.l.b16 %v3774
        %v3911 = vunpack.c.l.b16 %v3775
        %v3912 = vunpack.c.l.b16 %v3776
        %v3913 = vunpack.c.l.b16 %v3777
        %v3914 = vunpack.c.l.b16 %v3778
        %v3915 = vunpack.c.l.b16 %v3779
        %v3916 = vunpack.c.l.b16 %v3780
        %v3917 = vunpack.c.l.b16 %v3781
        %v3918 = vunpack.c.l.b16 %v3782
        %v3919 = vunpack.c.l.b16 %v3783
        %v3920 = vunpack.c.l.b16 %v3784
        %v3921 = vunpack.c.l.b16 %v3785
        %v3922 = vunpack.c.l.b16 %v3786
        %v3923 = vunpack.c.l.b16 %v3787
        %v3924 = vunpack.c.l.b16 %v3788
        %v3925 = vunpack.c.l.b16 %v3789
        %v3926 = vunpack.c.l.b16 %v3790
        %v3927 = vunpack.c.l.b16 %v3791
        %v3928 = vunpack.c.l.b16 %v3792
        %v3929 = vunpack.c.l.b16 %v3793
        %v3930 = vunpack.c.l.b16 %v3794
        %v3931 = vunpack.c.l.b16 %v3795
        %v3932 = vunpack.c.l.b16 %v3796
        %v3933 = vunpack.c.l.b16 %v3797
        %v3934 = vunpack.c.l.b16 %v3798
        %v3935 = vunpack.c.l.b16 %v3799
        %v3936 = vpack.c.b16 %v3873, %v3872
        %v3937 = vpack.c.b16 %v3875, %v3874
        %v3938 = vpack.c.b16 %v3877, %v3876
        %v3939 = vpack.c.b16 %v3879, %v3878
        %v3940 = vpack.c.b16 %v3881, %v3880
        %v3941 = vpack.c.b16 %v3883, %v3882
        %v3942 = vpack.c.b16 %v3885, %v3884
        %v3943 = vpack.c.b16 %v3887, %v3886
        %v3944 = vpack.c.b16 %v3889, %v3888
        %v3945 = vpack.c.b16 %v3891, %v3890
        %v3946 = vpack.c.b16 %v3893, %v3892
        %v3947 = vpack.c.b16 %v3895, %v3894
        %v3948 = vpack.c.b16 %v3897, %v3896
        %v3949 = vpack.c.b16 %v3899, %v3898
        %v3950 = vpack.c.b16 %v3901, %v3900
        %v3951 = vpack.c.b16 %v3903, %v3902
        %v3952 = vpack.c.b16 %v3905, %v3904
        %v3953 = vpack.c.b16 %v3907, %v3906
        %v3954 = vpack.c.b16 %v3909, %v3908
        %v3955 = vpack.c.b16 %v3911, %v3910
        %v3956 = vpack.c.b16 %v3913, %v3912
        %v3957 = vpack.c.b16 %v3915, %v3914
        %v3958 = vpack.c.b16 %v3917, %v3916
        %v3959 = vpack.c.b16 %v3919, %v3918
        %v3960 = vpack.c.b16 %v3921, %v3920
        %v3961 = vpack.c.b16 %v3923, %v3922
        %v3962 = vpack.c.b16 %v3925, %v3924
        %v3963 = vpack.c.b16 %v3927, %v3926
        %v3964 = vpack.c.b16 %v3929, %v3928
        %v3965 = vpack.c.b16 %v3931, %v3930
        %v3966 = vpack.c.b16 %v3933, %v3932
        %v3967 = vpack.c.b16 %v3935, %v3934
        %4000 = vmatprep.subr.bf16.mxu0 0
        %4001 = vmatpush1.bf16.msra.mxu0 %v3936
        %4002 = vmatprep.subr.bf16.mxu0 0
        %4003 = vmatpush1.bf16.msra.mxu0 %v3937
        %4004 = vmatprep.subr.bf16.mxu0 0
        %4005 = vmatpush1.bf16.msra.mxu0 %v3938
        %4006 = vmatprep.subr.bf16.mxu0 0
        %4007 = vmatpush1.bf16.msra.mxu0 %v3939
        %4008 = vmatprep.subr.bf16.mxu0 0
        %4009 = vmatpush1.bf16.msra.mxu0 %v3940
        %4010 = vmatprep.subr.bf16.mxu0 0
        %4011 = vmatpush1.bf16.msra.mxu0 %v3941
        %4012 = vmatprep.subr.bf16.mxu0 0
        %4013 = vmatpush1.bf16.msra.mxu0 %v3942
        %4014 = vmatprep.subr.bf16.mxu0 0
        %4015 = vmatpush1.bf16.msra.mxu0 %v3943
        %4016 = vmatprep.subr.bf16.mxu0 0
        %4017 = vmatpush1.bf16.msra.mxu0 %v3944
        %4018 = vmatprep.subr.bf16.mxu0 0
        %4019 = vmatpush1.bf16.msra.mxu0 %v3945
        %4020 = vmatprep.subr.bf16.mxu0 0
        %4021 = vmatpush1.bf16.msra.mxu0 %v3946
        %4022 = vmatprep.subr.bf16.mxu0 0
        %4023 = vmatpush1.bf16.msra.mxu0 %v3947
        %4024 = vmatprep.subr.bf16.mxu0 0
        %4025 = vmatpush1.bf16.msra.mxu0 %v3948
        %4026 = vmatprep.subr.bf16.mxu0 0
        %4027 = vmatpush1.bf16.msra.mxu0 %v3949
        %4028 = vmatprep.subr.bf16.mxu0 0
        %4029 = vmatpush1.bf16.msra.mxu0 %v3950
        %4030 = vmatprep.subr.bf16.mxu0 0
        %4031 = vmatpush1.bf16.msra.mxu0 %v3951
        %4032 = vmatprep.mubr.bf16.mxu0 %v3732
        %4033 = vmatmul.mubr.bf16.gmra.mrb[0].mxu0 %v3731
        %v4034 = vpop.f32.mrb[0].mxu0
        %v4035 = vadd.f32 %v3806, %v4034
        %v4036 = vpop.f32.mrb[0].mxu0
        %v4037 = vpop.f32.mrb[0].mxu0
        %v4038 = vpop.f32.mrb[0].mxu0
        %4039 = vdwg.mxu0
        %4040 = vmatprep.subr.bf16.mxu0 0
        %4041 = vmatpush1.bf16.msra.mxu0 %v3952
        %4042 = vmatprep.subr.bf16.mxu0 0
        %4043 = vmatpush1.bf16.msra.mxu0 %v3953
        %4044 = vmatprep.subr.bf16.mxu0 0
        %4045 = vmatpush1.bf16.msra.mxu0 %v3954
        %4046 = vmatprep.subr.bf16.mxu0 0
        %4047 = vmatpush1.bf16.msra.mxu0 %v3955
        %4048 = vmatprep.subr.bf16.mxu0 0
        %4049 = vmatpush1.bf16.msra.mxu0 %v3956
        %4050 = vmatprep.subr.bf16.mxu0 0
        %4051 = vmatpush1.bf16.msra.mxu0 %v3957
        %4052 = vmatprep.subr.bf16.mxu0 0
        %4053 = vmatpush1.bf16.msra.mxu0 %v3958
        %4054 = vmatprep.subr.bf16.mxu0 0
        %4055 = vmatpush1.bf16.msra.mxu0 %v3959
        %4056 = vmatprep.subr.bf16.mxu0 0
        %4057 = vmatpush1.bf16.msra.mxu0 %v3960
        %4058 = vmatprep.subr.bf16.mxu0 0
        %4059 = vmatpush1.bf16.msra.mxu0 %v3961
        %4060 = vmatprep.subr.bf16.mxu0 0
        %4061 = vmatpush1.bf16.msra.mxu0 %v3962
        %4062 = vmatprep.subr.bf16.mxu0 0
        %4063 = vmatpush1.bf16.msra.mxu0 %v3963
        %4064 = vmatprep.subr.bf16.mxu0 0
        %4065 = vmatpush1.bf16.msra.mxu0 %v3964
        %4066 = vmatprep.subr.bf16.mxu0 0
        %4067 = vmatpush1.bf16.msra.mxu0 %v3965
        %4068 = vmatprep.subr.bf16.mxu0 0
        %4069 = vmatpush1.bf16.msra.mxu0 %v3966
        %4070 = vmatprep.subr.bf16.mxu0 0
        %4071 = vmatpush1.bf16.msra.mxu0 %v3967
        %4072 = vmatprep.mubr.bf16.mxu0 %v3734
        %4073 = vmatmul.mubr.bf16.gmra.mrb[0].mxu0 %v3733
        %v4074 = vpop.f32.mrb[0].mxu0
        %v4075 = vadd.f32 %v4035, %v4074
        %v4076 = vpop.f32.mrb[0].mxu0
        %v4077 = vpop.f32.mrb[0].mxu0
        %v4078 = vpop.f32.mrb[0].mxu0
        %4079 = vdwg.mxu0
        %s4080 = scalar_lea.vmem [#allocation10], 1
        %v4081 = vld [vmem:[%s4080] sm:$0x1]
        %v4083 = vlaneseq
        %v4084 = vshrl.u32 %v4083, 7
        %v4085 = vsub.s32 0, %v4084
        %v4086 = vrot.slane %v4081, %v4085
        %v4088 = vmul.f32 %v4075, %v4086
        %v4089 = vadd.f32 %v2590, %v4088
        %vm4090 = vcmask 1043456
        %v4091 = vsel %vm4090, %v4089, 0.0
        %v4092 = vrot.slane %v4091, 4
        %v4093 = vadd.f32 %v4091, %v4092
        %v4094 = vrot.slane %v4093, 2
        %v4095 = vadd.f32 %v4093, %v4094
        %v4096 = vrot.slane %v4095, 1
        %v4097 = vadd.f32 %v4095, %v4096
        %v4098 = vrcp.pop 4.0
        %v4099 = vmul.f32 %v4097, %v4098
        %v4100 = vld [vmem:[%s15] sm:$0xff]
        %v4101 = vld [vmem:[%s15 + $0x8] sm:$0xff]
        %v4102 = vld [vmem:[%s15 + $0x10] sm:$0xff]
        %v4103 = vld [vmem:[%s15 + $0x18] sm:$0xff]
        %v4104 = vld [vmem:[%s15 + $0x20] sm:$0xff]
        %v4105 = vld [vmem:[%s15 + $0x28] sm:$0xff]
        %v4106 = vld [vmem:[%s15 + $0x30] sm:$0xff]
        %v4107 = vld [vmem:[%s15 + $0x38] sm:$0xff]
        %v4108 = vld [vmem:[%s15 + $0x40] sm:$0xff]
        %v4109 = vld [vmem:[%s15 + $0x48] sm:$0xff]
        %v4110 = vld [vmem:[%s15 + $0x50] sm:$0xff]
        %v4111 = vld [vmem:[%s15 + $0x58] sm:$0xff]
        %v4112 = vld [vmem:[%s15 + $0x60] sm:$0xff]
        %v4113 = vld [vmem:[%s15 + $0x68] sm:$0xff]
        %v4114 = vld [vmem:[%s15 + $0x70] sm:$0xff]
        %v4115 = vld [vmem:[%s15 + $0x78] sm:$0xff]
        %4116 = vmatprep.subr.mxu0 0.0
        %4117 = vmatpush1.msra.mxu0 %v4100
        %4118 = vmatprep.subr.mxu0 0.0
        %4119 = vmatpush1.msra.mxu0 %v4101
        %4120 = vmatprep.subr.mxu0 0.0
        %4121 = vmatpush1.msra.mxu0 %v4102
        %4122 = vmatprep.subr.mxu0 0.0
        %4123 = vmatpush1.msra.mxu0 %v4103
        %4124 = vmatprep.subr.mxu0 0.0
        %4125 = vmatpush1.msra.mxu0 %v4104
        %4126 = vmatprep.subr.mxu0 0.0
        %4127 = vmatpush1.msra.mxu0 %v4105
        %4128 = vmatprep.subr.mxu0 0.0
        %4129 = vmatpush1.msra.mxu0 %v4106
        %4130 = vmatprep.subr.mxu0 0.0
        %4131 = vmatpush1.msra.mxu0 %v4107
        %4132 = vmatprep.subr.mxu0 0.0
        %4133 = vmatpush1.msra.mxu0 %v4108
        %4134 = vmatprep.subr.mxu0 0.0
        %4135 = vmatpush1.msra.mxu0 %v4109
        %4136 = vmatprep.subr.mxu0 0.0
        %4137 = vmatpush1.msra.mxu0 %v4110
        %4138 = vmatprep.subr.mxu0 0.0
        %4139 = vmatpush1.msra.mxu0 %v4111
        %4140 = vmatprep.subr.mxu0 0.0
        %4141 = vmatpush1.msra.mxu0 %v4112
        %4142 = vmatprep.subr.mxu0 0.0
        %4143 = vmatpush1.msra.mxu0 %v4113
        %4144 = vmatprep.subr.mxu0 0.0
        %4145 = vmatpush1.msra.mxu0 %v4114
        %4146 = vmatprep.subr.mxu0 0.0
        %4147 = vmatpush1.msra.mxu0 %v4115
        %4148 = vmatprep.subr.mxu0 0.0
        %4149 = vmatpush1.msra.mxu0 0.0
        %4150 = vmatprep.subr.mxu0 0.0
        %4151 = vmatpush1.msra.mxu0 0.0
        %4152 = vmatprep.subr.mxu0 0.0
        %4153 = vmatpush1.msra.mxu0 0.0
        %4154 = vmatprep.subr.mxu0 0.0
        %4155 = vmatpush1.msra.mxu0 0.0
        %4156 = vmatprep.subr.mxu0 0.0
        %4157 = vmatpush1.msra.mxu0 0.0
        %4158 = vmatprep.subr.mxu0 0.0
        %4159 = vmatpush1.msra.mxu0 0.0
        %4160 = vmatprep.subr.mxu0 0.0
        %4161 = vmatpush1.msra.mxu0 0.0
        %4162 = vmatprep.subr.mxu0 0.0
        %4163 = vmatpush1.msra.mxu0 0.0
        %4164 = vmatprep.subr.mxu0 0.0
        %4165 = vmatpush1.msra.mxu0 0.0
        %4166 = vmatprep.subr.mxu0 0.0
        %4167 = vmatpush1.msra.mxu0 0.0
        %4168 = vmatprep.subr.mxu0 0.0
        %4169 = vmatpush1.msra.mxu0 0.0
        %4170 = vmatprep.subr.mxu0 0.0
        %4171 = vmatpush1.msra.mxu0 0.0
        %4172 = vmatprep.subr.mxu0 0.0
        %4173 = vmatpush1.msra.mxu0 0.0
        %4174 = vmatprep.subr.mxu0 0.0
        %4175 = vmatpush1.msra.mxu0 0.0
        %4176 = vmatprep.subr.mxu0 0.0
        %4177 = vmatpush1.msra.mxu0 0.0
        %4178 = vmatprep.subr.mxu0 0.0
        %4179 = vmatpush1.msra.mxu0 0.0
        %4180 = vmatprep.mubr.f32.mxu0 0.0
        %4181 = vmatmul.mubr.f32.gmra.mrb[0].mxu0 %v4099
        %v4182 = vpop.f32.mrb[0].mxu0
        %v4183 = vadd.f32 0.0, %v4182
        %v4184 = vpop.f32.mrb[0].mxu0
        %4185 = vdwg.mxu0
        %v4186 = vld [vmem:[#allocation12] sm:$0x1]
        %v4187 = vld [vmem:[#allocation13] sm:$0x1]
        %vm4188 = vcmask 253952
        %v4189 = vsel %vm4188, %v4183, 0.0
        %4190 = vadd.xlane.f32.xlu0 %v4189
        %v4191 = vpop.xlane.xlu0 %4190
        %v4192 = vrcp.pop 32.0
        %v4193 = vmul.f32 %v4191, %v4192
        %v4194 = vsub.f32 %v4183, %v4193
        %v4195 = vmul.f32 %v4194, %v4194
        %v4196 = vsel %vm4188, %v4195, 0.0
        %4197 = vadd.xlane.f32.xlu0 %v4196
        %v4198 = vpop.xlane.xlu0 %4197
        %v4199 = vmul.f32 %v4198, %v4192
        %v4200 = vadd.f32 %v4199, 1e-06
        %v4201 = vrsqrt.pop %v4200
        %v4202 = vmul.f32 %v4194, %v4201
        %v4203 = vmul.f32 %v4202, %v4186
        %v4204 = vadd.f32 %v4203, %v4187
        %v4205 = vpack.c.bf16 %v4204, %v4204
        %v4206 = vld [vmem:[#allocation15] sm:$0xf]
        %v4207 = vld [vmem:[#allocation15 + $0x4] sm:$0xf]
        %v4208 = vld [vmem:[#allocation15 + $0x8] sm:$0xf]
        %v4209 = vld [vmem:[#allocation15 + $0xc] sm:$0xf]
        %v4210 = vld [vmem:[#allocation16] sm:$0x1]
        %v4215 = vunpack.c.l.b16 %v4206
        %v4216 = vunpack.c.l.b16 %v4207
        %v4217 = vunpack.c.l.b16 %v4208
        %v4218 = vunpack.c.l.b16 %v4209
        %v4219 = vpack.c.b16 %v4216, %v4215
        %v4220 = vpack.c.b16 %v4218, %v4217
        %vm4223 = vcmask 261120
        %v4225 = vsel %vm4223, %v4205, 0
        %4227 = vmatprep.subr.bf16.mxu0 0
        %4228 = vmatpush1.bf16.msra.mxu0 %v4219
        %4229 = vmatprep.subr.bf16.mxu0 0
        %4230 = vmatpush1.bf16.msra.mxu0 %v4220
        %4231 = vmatprep.subr.bf16.mxu0 0
        %4232 = vmatpush1.bf16.msra.mxu0 0
        %4233 = vmatprep.subr.bf16.mxu0 0
        %4234 = vmatpush1.bf16.msra.mxu0 0
        %4235 = vmatprep.subr.bf16.mxu0 0
        %4236 = vmatpush1.bf16.msra.mxu0 0
        %4237 = vmatprep.subr.bf16.mxu0 0
        %4238 = vmatpush1.bf16.msra.mxu0 0
        %4239 = vmatprep.subr.bf16.mxu0 0
        %4240 = vmatpush1.bf16.msra.mxu0 0
        %4241 = vmatprep.subr.bf16.mxu0 0
        %4242 = vmatpush1.bf16.msra.mxu0 0
        %4243 = vmatprep.subr.bf16.mxu0 0
        %4244 = vmatpush1.bf16.msra.mxu0 0
        %4245 = vmatprep.subr.bf16.mxu0 0
        %4246 = vmatpush1.bf16.msra.mxu0 0
        %4247 = vmatprep.subr.bf16.mxu0 0
        %4248 = vmatpush1.bf16.msra.mxu0 0
        %4249 = vmatprep.subr.bf16.mxu0 0
        %4250 = vmatpush1.bf16.msra.mxu0 0
        %4251 = vmatprep.subr.bf16.mxu0 0
        %4252 = vmatpush1.bf16.msra.mxu0 0
        %4253 = vmatprep.subr.bf16.mxu0 0
        %4254 = vmatpush1.bf16.msra.mxu0 0
        %4255 = vmatprep.subr.bf16.mxu0 0
        %4256 = vmatpush1.bf16.msra.mxu0 0
        %4257 = vmatprep.subr.bf16.mxu0 0
        %4258 = vmatpush1.bf16.msra.mxu0 0
        %4259 = vmatprep.mubr.bf16.mxu0 0
        %4260 = vmatmul.mubr.bf16.gmra.mrb[0].mxu0 %v4225
        %v4261 = vpop.f32.mrb[0].mxu0
        %v4262 = vadd.f32 %v4210, %v4261
        %v4263 = vpop.f32.mrb[0].mxu0
        %v4264 = vpop.f32.mrb[0].mxu0
        %v4265 = vpop.f32.mrb[0].mxu0
        %4266 = vdwg.mxu0
        %4267 = vst [vmem:[%s759] sm:$0x1] %v4262
        %p4268 = scmp.lt.s32.totalorder %s37, 1
        %s4269 = scalar_select %p4268, %s37, 1
        %s4270 = scalar_lea.vmem %s20, %s4269
        // Predicated region
        $region141: #{geomt_forward.1} parent=99 // pred_check
          %p4271 = pneg %p480
        $region142: #{geomt_forward.1} parent=99 // pred_check_branch
          %4273 = sbr.rel (%p4271) target = $region144
        $region143: #{geomt_forward.1} parent=99 // pred_region
          _
        $region144: #{geomt_forward.1} parent=99 // pred_fallthru
          _
      $region100: #{geomt_forward.1} parent=5 // pred_fallthru
        _
      %p4274 = scmp.le.s32.totalorder 2, %s32
      // Predicated region
      $region145: #{geomt_forward.1} parent=5 // pred_check
        %p4275 = pneg %p4274
      $region146: #{geomt_forward.1} parent=5 // pred_check_branch
        %4277 = sbr.rel (%p4275) target = $region148
      $region147: #{geomt_forward.1} parent=5 // pred_region
        %s4278 = ssub.s32 %s32, 2
        // Predicated region
        $region149: #{geomt_forward.1} parent=147 // pred_check
          %p4279 = pneg %p486
        $region150: #{geomt_forward.1} parent=147 // pred_check_branch
          %4281 = sbr.rel (%p4279) target = $region152
        $region151: #{geomt_forward.1} parent=147 // pred_region
          %p4282 = scmp.lt.s32.totalorder %s38, 1
          %s4283 = scalar_select %p4282, %s38, 1
          %s4284 = scalar_lea.vmem %s20, %s4283
        $region152: #{geomt_forward.1} parent=147 // pred_fallthru
          _
      $region148: #{geomt_forward.1} parent=5 // pred_fallthru
        _
    $region6: #{geomt_forward.1} parent=1 // loop_footer
      %s36 = sadd.s32 1, %s32
    $region7: #{geomt_forward.1} parent=1 // loop_footer_branch
      %31 = sbr.rel target = $region3
    $region8: #{geomt_forward.1} parent=1 // loop_exit
      _
    %4285 = vsyncpa [#allocation3], 1
    %s4286 = scalar_lea.sflag [#allocation3], 1
    %4287 = vsyncpa %s4286, 1
    %4288 = vsyncpa [#allocation5], 1
    %4289 = vsyncpa [#allocation8], 1
    %4290 = vsyncpa [#allocation11], 1
    %4291 = vsyncpa [#allocation14], 1
    %4292 = vsyncpa [#allocation17], 1

</llo_original>
